<compile_context>
chip_gen: v6e
topology: v6e:2x2x1
jax: 0.10.0
libtpu: 0.0.40
codegen_flags: <defaults>
</compile_context>

<pallas_src>
import jax
import jax.numpy as jnp
from jax import lax
from jax.experimental import pallas as pl
from jax.experimental.pallas import tpu as pltpu

LANE = 128
HEAD_ROWS = 8  # head output padded to a full sublane group for lane-dense stores


def _round_up(x, m):
    return ((x + m - 1) // m) * m


def gin_regression_kernel(a_ref, x_ref,
                          w1_ref, b1_ref,
                          w2_ref, b2_ref,
                          w3_ref, b3_ref,
                          wl_ref, bl_ref,
                          out_ref):
    # a_ref: [G, Np, Np] bf16/f32 adjacency with self-loops folded in (GIN eps=0).
    # x_ref: [G, Np, Fp] node features.
    a = a_ref[...]
    h = x_ref[...]

    def gin_layer(h, w_ref, b_ref):
        # GINConv(eps=0): Linear(h_i + sum_{j in N(i)} h_j) == Linear((A + I) @ h)
        agg = jnp.einsum('gnm,gmf->gnf', a, h,
                         preferred_element_type=jnp.float32)
        lin = jnp.einsum('gnf,fo->gno', agg.astype(w_ref.dtype), w_ref[...],
                         preferred_element_type=jnp.float32)
        return jnp.maximum(lin + b_ref[...], 0.0).astype(a.dtype)  # F.relu

    h = gin_layer(h, w1_ref, b1_ref)    # [G, Np, Hp]
    h = gin_layer(h, w2_ref, b2_ref)    # [G, Np, Hp]
    h = gin_layer(h, w3_ref, b3_ref)    # [G, Np, Hp]

    # Regression head, stored transposed & lane-dense: [8, Hp] x [Np, Hp]^T -> [8, Np]
    # (only row 0 of the padded head weight is real). Static unroll over packed graphs.
    for g in range(h.shape[0]):
        og = lax.dot_general(wl_ref[...], h[g],
                             dimension_numbers=(((1,), (1,)), ((), ())),
                             preferred_element_type=jnp.float32)   # [8, Np]
        out_ref[g] = og + bl_ref[...]


def gin_regression_pallas(x, edge_index, params, *,
                          graphs_per_step=4, use_bf16=True):
    """Batched GINRegression forward.

    x:          [B, N, F] float32 node features (B independent graphs).
    edge_index: [B, 2, E] int32, row 0 = src, row 1 = dst, per graph.
    params:     ((w1,b1),(w2,b2),(w3,b3),(wl,bl)); Linear weights stored [in, out].
    Returns:    [B, N, 1] float32.
    """
    B, N, F = x.shape
    (w1, b1), (w2, b2), (w3, b3), (wl, bl) = params
    H = w1.shape[1]

    compute_dtype = jnp.bfloat16 if use_bf16 else jnp.float32
    bpe = 2 if use_bf16 else 4

    # Lane-dense padded shapes (zero padding is numerically exact).
    Np = _round_up(N, LANE)   # node rows AND contraction dim of A'@h
    Fp = _round_up(F, LANE)
    Hp = _round_up(H, LANE)

    # Pack G graphs per grid step; pad the batch with zero graphs to a multiple of G.
    G = max(1, min(graphs_per_step, B))
    Bp = _round_up(B, G)

    # Dense adjacency with self-loops folded into the scatter-add: A' = A + I
    # (self-loops only on real nodes / real graphs; padded rows & graphs stay zero).
    self_loops = jnp.broadcast_to(
        jnp.arange(N, dtype=edge_index.dtype)[None, None, :], (B, 2, N))
    ei = jnp.concatenate([edge_index, self_loops], axis=-1)       # [B, 2, E+N]
    src, dst = ei[:, 0, :], ei[:, 1, :]
    b_idx = jnp.arange(B, dtype=jnp.int32)[:, None]
    adj = (jnp.zeros((Bp, Np, Np), jnp.float32)
           .at[b_idx, dst, src].add(1.0)
           .astype(compute_dtype))                                # degrees exact in bf16

    # Zero-pad activations and parameters.
    xp = (jnp.zeros((Bp, Np, Fp), jnp.float32)
          .at[:B, :N, :F].set(x)
          .astype(compute_dtype))

    def pad_linear(w, b, fi, fo):
        wp = (jnp.zeros((fi, fo), jnp.float32)
              .at[:w.shape[0], :w.shape[1]].set(w).astype(compute_dtype))
        bp = jnp.zeros((1, fo), jnp.float32).at[:, :b.shape[1]].set(b)   # f32 bias
        return wp, bp

    w1p, b1p = pad_linear(w1, b1, Fp, Hp)
    w2p, b2p = pad_linear(w2, b2, Hp, Hp)
    w3p, b3p = pad_linear(w3, b3, Hp, Hp)
    # Head stored transposed: [HEAD_ROWS, Hp], real weight in row 0.
    wlp = (jnp.zeros((HEAD_ROWS, Hp), jnp.float32)
           .at[0, :H].set(wl[:, 0]).astype(compute_dtype))
    blp = jnp.zeros((HEAD_ROWS, 1), jnp.float32).at[0, 0].set(bl[0, 0])

    def graph_spec(shp):   # per-step block of G graphs, indexed by the grid axis
        return pl.BlockSpec((G,) + shp, lambda s: (s, 0, 0))

    def const_spec(shp):   # weights/biases: constant block -> stays VMEM-resident
        return pl.BlockSpec(shp, lambda s: (0, 0))

    # Advisory cost estimate (3 aggregations + 3 dense layers + head per graph).
    per_graph_flops = (2 * Np * Np * (Fp + 2 * Hp)
                       + 2 * Np * (Fp * Hp + 2 * Hp * Hp + Hp * HEAD_ROWS))
    bytes_accessed = ((adj.size + xp.size
                       + w1p.size + w2p.size + w3p.size + wlp.size) * bpe
                      + (b1p.size + b2p.size + b3p.size + blp.size) * 4
                      + Bp * HEAD_ROWS * Np * 4)

    # Explicit VMEM budget: double-buffered per-step blocks + resident params + slack.
    block_in_bytes = G * (Np * Np + Np * Fp) * bpe
    block_out_bytes = G * HEAD_ROWS * Np * 4
    param_bytes = ((w1p.size + w2p.size + w3p.size + wlp.size) * bpe
                   + (b1p.size + b2p.size + b3p.size + blp.size) * 4)
    scratch_bytes = 4 * G * Np * Hp * 4          # f32 intermediates headroom
    vmem_need = 2 * (block_in_bytes + block_out_bytes) + 2 * param_bytes + scratch_bytes
    vmem_limit = int(min(64 * 2**20, max(32 * 2**20, 2 * vmem_need)))

    out = pl.pallas_call(
        gin_regression_kernel,
        out_shape=jax.ShapeDtypeStruct((Bp, HEAD_ROWS, Np), jnp.float32),
        grid=(Bp // G,),
        in_specs=[graph_spec((Np, Np)),      # A' = A + I   (bf16)
                  graph_spec((Np, Fp)),      # x            (bf16)
                  const_spec((Fp, Hp)), const_spec((1, Hp)),          # layer 1
                  const_spec((Hp, Hp)), const_spec((1, Hp)),          # layer 2
                  const_spec((Hp, Hp)), const_spec((1, Hp)),          # layer 3
                  const_spec((HEAD_ROWS, Hp)), const_spec((HEAD_ROWS, 1))],  # head
        out_specs=graph_spec((HEAD_ROWS, Np)),
        compiler_params=pltpu.CompilerParams(
            dimension_semantics=("parallel",),
            vmem_limit_bytes=vmem_limit),
        cost_estimate=pl.CostEstimate(flops=Bp * per_graph_flops,
                                      transcendentals=0,
                                      bytes_accessed=bytes_accessed),
    )(adj, xp, w1p, b1p, w2p, b2p, w3p, b3p, wlp, blp)

    # Row 0 of the transposed head block, real graphs / nodes only -> [B, N, 1].
    return out[:B, 0, :N][..., None]


def make_params(key, num_features, hidden):
    """Deterministic synthetic parameters (Linear weights stored as [in, out])."""
    keys = jax.random.split(key, 8)

    def lin(kw, kb, fan_in, fan_out):
        bound = 1.0 / jnp.sqrt(jnp.float32(fan_in))
        w = jax.random.uniform(kw, (fan_in, fan_out), jnp.float32, -bound, bound)
        b = jax.random.uniform(kb, (1, fan_out), jnp.float32, -bound, bound)
        return w, b

    return (
        lin(keys[0], keys[1], num_features, hidden),
        lin(keys[2], keys[3], hidden, hidden),
        lin(keys[4], keys[5], hidden, hidden),
        lin(keys[6], keys[7], hidden, 1),
    )


def gin_regression_ref(x, edge_index, params):
    """Pure-JAX f32 reference mirroring torch_geometric GINConv(eps=0) semantics."""
    (w1, b1), (w2, b2), (w3, b3), (wl, bl) = params

    def single(xg, eg):
        n = xg.shape[0]
        src, dst = eg[0], eg[1]
        adj = jnp.zeros((n, n), jnp.float32).at[dst, src].add(1.0)
        h = jax.nn.relu((xg + adj @ xg) @ w1 + b1)
        h = jax.nn.relu((h + adj @ h) @ w2 + b2)
        h = jax.nn.relu((h + adj @ h) @ w3 + b3)
        return h @ wl + bl

    return jax.vmap(single)(x, edge_index)


if __name__ == "__main__":
    batch = 16            # independent graphs; packed 4 per grid step -> grid=(4,)
    num_nodes = 8
    num_features = 4
    hidden_channels = 32
    num_edges = 16

    key = jax.random.PRNGKey(0)
    k_x, k_e, k_p = jax.random.split(key, 3)

    x = jax.random.normal(k_x, (batch, num_nodes, num_features), jnp.float32)
    edge_index = jax.random.randint(
        k_e, (batch, 2, num_edges), 0, num_nodes, jnp.int32)

    params = make_params(k_p, num_features, hidden_channels)

    out = gin_regression_pallas(x, edge_index, params, graphs_per_step=4,
                                use_bf16=True)
    out = jax.block_until_ready(out)

    ref = gin_regression_ref(x, edge_index, params)
    assert out.shape == (batch, num_nodes, 1)
    # bf16 MXU operands (f32 accumulation): compare with a relaxed relative tolerance.
    err = float(jnp.max(jnp.abs(out - ref)))
    scale = max(float(jnp.max(jnp.abs(ref))), 1.0)
    assert err <= 5e-2 * scale, (err, scale)

    print("KERNEL_OK")
</pallas_src>

<mosaic_0001>
module attributes {stable_mosaic.version = 11 : i64} {
  func.func @gin_regression_kernel(%arg0: i32, %arg1: memref<4x128x128xbf16, #tpu.memory_space<vmem>>, %arg2: memref<4x128x128xbf16, #tpu.memory_space<vmem>>, %arg3: memref<128x128xbf16, #tpu.memory_space<vmem>>, %arg4: memref<1x128xf32, #tpu.memory_space<vmem>>, %arg5: memref<128x128xbf16, #tpu.memory_space<vmem>>, %arg6: memref<1x128xf32, #tpu.memory_space<vmem>>, %arg7: memref<128x128xbf16, #tpu.memory_space<vmem>>, %arg8: memref<1x128xf32, #tpu.memory_space<vmem>>, %arg9: memref<8x128xbf16, #tpu.memory_space<vmem>>, %arg10: memref<8x1xf32, #tpu.memory_space<vmem>>, %arg11: memref<4x8x128xf32, #tpu.memory_space<vmem>>) attributes {dimension_semantics = [#tpu.dimension_semantics<parallel>], iteration_bounds = array<i64: 4>, scalar_prefetch = 0 : i64, scratch_operands = 0 : i64, tpu.core_type = #tpu.core_type<tc>, window_params = [{transform_indices = @transform_0, window_bounds = array<i64: 4, 128, 128>}, {transform_indices = @transform_1, window_bounds = array<i64: 4, 128, 128>}, {pipeline_mode = #tpu.pipeline_mode<synchronous>, transform_indices = @transform_2, window_bounds = array<i64: 128, 128>}, {pipeline_mode = #tpu.pipeline_mode<synchronous>, transform_indices = @transform_3, window_bounds = array<i64: 1, 128>}, {pipeline_mode = #tpu.pipeline_mode<synchronous>, transform_indices = @transform_4, window_bounds = array<i64: 128, 128>}, {pipeline_mode = #tpu.pipeline_mode<synchronous>, transform_indices = @transform_5, window_bounds = array<i64: 1, 128>}, {pipeline_mode = #tpu.pipeline_mode<synchronous>, transform_indices = @transform_6, window_bounds = array<i64: 128, 128>}, {pipeline_mode = #tpu.pipeline_mode<synchronous>, transform_indices = @transform_7, window_bounds = array<i64: 1, 128>}, {pipeline_mode = #tpu.pipeline_mode<synchronous>, transform_indices = @transform_8, window_bounds = array<i64: 8, 128>}, {pipeline_mode = #tpu.pipeline_mode<synchronous>, transform_indices = @transform_9, window_bounds = array<i64: 8, 1>}, {transform_indices = @transform_10, window_bounds = array<i64: 4, 8, 128>}]} {
    %c0 = arith.constant 0 : index
    %c0_0 = arith.constant 0 : index
    %c0_1 = arith.constant 0 : index
    %0 = vector.load %arg1[%c0, %c0_0, %c0_1] : memref<4x128x128xbf16, #tpu.memory_space<vmem>>, vector<4x128x128xbf16>
    %c0_2 = arith.constant 0 : index
    %c0_3 = arith.constant 0 : index
    %c0_4 = arith.constant 0 : index
    %1 = vector.load %arg2[%c0_2, %c0_3, %c0_4] : memref<4x128x128xbf16, #tpu.memory_space<vmem>>, vector<4x128x128xbf16>
    "tpu.trace_start"() <{level = 10 : i32, message = "gnm,gmf->gnf"}> : () -> ()
    %cst = arith.constant dense<0.000000e+00> : vector<4x128x128xf32>
    %2 = tpu.matmul %0, %1, %cst {dimension_numbers = #tpu.dot_dimension_numbers<[2], [1], [1], [2], [0, 0, 0, 1, 1, 2], [0], [0]>} : vector<4x128x128xbf16>, vector<4x128x128xbf16>, vector<4x128x128xf32> -> vector<4x128x128xf32>
    "tpu.trace_stop"() : () -> ()
    %3 = arith.truncf %2 : vector<4x128x128xf32> to vector<4x128x128xbf16>
    %c0_5 = arith.constant 0 : index
    %c0_6 = arith.constant 0 : index
    %4 = vector.load %arg3[%c0_5, %c0_6] : memref<128x128xbf16, #tpu.memory_space<vmem>>, vector<128x128xbf16>
    "tpu.trace_start"() <{level = 10 : i32, message = "gnf,fo->gno"}> : () -> ()
    %cst_7 = arith.constant dense<0.000000e+00> : vector<4x128x128xf32>
    %5 = tpu.matmul %3, %4, %cst_7 {dimension_numbers = #tpu.dot_dimension_numbers<[2], [0], [0, 1], [1], [0, 0, 0, 1, 1, 1], [], []>} : vector<4x128x128xbf16>, vector<128x128xbf16>, vector<4x128x128xf32> -> vector<4x128x128xf32>
    "tpu.trace_stop"() : () -> ()
    %c0_8 = arith.constant 0 : index
    %c0_9 = arith.constant 0 : index
    %6 = vector.load %arg4[%c0_8, %c0_9] : memref<1x128xf32, #tpu.memory_space<vmem>>, vector<1x128xf32>
    %7 = vector.shape_cast %6 : vector<1x128xf32> to vector<1x1x128xf32>
    %8 = vector.broadcast %7 : vector<1x1x128xf32> to vector<4x128x128xf32>
    %9 = arith.addf %5, %8 : vector<4x128x128xf32>
    %cst_10 = arith.constant 0.000000e+00 : f32
    %10 = vector.broadcast %cst_10 : f32 to vector<4x128x128xf32>
    %11 = arith.maximumf %9, %10 : vector<4x128x128xf32>
    %12 = arith.truncf %11 : vector<4x128x128xf32> to vector<4x128x128xbf16>
    "tpu.trace_start"() <{level = 10 : i32, message = "gnm,gmf->gnf"}> : () -> ()
    %cst_11 = arith.constant dense<0.000000e+00> : vector<4x128x128xf32>
    %13 = tpu.matmul %0, %12, %cst_11 {dimension_numbers = #tpu.dot_dimension_numbers<[2], [1], [1], [2], [0, 0, 0, 1, 1, 2], [0], [0]>} : vector<4x128x128xbf16>, vector<4x128x128xbf16>, vector<4x128x128xf32> -> vector<4x128x128xf32>
    "tpu.trace_stop"() : () -> ()
    %14 = arith.truncf %13 : vector<4x128x128xf32> to vector<4x128x128xbf16>
    %c0_12 = arith.constant 0 : index
    %c0_13 = arith.constant 0 : index
    %15 = vector.load %arg5[%c0_12, %c0_13] : memref<128x128xbf16, #tpu.memory_space<vmem>>, vector<128x128xbf16>
    "tpu.trace_start"() <{level = 10 : i32, message = "gnf,fo->gno"}> : () -> ()
    %cst_14 = arith.constant dense<0.000000e+00> : vector<4x128x128xf32>
    %16 = tpu.matmul %14, %15, %cst_14 {dimension_numbers = #tpu.dot_dimension_numbers<[2], [0], [0, 1], [1], [0, 0, 0, 1, 1, 1], [], []>} : vector<4x128x128xbf16>, vector<128x128xbf16>, vector<4x128x128xf32> -> vector<4x128x128xf32>
    "tpu.trace_stop"() : () -> ()
    %c0_15 = arith.constant 0 : index
    %c0_16 = arith.constant 0 : index
    %17 = vector.load %arg6[%c0_15, %c0_16] : memref<1x128xf32, #tpu.memory_space<vmem>>, vector<1x128xf32>
    %18 = vector.shape_cast %17 : vector<1x128xf32> to vector<1x1x128xf32>
    %19 = vector.broadcast %18 : vector<1x1x128xf32> to vector<4x128x128xf32>
    %20 = arith.addf %16, %19 : vector<4x128x128xf32>
    %cst_17 = arith.constant 0.000000e+00 : f32
    %21 = vector.broadcast %cst_17 : f32 to vector<4x128x128xf32>
    %22 = arith.maximumf %20, %21 : vector<4x128x128xf32>
    %23 = arith.truncf %22 : vector<4x128x128xf32> to vector<4x128x128xbf16>
    "tpu.trace_start"() <{level = 10 : i32, message = "gnm,gmf->gnf"}> : () -> ()
    %cst_18 = arith.constant dense<0.000000e+00> : vector<4x128x128xf32>
    %24 = tpu.matmul %0, %23, %cst_18 {dimension_numbers = #tpu.dot_dimension_numbers<[2], [1], [1], [2], [0, 0, 0, 1, 1, 2], [0], [0]>} : vector<4x128x128xbf16>, vector<4x128x128xbf16>, vector<4x128x128xf32> -> vector<4x128x128xf32>
    "tpu.trace_stop"() : () -> ()
    %25 = arith.truncf %24 : vector<4x128x128xf32> to vector<4x128x128xbf16>
    %c0_19 = arith.constant 0 : index
    %c0_20 = arith.constant 0 : index
    %26 = vector.load %arg7[%c0_19, %c0_20] : memref<128x128xbf16, #tpu.memory_space<vmem>>, vector<128x128xbf16>
    "tpu.trace_start"() <{level = 10 : i32, message = "gnf,fo->gno"}> : () -> ()
    %cst_21 = arith.constant dense<0.000000e+00> : vector<4x128x128xf32>
    %27 = tpu.matmul %25, %26, %cst_21 {dimension_numbers = #tpu.dot_dimension_numbers<[2], [0], [0, 1], [1], [0, 0, 0, 1, 1, 1], [], []>} : vector<4x128x128xbf16>, vector<128x128xbf16>, vector<4x128x128xf32> -> vector<4x128x128xf32>
    "tpu.trace_stop"() : () -> ()
    %c0_22 = arith.constant 0 : index
    %c0_23 = arith.constant 0 : index
    %28 = vector.load %arg8[%c0_22, %c0_23] : memref<1x128xf32, #tpu.memory_space<vmem>>, vector<1x128xf32>
    %29 = vector.shape_cast %28 : vector<1x128xf32> to vector<1x1x128xf32>
    %30 = vector.broadcast %29 : vector<1x1x128xf32> to vector<4x128x128xf32>
    %31 = arith.addf %27, %30 : vector<4x128x128xf32>
    %cst_24 = arith.constant 0.000000e+00 : f32
    %32 = vector.broadcast %cst_24 : f32 to vector<4x128x128xf32>
    %33 = arith.maximumf %31, %32 : vector<4x128x128xf32>
    %34 = arith.truncf %33 : vector<4x128x128xf32> to vector<4x128x128xbf16>
    %c0_25 = arith.constant 0 : index
    %c0_26 = arith.constant 0 : index
    %35 = vector.load %arg9[%c0_25, %c0_26] : memref<8x128xbf16, #tpu.memory_space<vmem>>, vector<8x128xbf16>
    %36 = vector.extract_strided_slice %34 {offsets = [0, 0, 0], sizes = [1, 128, 128], strides = [1, 1, 1]} : vector<4x128x128xbf16> to vector<1x128x128xbf16>
    %37 = vector.shape_cast %36 : vector<1x128x128xbf16> to vector<128x128xbf16>
    %cst_27 = arith.constant dense<0.000000e+00> : vector<8x128xf32>
    %38 = tpu.matmul %35, %37, %cst_27 {dimension_numbers = #tpu.dot_dimension_numbers<[1], [1], [0], [0], [0, 0, 1, 0], [], []>} : vector<8x128xbf16>, vector<128x128xbf16>, vector<8x128xf32> -> vector<8x128xf32>
    %c0_28 = arith.constant 0 : index
    %c0_29 = arith.constant 0 : index
    %39 = vector.load %arg10[%c0_28, %c0_29] : memref<8x1xf32, #tpu.memory_space<vmem>>, vector<8x1xf32>
    %40 = vector.broadcast %39 : vector<8x1xf32> to vector<8x128xf32>
    %41 = arith.addf %38, %40 : vector<8x128xf32>
    %c0_30 = arith.constant 0 : index
    %c0_31 = arith.constant 0 : index
    %c0_32 = arith.constant 0 : index
    %42 = vector.load %arg11[%c0_30, %c0_31, %c0_32] : memref<4x8x128xf32, #tpu.memory_space<vmem>>, vector<1x8x128xf32>
    %43 = vector.shape_cast %42 : vector<1x8x128xf32> to vector<8x128xf32>
    %44 = vector.shape_cast %41 : vector<8x128xf32> to vector<1x8x128xf32>
    tpu.vector_store %arg11[%c0_30, %c0_31, %c0_32], %44 {strides = array<i32>} : memref<4x8x128xf32, #tpu.memory_space<vmem>>, vector<1x8x128xf32>,
    %c0_33 = arith.constant 0 : index
    %c0_34 = arith.constant 0 : index
    %45 = vector.load %arg9[%c0_33, %c0_34] : memref<8x128xbf16, #tpu.memory_space<vmem>>, vector<8x128xbf16>
    %46 = vector.extract_strided_slice %34 {offsets = [1, 0, 0], sizes = [1, 128, 128], strides = [1, 1, 1]} : vector<4x128x128xbf16> to vector<1x128x128xbf16>
    %47 = vector.shape_cast %46 : vector<1x128x128xbf16> to vector<128x128xbf16>
    %cst_35 = arith.constant dense<0.000000e+00> : vector<8x128xf32>
    %48 = tpu.matmul %45, %47, %cst_35 {dimension_numbers = #tpu.dot_dimension_numbers<[1], [1], [0], [0], [0, 0, 1, 0], [], []>} : vector<8x128xbf16>, vector<128x128xbf16>, vector<8x128xf32> -> vector<8x128xf32>
    %c0_36 = arith.constant 0 : index
    %c0_37 = arith.constant 0 : index
    %49 = vector.load %arg10[%c0_36, %c0_37] : memref<8x1xf32, #tpu.memory_space<vmem>>, vector<8x1xf32>
    %50 = vector.broadcast %49 : vector<8x1xf32> to vector<8x128xf32>
    %51 = arith.addf %48, %50 : vector<8x128xf32>
    %c1 = arith.constant 1 : index
    %c0_38 = arith.constant 0 : index
    %c0_39 = arith.constant 0 : index
    %52 = vector.load %arg11[%c1, %c0_38, %c0_39] : memref<4x8x128xf32, #tpu.memory_space<vmem>>, vector<1x8x128xf32>
    %53 = vector.shape_cast %52 : vector<1x8x128xf32> to vector<8x128xf32>
    %54 = vector.shape_cast %51 : vector<8x128xf32> to vector<1x8x128xf32>
    tpu.vector_store %arg11[%c1, %c0_38, %c0_39], %54 {strides = array<i32>} : memref<4x8x128xf32, #tpu.memory_space<vmem>>, vector<1x8x128xf32>,
    %c0_40 = arith.constant 0 : index
    %c0_41 = arith.constant 0 : index
    %55 = vector.load %arg9[%c0_40, %c0_41] : memref<8x128xbf16, #tpu.memory_space<vmem>>, vector<8x128xbf16>
    %56 = vector.extract_strided_slice %34 {offsets = [2, 0, 0], sizes = [1, 128, 128], strides = [1, 1, 1]} : vector<4x128x128xbf16> to vector<1x128x128xbf16>
    %57 = vector.shape_cast %56 : vector<1x128x128xbf16> to vector<128x128xbf16>
    %cst_42 = arith.constant dense<0.000000e+00> : vector<8x128xf32>
    %58 = tpu.matmul %55, %57, %cst_42 {dimension_numbers = #tpu.dot_dimension_numbers<[1], [1], [0], [0], [0, 0, 1, 0], [], []>} : vector<8x128xbf16>, vector<128x128xbf16>, vector<8x128xf32> -> vector<8x128xf32>
    %c0_43 = arith.constant 0 : index
    %c0_44 = arith.constant 0 : index
    %59 = vector.load %arg10[%c0_43, %c0_44] : memref<8x1xf32, #tpu.memory_space<vmem>>, vector<8x1xf32>
    %60 = vector.broadcast %59 : vector<8x1xf32> to vector<8x128xf32>
    %61 = arith.addf %58, %60 : vector<8x128xf32>
    %c2 = arith.constant 2 : index
    %c0_45 = arith.constant 0 : index
    %c0_46 = arith.constant 0 : index
    %62 = vector.load %arg11[%c2, %c0_45, %c0_46] : memref<4x8x128xf32, #tpu.memory_space<vmem>>, vector<1x8x128xf32>
    %63 = vector.shape_cast %62 : vector<1x8x128xf32> to vector<8x128xf32>
    %64 = vector.shape_cast %61 : vector<8x128xf32> to vector<1x8x128xf32>
    tpu.vector_store %arg11[%c2, %c0_45, %c0_46], %64 {strides = array<i32>} : memref<4x8x128xf32, #tpu.memory_space<vmem>>, vector<1x8x128xf32>,
    %c0_47 = arith.constant 0 : index
    %c0_48 = arith.constant 0 : index
    %65 = vector.load %arg9[%c0_47, %c0_48] : memref<8x128xbf16, #tpu.memory_space<vmem>>, vector<8x128xbf16>
    %66 = vector.extract_strided_slice %34 {offsets = [3, 0, 0], sizes = [1, 128, 128], strides = [1, 1, 1]} : vector<4x128x128xbf16> to vector<1x128x128xbf16>
    %67 = vector.shape_cast %66 : vector<1x128x128xbf16> to vector<128x128xbf16>
    %cst_49 = arith.constant dense<0.000000e+00> : vector<8x128xf32>
    %68 = tpu.matmul %65, %67, %cst_49 {dimension_numbers = #tpu.dot_dimension_numbers<[1], [1], [0], [0], [0, 0, 1, 0], [], []>} : vector<8x128xbf16>, vector<128x128xbf16>, vector<8x128xf32> -> vector<8x128xf32>
    %c0_50 = arith.constant 0 : index
    %c0_51 = arith.constant 0 : index
    %69 = vector.load %arg10[%c0_50, %c0_51] : memref<8x1xf32, #tpu.memory_space<vmem>>, vector<8x1xf32>
    %70 = vector.broadcast %69 : vector<8x1xf32> to vector<8x128xf32>
    %71 = arith.addf %68, %70 : vector<8x128xf32>
    %c3 = arith.constant 3 : index
    %c0_52 = arith.constant 0 : index
    %c0_53 = arith.constant 0 : index
    %72 = vector.load %arg11[%c3, %c0_52, %c0_53] : memref<4x8x128xf32, #tpu.memory_space<vmem>>, vector<1x8x128xf32>
    %73 = vector.shape_cast %72 : vector<1x8x128xf32> to vector<8x128xf32>
    %74 = vector.shape_cast %71 : vector<8x128xf32> to vector<1x8x128xf32>
    tpu.vector_store %arg11[%c3, %c0_52, %c0_53], %74 {strides = array<i32>} : memref<4x8x128xf32, #tpu.memory_space<vmem>>, vector<1x8x128xf32>,
    return
  }
  func.func @transform_0(%arg0: i32) -> (i32, i32, i32) {
    %c0_i32 = arith.constant 0 : i32
    %c0_i32_0 = arith.constant 0 : i32
    %c0_i32_1 = arith.constant 0 : i32
    return %arg0, %c0_i32, %c0_i32_0 : i32, i32, i32
  }
  func.func @transform_1(%arg0: i32) -> (i32, i32, i32) {
    %c0_i32 = arith.constant 0 : i32
    %c0_i32_0 = arith.constant 0 : i32
    %c0_i32_1 = arith.constant 0 : i32
    return %arg0, %c0_i32, %c0_i32_0 : i32, i32, i32
  }
  func.func @transform_2(%arg0: i32) -> (i32, i32) {
    %c0_i32 = arith.constant 0 : i32
    %c0_i32_0 = arith.constant 0 : i32
    %c0_i32_1 = arith.constant 0 : i32
    return %c0_i32, %c0_i32_0 : i32, i32
  }
  func.func @transform_3(%arg0: i32) -> (i32, i32) {
    %c0_i32 = arith.constant 0 : i32
    %c0_i32_0 = arith.constant 0 : i32
    %c0_i32_1 = arith.constant 0 : i32
    return %c0_i32, %c0_i32_0 : i32, i32
  }
  func.func @transform_4(%arg0: i32) -> (i32, i32) {
    %c0_i32 = arith.constant 0 : i32
    %c0_i32_0 = arith.constant 0 : i32
    %c0_i32_1 = arith.constant 0 : i32
    return %c0_i32, %c0_i32_0 : i32, i32
  }
  func.func @transform_5(%arg0: i32) -> (i32, i32) {
    %c0_i32 = arith.constant 0 : i32
    %c0_i32_0 = arith.constant 0 : i32
    %c0_i32_1 = arith.constant 0 : i32
    return %c0_i32, %c0_i32_0 : i32, i32
  }
  func.func @transform_6(%arg0: i32) -> (i32, i32) {
    %c0_i32 = arith.constant 0 : i32
    %c0_i32_0 = arith.constant 0 : i32
    %c0_i32_1 = arith.constant 0 : i32
    return %c0_i32, %c0_i32_0 : i32, i32
  }
  func.func @transform_7(%arg0: i32) -> (i32, i32) {
    %c0_i32 = arith.constant 0 : i32
    %c0_i32_0 = arith.constant 0 : i32
    %c0_i32_1 = arith.constant 0 : i32
    return %c0_i32, %c0_i32_0 : i32, i32
  }
  func.func @transform_8(%arg0: i32) -> (i32, i32) {
    %c0_i32 = arith.constant 0 : i32
    %c0_i32_0 = arith.constant 0 : i32
    %c0_i32_1 = arith.constant 0 : i32
    return %c0_i32, %c0_i32_0 : i32, i32
  }
  func.func @transform_9(%arg0: i32) -> (i32, i32) {
    %c0_i32 = arith.constant 0 : i32
    %c0_i32_0 = arith.constant 0 : i32
    %c0_i32_1 = arith.constant 0 : i32
    return %c0_i32, %c0_i32_0 : i32, i32
  }
  func.func @transform_10(%arg0: i32) -> (i32, i32, i32) {
    %c0_i32 = arith.constant 0 : i32
    %c0_i32_0 = arith.constant 0 : i32
    %c0_i32_1 = arith.constant 0 : i32
    return %arg0, %c0_i32, %c0_i32_0 : i32, i32, i32
  }
}

</mosaic_0001>

<llo_original>
// kernel: tpu_custom_call.1
$region0: #{tpu_custom_call.1}
  #allocation0 [shape = 'u32[]', space=smem, size = 0x4, offset = 0x4, fixed_abs, tag = 'smem constant byte address 0x4 - core index']
  #allocation1 [shape = 'u32[144,128]{1,0:T(1,128)}', space=vmem, size = 0x12000, scoped, tag = 'internal scratch']
  %s0 = inlined_call_operand.hbm [shape: bf16[16,128,128], index: 0, kind: input, shape index: {}]
  %s1 = inlined_call_operand.hbm [shape: bf16[16,128,128], index: 1, kind: input, shape index: {}]
  %s2 = inlined_call_operand.hbm [shape: bf16[128,128], index: 2, kind: input, shape index: {}]
  %s3 = inlined_call_operand.vmem [shape: f32[1,128], index: 3, kind: input, shape index: {}]
  %s4 = inlined_call_operand.hbm [shape: bf16[128,128], index: 4, kind: input, shape index: {}]
  %s5 = inlined_call_operand.vmem [shape: f32[1,128], index: 5, kind: input, shape index: {}]
  %s6 = inlined_call_operand.hbm [shape: bf16[128,128], index: 6, kind: input, shape index: {}]
  %s7 = inlined_call_operand.vmem [shape: f32[1,128], index: 7, kind: input, shape index: {}]
  %s8 = inlined_call_operand.vmem [shape: bf16[8,128], index: 8, kind: input, shape index: {}]
  %s9 = inlined_call_operand.vmem [shape: f32[8,1], index: 9, kind: input, shape index: {}]
  %s10 = inlined_call_operand.hbm [shape: f32[16,8,128], index: 10, kind: output, shape index: {}]
  %s11 = sld [smem:[#allocation0]]
  $region93: #{tpu_custom_call.1} parent=0
    _
  %s13 = ssub.s32 1, %s11
  %s14 = scalar_select 0, %s13, %s11
  $region1: #{tpu_custom_call.1} parent=0
    #allocation2 [shape = 'u8[262144]{0}', space=vmem, size = 0x40000, scoped, tag = 'input window, operand 0']
    #allocation3 [shape = 's32[2]{0}', space=sflag, size = 0x8, scoped, tag = 'scoped memory for tpu_custom_call.1']
    #allocation4 [shape = 's32[2]{0}', space=sflag, size = 0x8, scoped, tag = 'scoped memory for tpu_custom_call.1']
    #allocation5 [shape = 'u8[262144]{0}', space=vmem, size = 0x40000, scoped, tag = 'input window, operand 1']
    #allocation6 [shape = 's32[2]{0}', space=sflag, size = 0x8, scoped, tag = 'scoped memory for tpu_custom_call.1']
    #allocation7 [shape = 'u8[32768]{0}', space=vmem, size = 0x8000, scoped, tag = 'input window, operand 2, single buffered']
    #allocation8 [shape = 'u8[32768]{0}', space=vmem, size = 0x8000, scoped, tag = 'input window, operand 4, single buffered']
    #allocation9 [shape = 's32[1]{0}', space=sflag, size = 0x4, scoped, tag = 'scoped memory for tpu_custom_call.1']
    #allocation10 [shape = 'u8[32768]{0}', space=vmem, size = 0x8000, scoped, tag = 'input window, operand 6, single buffered']
    #allocation11 [shape = 'u8[32768]{0}', space=vmem, size = 0x8000, scoped, tag = 'output window, operand 0']
    %15 = vsyncpa [#allocation3], 0
    %s16 = scalar_lea.sflag [#allocation3], 1
    %17 = vsyncpa %s16, 0
    %18 = vsyncpa [#allocation6], 0
    %s19 = scalar_lea.sflag [#allocation6], 1
    %20 = vsyncpa %s19, 0
    %21 = vsyncpa [#allocation9], 0
    %22 = vsyncpa [#allocation4], 0
    %s23 = scalar_lea.sflag [#allocation4], 1
    %24 = vsyncpa %s23, 0
    loop: start=0, step=1, limit=6
    $region2: #{tpu_custom_call.1} parent=1 // loop_pre_header
      _
    $region3: #{tpu_custom_call.1} parent=1 // loop_header
      %s26 = sphi 0, %s30
      %p27 = scmp.ge.s32.totalorder %s26, 6
      %s36 = sphi 0, %s38
      %s39 = sphi 0, %s36
      %s40 = sphi 0, %s39
      %s56 = sphi 0, %s40
      %s62 = sphi 0, %s64
      %s65 = sphi 0, %s62
      %s66 = sphi 0, %s65
      %s82 = sphi 0, %s66
      %s86 = sphi 0, %s86
      %s88 = sphi 0, %s86
      %s89 = sphi 0, %s88
      %s103 = sphi 0, %s89
      %s107 = sphi 0, %s107
      %s109 = sphi 0, %s107
      %s110 = sphi 0, %s109
      %s124 = sphi 0, %s110
      %s128 = sphi 0, %s128
      %s130 = sphi 0, %s128
      %s131 = sphi 0, %s130
      %s145 = sphi 0, %s131
      %s149 = sphi 0, %s149
      %s151 = sphi 0, %s149
      %s152 = sphi 0, %s151
      %s166 = sphi 0, %s152
      %s170 = sphi 0, %s170
      %s172 = sphi 0, %s170
      %s173 = sphi 0, %s172
      %s187 = sphi 0, %s173
      %s191 = sphi 0, %s191
      %s193 = sphi 0, %s191
      %s194 = sphi 0, %s193
      %s208 = sphi 0, %s194
      %s212 = sphi 0, %s212
      %s214 = sphi 0, %s212
      %s215 = sphi 0, %s214
      %s229 = sphi 0, %s215
      %s233 = sphi 0, %s233
      %s235 = sphi 0, %s233
      %s236 = sphi 0, %s235
      %s250 = sphi 0, %s236
      %s256 = sphi 0, %s258
      %s259 = sphi 0, %s256
      %s260 = sphi 0, %s259
      %s276 = sphi 0, %s260
    $region4: #{tpu_custom_call.1} parent=1 // loop_header_branch
      %29 = sbr.rel (%p27) target = $region8
    $region5: #{tpu_custom_call.1} parent=1 // loop_body
      %s31 = ssub.s32 %s26, 1
      %s32 = ssub.s32 %s26, 2
      %s33 = sadd.s32 %s26, 1
      %s34 = ssub.s32 %s26, %s33
      %p35 = scmp.eq.s32.totalorder %s34, 0
      %s37 = sadd.s32 %s36, 1
      %s38 = scalar_select %p35, %s36, %s37
      %p41 = pneg %p35
      %p42 = scmp.eq.s32.totalorder %s26, 3
      %p43 = por %p41, %p42
      %p44 = scmp.ne.s32.totalorder %s36, %s39
      %p45 = scmp.eq.s32.totalorder %s26, 0
      %p46 = por %p44, %p45
      %p47 = scmp.ne.s32.totalorder %s36, %s39
      %p48 = scmp.eq.s32.totalorder %s31, 3
      %p49 = por %p47, %p48
      %p50 = scmp.ne.s32.totalorder %s39, %s40
      %p51 = scmp.eq.s32.totalorder %s31, 0
      %p52 = por %p50, %p51
      %p53 = scmp.ne.s32.totalorder %s39, %s40
      %p54 = scmp.eq.s32.totalorder %s32, 3
      %p55 = por %p53, %p54
      %p57 = scmp.ne.s32.totalorder %s40, %s56
      %p58 = scmp.eq.s32.totalorder %s32, 0
      %p59 = por %p57, %p58
      %s60 = ssub.s32 %s26, %s33
      %p61 = scmp.eq.s32.totalorder %s60, 0
      %s63 = sadd.s32 %s62, 1
      %s64 = scalar_select %p61, %s62, %s63
      %p67 = pneg %p61
      %p68 = scmp.eq.s32.totalorder %s26, 3
      %p69 = por %p67, %p68
      %p70 = scmp.ne.s32.totalorder %s62, %s65
      %p71 = scmp.eq.s32.totalorder %s26, 0
      %p72 = por %p70, %p71
      %p73 = scmp.ne.s32.totalorder %s62, %s65
      %p74 = scmp.eq.s32.totalorder %s31, 3
      %p75 = por %p73, %p74
      %p76 = scmp.ne.s32.totalorder %s65, %s66
      %p77 = scmp.eq.s32.totalorder %s31, 0
      %p78 = por %p76, %p77
      %p79 = scmp.ne.s32.totalorder %s65, %s66
      %p80 = scmp.eq.s32.totalorder %s32, 3
      %p81 = por %p79, %p80
      %p83 = scmp.ne.s32.totalorder %s66, %s82
      %p84 = scmp.eq.s32.totalorder %s32, 0
      %p85 = por %p83, %p84
      %s87 = sadd.s32 %s86, 1
      %p90 = scmp.eq.s32.totalorder %s26, 3
      %p91 = scmp.ne.s32.totalorder %s86, %s88
      %p92 = scmp.eq.s32.totalorder %s26, 0
      %p93 = por %p91, %p92
      %p94 = scmp.ne.s32.totalorder %s86, %s88
      %p95 = scmp.eq.s32.totalorder %s31, 3
      %p96 = por %p94, %p95
      %p97 = scmp.ne.s32.totalorder %s88, %s89
      %p98 = scmp.eq.s32.totalorder %s31, 0
      %p99 = por %p97, %p98
      %p100 = scmp.ne.s32.totalorder %s88, %s89
      %p101 = scmp.eq.s32.totalorder %s32, 3
      %p102 = por %p100, %p101
      %p104 = scmp.ne.s32.totalorder %s89, %s103
      %p105 = scmp.eq.s32.totalorder %s32, 0
      %p106 = por %p104, %p105
      %s108 = sadd.s32 %s107, 1
      %p111 = scmp.eq.s32.totalorder %s26, 3
      %p112 = scmp.ne.s32.totalorder %s107, %s109
      %p113 = scmp.eq.s32.totalorder %s26, 0
      %p114 = por %p112, %p113
      %p115 = scmp.ne.s32.totalorder %s107, %s109
      %p116 = scmp.eq.s32.totalorder %s31, 3
      %p117 = por %p115, %p116
      %p118 = scmp.ne.s32.totalorder %s109, %s110
      %p119 = scmp.eq.s32.totalorder %s31, 0
      %p120 = por %p118, %p119
      %p121 = scmp.ne.s32.totalorder %s109, %s110
      %p122 = scmp.eq.s32.totalorder %s32, 3
      %p123 = por %p121, %p122
      %p125 = scmp.ne.s32.totalorder %s110, %s124
      %p126 = scmp.eq.s32.totalorder %s32, 0
      %p127 = por %p125, %p126
      %s129 = sadd.s32 %s128, 1
      %p132 = scmp.eq.s32.totalorder %s26, 3
      %p133 = scmp.ne.s32.totalorder %s128, %s130
      %p134 = scmp.eq.s32.totalorder %s26, 0
      %p135 = por %p133, %p134
      %p136 = scmp.ne.s32.totalorder %s128, %s130
      %p137 = scmp.eq.s32.totalorder %s31, 3
      %p138 = por %p136, %p137
      %p139 = scmp.ne.s32.totalorder %s130, %s131
      %p140 = scmp.eq.s32.totalorder %s31, 0
      %p141 = por %p139, %p140
      %p142 = scmp.ne.s32.totalorder %s130, %s131
      %p143 = scmp.eq.s32.totalorder %s32, 3
      %p144 = por %p142, %p143
      %p146 = scmp.ne.s32.totalorder %s131, %s145
      %p147 = scmp.eq.s32.totalorder %s32, 0
      %p148 = por %p146, %p147
      %s150 = sadd.s32 %s149, 1
      %p153 = scmp.eq.s32.totalorder %s26, 3
      %p154 = scmp.ne.s32.totalorder %s149, %s151
      %p155 = scmp.eq.s32.totalorder %s26, 0
      %p156 = por %p154, %p155
      %p157 = scmp.ne.s32.totalorder %s149, %s151
      %p158 = scmp.eq.s32.totalorder %s31, 3
      %p159 = por %p157, %p158
      %p160 = scmp.ne.s32.totalorder %s151, %s152
      %p161 = scmp.eq.s32.totalorder %s31, 0
      %p162 = por %p160, %p161
      %p163 = scmp.ne.s32.totalorder %s151, %s152
      %p164 = scmp.eq.s32.totalorder %s32, 3
      %p165 = por %p163, %p164
      %p167 = scmp.ne.s32.totalorder %s152, %s166
      %p168 = scmp.eq.s32.totalorder %s32, 0
      %p169 = por %p167, %p168
      %s171 = sadd.s32 %s170, 1
      %p174 = scmp.eq.s32.totalorder %s26, 3
      %p175 = scmp.ne.s32.totalorder %s170, %s172
      %p176 = scmp.eq.s32.totalorder %s26, 0
      %p177 = por %p175, %p176
      %p178 = scmp.ne.s32.totalorder %s170, %s172
      %p179 = scmp.eq.s32.totalorder %s31, 3
      %p180 = por %p178, %p179
      %p181 = scmp.ne.s32.totalorder %s172, %s173
      %p182 = scmp.eq.s32.totalorder %s31, 0
      %p183 = por %p181, %p182
      %p184 = scmp.ne.s32.totalorder %s172, %s173
      %p185 = scmp.eq.s32.totalorder %s32, 3
      %p186 = por %p184, %p185
      %p188 = scmp.ne.s32.totalorder %s173, %s187
      %p189 = scmp.eq.s32.totalorder %s32, 0
      %p190 = por %p188, %p189
      %s192 = sadd.s32 %s191, 1
      %p195 = scmp.eq.s32.totalorder %s26, 3
      %p196 = scmp.ne.s32.totalorder %s191, %s193
      %p197 = scmp.eq.s32.totalorder %s26, 0
      %p198 = por %p196, %p197
      %p199 = scmp.ne.s32.totalorder %s191, %s193
      %p200 = scmp.eq.s32.totalorder %s31, 3
      %p201 = por %p199, %p200
      %p202 = scmp.ne.s32.totalorder %s193, %s194
      %p203 = scmp.eq.s32.totalorder %s31, 0
      %p204 = por %p202, %p203
      %p205 = scmp.ne.s32.totalorder %s193, %s194
      %p206 = scmp.eq.s32.totalorder %s32, 3
      %p207 = por %p205, %p206
      %p209 = scmp.ne.s32.totalorder %s194, %s208
      %p210 = scmp.eq.s32.totalorder %s32, 0
      %p211 = por %p209, %p210
      %s213 = sadd.s32 %s212, 1
      %p216 = scmp.eq.s32.totalorder %s26, 3
      %p217 = scmp.ne.s32.totalorder %s212, %s214
      %p218 = scmp.eq.s32.totalorder %s26, 0
      %p219 = por %p217, %p218
      %p220 = scmp.ne.s32.totalorder %s212, %s214
      %p221 = scmp.eq.s32.totalorder %s31, 3
      %p222 = por %p220, %p221
      %p223 = scmp.ne.s32.totalorder %s214, %s215
      %p224 = scmp.eq.s32.totalorder %s31, 0
      %p225 = por %p223, %p224
      %p226 = scmp.ne.s32.totalorder %s214, %s215
      %p227 = scmp.eq.s32.totalorder %s32, 3
      %p228 = por %p226, %p227
      %p230 = scmp.ne.s32.totalorder %s215, %s229
      %p231 = scmp.eq.s32.totalorder %s32, 0
      %p232 = por %p230, %p231
      %s234 = sadd.s32 %s233, 1
      %p237 = scmp.eq.s32.totalorder %s26, 3
      %p238 = scmp.ne.s32.totalorder %s233, %s235
      %p239 = scmp.eq.s32.totalorder %s26, 0
      %p240 = por %p238, %p239
      %p241 = scmp.ne.s32.totalorder %s233, %s235
      %p242 = scmp.eq.s32.totalorder %s31, 3
      %p243 = por %p241, %p242
      %p244 = scmp.ne.s32.totalorder %s235, %s236
      %p245 = scmp.eq.s32.totalorder %s31, 0
      %p246 = por %p244, %p245
      %p247 = scmp.ne.s32.totalorder %s235, %s236
      %p248 = scmp.eq.s32.totalorder %s32, 3
      %p249 = por %p247, %p248
      %p251 = scmp.ne.s32.totalorder %s236, %s250
      %p252 = scmp.eq.s32.totalorder %s32, 0
      %p253 = por %p251, %p252
      %s254 = ssub.s32 %s26, %s33
      %p255 = scmp.eq.s32.totalorder %s254, 0
      %s257 = sadd.s32 %s256, 1
      %s258 = scalar_select %p255, %s256, %s257
      %p261 = pneg %p255
      %p262 = scmp.eq.s32.totalorder %s26, 3
      %p263 = por %p261, %p262
      %p264 = scmp.ne.s32.totalorder %s256, %s259
      %p265 = scmp.eq.s32.totalorder %s26, 0
      %p266 = por %p264, %p265
      %p267 = scmp.ne.s32.totalorder %s256, %s259
      %p268 = scmp.eq.s32.totalorder %s31, 3
      %p269 = por %p267, %p268
      %p270 = scmp.ne.s32.totalorder %s259, %s260
      %p271 = scmp.eq.s32.totalorder %s31, 0
      %p272 = por %p270, %p271
      %p273 = scmp.ne.s32.totalorder %s259, %s260
      %p274 = scmp.eq.s32.totalorder %s32, 3
      %p275 = por %p273, %p274
      %p277 = scmp.ne.s32.totalorder %s260, %s276
      %p278 = scmp.eq.s32.totalorder %s32, 0
      %p279 = por %p277, %p278
      %p280 = scmp.le.s32.totalorder 1, %s26
      %p281 = scmp.lt.s32.totalorder %s26, 5
      %p282 = pnand %p280, %p281
      %p283 = pneg %p282
      // Predicated region
      $region9: #{tpu_custom_call.1} parent=5 // pred_check
        _
      $region10: #{tpu_custom_call.1} parent=5 // pred_check_branch
        %285 = sbr.rel (%p282) target = $region12
      $region11: #{tpu_custom_call.1} parent=5 // pred_region
        %s286 = ssub.s32 %s26, 1
        // Predicated region
        $region13: #{tpu_custom_call.1} parent=11 // pred_check
          %p287 = pneg %p99
        $region14: #{tpu_custom_call.1} parent=11 // pred_check_branch
          %289 = sbr.rel (%p287) target = $region16
        $region15: #{tpu_custom_call.1} parent=11 // pred_region
          %s291 = ssub.s32 1024, 1024
          %292 = vsyncadd [#allocation6], %s291
          %s293 = sshll.u32 [#allocation7], 4
          %s294 = int_to_ptr.vmem [resolvable:$true] %s293
          %299 = dma.hbm_to_vmem [thread:$0]  %s2, 1024, %s294, [#allocation6], 64, 64, 4
        $region16: #{tpu_custom_call.1} parent=11 // pred_fallthru
          _
        // Predicated region
        $region17: #{tpu_custom_call.1} parent=11 // pred_check
          %p300 = pneg %p120
        $region18: #{tpu_custom_call.1} parent=11 // pred_check_branch
          %302 = sbr.rel (%p300) target = $region20
        $region19: #{tpu_custom_call.1} parent=11 // pred_region
          _
        $region20: #{tpu_custom_call.1} parent=11 // pred_fallthru
          _
        // Predicated region
        $region21: #{tpu_custom_call.1} parent=11 // pred_check
          %p303 = pneg %p141
        $region22: #{tpu_custom_call.1} parent=11 // pred_check_branch
          %305 = sbr.rel (%p303) target = $region24
        $region23: #{tpu_custom_call.1} parent=11 // pred_region
          %s307 = ssub.s32 1024, 1024
          %308 = vsyncadd [#allocation9], %s307
          %s309 = sshll.u32 [#allocation8], 4
          %s310 = int_to_ptr.vmem [resolvable:$true] %s309
          %315 = dma.hbm_to_vmem [thread:$0]  %s4, 1024, %s310, [#allocation9], 64, 64, 4
        $region24: #{tpu_custom_call.1} parent=11 // pred_fallthru
          _
        // Predicated region
        $region25: #{tpu_custom_call.1} parent=11 // pred_check
          %p316 = pneg %p162
        $region26: #{tpu_custom_call.1} parent=11 // pred_check_branch
          %318 = sbr.rel (%p316) target = $region28
        $region27: #{tpu_custom_call.1} parent=11 // pred_region
          _
        $region28: #{tpu_custom_call.1} parent=11 // pred_fallthru
          _
        // Predicated region
        $region29: #{tpu_custom_call.1} parent=11 // pred_check
          %p319 = pneg %p183
        $region30: #{tpu_custom_call.1} parent=11 // pred_check_branch
          %321 = sbr.rel (%p319) target = $region32
        $region31: #{tpu_custom_call.1} parent=11 // pred_region
          %s323 = ssub.s32 1024, 1024
          %324 = vsyncadd [#allocation9], %s323
          %s325 = sshll.u32 [#allocation10], 4
          %s326 = int_to_ptr.vmem [resolvable:$true] %s325
          %331 = dma.hbm_to_vmem [thread:$0]  %s6, 1024, %s326, [#allocation9], 64, 64, 4
        $region32: #{tpu_custom_call.1} parent=11 // pred_fallthru
          _
        // Predicated region
        $region33: #{tpu_custom_call.1} parent=11 // pred_check
          %p332 = pneg %p204
        $region34: #{tpu_custom_call.1} parent=11 // pred_check_branch
          %334 = sbr.rel (%p332) target = $region36
        $region35: #{tpu_custom_call.1} parent=11 // pred_region
          _
        $region36: #{tpu_custom_call.1} parent=11 // pred_fallthru
          _
        // Predicated region
        $region37: #{tpu_custom_call.1} parent=11 // pred_check
          %p335 = pneg %p225
        $region38: #{tpu_custom_call.1} parent=11 // pred_check_branch
          %337 = sbr.rel (%p335) target = $region40
        $region39: #{tpu_custom_call.1} parent=11 // pred_region
          _
        $region40: #{tpu_custom_call.1} parent=11 // pred_fallthru
          _
        // Predicated region
        $region41: #{tpu_custom_call.1} parent=11 // pred_check
          %p338 = pneg %p246
        $region42: #{tpu_custom_call.1} parent=11 // pred_check_branch
          %340 = sbr.rel (%p338) target = $region44
        $region43: #{tpu_custom_call.1} parent=11 // pred_region
          _
        $region44: #{tpu_custom_call.1} parent=11 // pred_fallthru
          _
      $region12: #{tpu_custom_call.1} parent=5 // pred_fallthru
        _
      %p341 = scmp.lt.s32.totalorder %s26, 4
      // Predicated region
      $region45: #{tpu_custom_call.1} parent=5 // pred_check
        %p342 = pneg %p341
      $region46: #{tpu_custom_call.1} parent=5 // pred_check_branch
        %344 = sbr.rel (%p342) target = $region48
      $region47: #{tpu_custom_call.1} parent=5 // pred_region
        // Predicated region
        $region49: #{tpu_custom_call.1} parent=47 // pred_check
          %p345 = pneg %p46
        $region50: #{tpu_custom_call.1} parent=47 // pred_check_branch
          %347 = sbr.rel (%p345) target = $region52
        $region51: #{tpu_custom_call.1} parent=47 // pred_region
          %s348 = sand.u32 %s36, 1
          %s349 = scalar_lea.sflag [#allocation3], %s348
          %s350 = sand.u32 %s36, 1
          %s351 = smul.addr %s350, 256
          %s352 = scalar_lea.vmem [#allocation2], %s351
          %s353 = smul.u32 4, %s26
          %s355 = ssub.s32 4096, 4096
          %356 = vsyncadd %s349, %s355
          %s357 = smul.addr %s353, 16
          %s358 = smul.addr %s357, 64
          %s359 = scalar_lea.hbm %s0, %s358
          %s360 = sshll.u32 %s352, 4
          %s361 = int_to_ptr.vmem [resolvable:$true] %s360
          %366 = dma.hbm_to_vmem [thread:$0]  %s359, 4096, %s361, %s349, 64, 64, 4
        $region52: #{tpu_custom_call.1} parent=47 // pred_fallthru
          _
        // Predicated region
        $region53: #{tpu_custom_call.1} parent=47 // pred_check
          %p367 = pneg %p72
        $region54: #{tpu_custom_call.1} parent=47 // pred_check_branch
          %369 = sbr.rel (%p367) target = $region56
        $region55: #{tpu_custom_call.1} parent=47 // pred_region
          %s370 = sand.u32 %s26, 1
          %s371 = scalar_lea.sflag [#allocation6], %s370
          %s372 = sand.u32 %s62, 1
          %s373 = smul.addr %s372, 256
          %s374 = scalar_lea.vmem [#allocation5], %s373
          %s375 = smul.u32 4, %s26
          %s377 = ssub.s32 4096, 4096
          %378 = vsyncadd %s371, %s377
          %s379 = smul.addr %s375, 16
          %s380 = smul.addr %s379, 64
          %s381 = scalar_lea.hbm %s1, %s380
          %s382 = sshll.u32 %s374, 4
          %s383 = int_to_ptr.vmem [resolvable:$true] %s382
          %388 = dma.hbm_to_vmem [thread:$0]  %s381, 4096, %s383, %s371, 64, 64, 4
        $region56: #{tpu_custom_call.1} parent=47 // pred_fallthru
          _
      $region48: #{tpu_custom_call.1} parent=5 // pred_fallthru
        _
      %p389 = scmp.le.s32.totalorder 1, %s26
      %p390 = scmp.lt.s32.totalorder %s26, 5
      %p391 = pnand %p389, %p390
      %p392 = pneg %p391
      // Predicated region
      $region57: #{tpu_custom_call.1} parent=5 // pred_check
        _
      $region58: #{tpu_custom_call.1} parent=5 // pred_check_branch
        %394 = sbr.rel (%p391) target = $region60
      $region59: #{tpu_custom_call.1} parent=5 // pred_region
        %s395 = ssub.s32 %s26, 1
        %s396 = sand.u32 %s39, 1
        %s397 = scalar_lea.sflag [#allocation3], %s396
        %s398 = sand.u32 %s39, 1
        %s399 = smul.addr %s398, 256
        %s400 = scalar_lea.vmem [#allocation2], %s399
        // Predicated region
        $region61: #{tpu_custom_call.1} parent=59 // pred_check
          %p401 = pneg %p52
        $region62: #{tpu_custom_call.1} parent=59 // pred_check_branch
          %403 = sbr.rel (%p401) target = $region64
        $region63: #{tpu_custom_call.1} parent=59 // pred_region
          %404 = dma.done %s397, 4096
        $region64: #{tpu_custom_call.1} parent=59 // pred_fallthru
          _
        %s405 = sand.u32 %s31, 1
        %s406 = scalar_lea.sflag [#allocation6], %s405
        %s407 = sand.u32 %s65, 1
        %s408 = smul.addr %s407, 256
        %s409 = scalar_lea.vmem [#allocation5], %s408
        // Predicated region
        $region65: #{tpu_custom_call.1} parent=59 // pred_check
          %p410 = pneg %p78
        $region66: #{tpu_custom_call.1} parent=59 // pred_check_branch
          %412 = sbr.rel (%p410) target = $region68
        $region67: #{tpu_custom_call.1} parent=59 // pred_region
          %413 = dma.done %s406, 4096
        $region68: #{tpu_custom_call.1} parent=59 // pred_fallthru
          _
        // Predicated region
        $region69: #{tpu_custom_call.1} parent=59 // pred_check
          %p414 = pneg %p99
        $region70: #{tpu_custom_call.1} parent=59 // pred_check_branch
          %416 = sbr.rel (%p414) target = $region72
        $region71: #{tpu_custom_call.1} parent=59 // pred_region
          %417 = dma.done [#allocation6], 1024
        $region72: #{tpu_custom_call.1} parent=59 // pred_fallthru
          _
        // Predicated region
        $region73: #{tpu_custom_call.1} parent=59 // pred_check
          %p418 = pneg %p141
        $region74: #{tpu_custom_call.1} parent=59 // pred_check_branch
          %420 = sbr.rel (%p418) target = $region76
        $region75: #{tpu_custom_call.1} parent=59 // pred_region
          %421 = dma.done [#allocation9], 1024
        $region76: #{tpu_custom_call.1} parent=59 // pred_fallthru
          _
        // Predicated region
        $region77: #{tpu_custom_call.1} parent=59 // pred_check
          %p422 = pneg %p183
        $region78: #{tpu_custom_call.1} parent=59 // pred_check_branch
          %424 = sbr.rel (%p422) target = $region80
        $region79: #{tpu_custom_call.1} parent=59 // pred_region
          %425 = dma.done [#allocation9], 1024
        $region80: #{tpu_custom_call.1} parent=59 // pred_fallthru
          _
        %s426 = sand.u32 %s39, 1
        %s427 = scalar_lea.sflag [#allocation3], %s426
        %s428 = sand.u32 %s39, 1
        %s429 = smul.addr %s428, 256
        %s430 = scalar_lea.vmem [#allocation2], %s429
        %p431 = pneg %p52
        %p432 = pneg %p49
        %s433 = sand.u32 %s31, 1
        %s434 = scalar_lea.sflag [#allocation6], %s433
        %s435 = sand.u32 %s65, 1
        %s436 = smul.addr %s435, 256
        %s437 = scalar_lea.vmem [#allocation5], %s436
        %p438 = pneg %p78
        %p439 = pneg %p75
        %p440 = pneg %p99
        %p441 = pneg %p96
        %p442 = pneg %p120
        %p443 = pneg %p117
        %p444 = pneg %p141
        %p445 = pneg %p138
        %p446 = pneg %p162
        %p447 = pneg %p159
        %p448 = pneg %p183
        %p449 = pneg %p180
        %p450 = pneg %p204
        %p451 = pneg %p201
        %p452 = pneg %p225
        %p453 = pneg %p222
        %p454 = pneg %p246
        %p455 = pneg %p243
        %p456 = pneg %p272
        %p457 = pneg %p269
        %s458 = sand.u32 %s259, 1
        %s459 = scalar_lea.sflag [#allocation4], %s458
        %s460 = sand.u32 %s259, 1
        %s461 = smul.addr %s460, 32
        %s462 = scalar_lea.vmem [#allocation11], %s461
        %s463 = smul.u32 4, %s31
        %s464 = smul.u32 4, %s31
        %s465 = smul.u32 4, %s31
        %v467 = vld [vmem:[%s400] sm:$0xf]
        %v468 = vld [vmem:[%s400 + $0x4] sm:$0xf]
        %v469 = vld [vmem:[%s400 + $0x8] sm:$0xf]
        %v470 = vld [vmem:[%s400 + $0xc] sm:$0xf]
        %v471 = vld [vmem:[%s400 + $0x10] sm:$0xf]
        %v472 = vld [vmem:[%s400 + $0x14] sm:$0xf]
        %v473 = vld [vmem:[%s400 + $0x18] sm:$0xf]
        %v474 = vld [vmem:[%s400 + $0x1c] sm:$0xf]
        %v475 = vld [vmem:[%s400 + $0x20] sm:$0xf]
        %v476 = vld [vmem:[%s400 + $0x24] sm:$0xf]
        %v477 = vld [vmem:[%s400 + $0x28] sm:$0xf]
        %v478 = vld [vmem:[%s400 + $0x2c] sm:$0xf]
        %v479 = vld [vmem:[%s400 + $0x30] sm:$0xf]
        %v480 = vld [vmem:[%s400 + $0x34] sm:$0xf]
        %v481 = vld [vmem:[%s400 + $0x38] sm:$0xf]
        %v482 = vld [vmem:[%s400 + $0x3c] sm:$0xf]
        %v483 = vld [vmem:[%s400 + $0x40] sm:$0xf]
        %v484 = vld [vmem:[%s400 + $0x44] sm:$0xf]
        %v485 = vld [vmem:[%s400 + $0x48] sm:$0xf]
        %v486 = vld [vmem:[%s400 + $0x4c] sm:$0xf]
        %v487 = vld [vmem:[%s400 + $0x50] sm:$0xf]
        %v488 = vld [vmem:[%s400 + $0x54] sm:$0xf]
        %v489 = vld [vmem:[%s400 + $0x58] sm:$0xf]
        %v490 = vld [vmem:[%s400 + $0x5c] sm:$0xf]
        %v491 = vld [vmem:[%s400 + $0x60] sm:$0xf]
        %v492 = vld [vmem:[%s400 + $0x64] sm:$0xf]
        %v493 = vld [vmem:[%s400 + $0x68] sm:$0xf]
        %v494 = vld [vmem:[%s400 + $0x6c] sm:$0xf]
        %v495 = vld [vmem:[%s400 + $0x70] sm:$0xf]
        %v496 = vld [vmem:[%s400 + $0x74] sm:$0xf]
        %v497 = vld [vmem:[%s400 + $0x78] sm:$0xf]
        %v498 = vld [vmem:[%s400 + $0x7c] sm:$0xf]
        %v499 = vld [vmem:[%s400 + $0x80] sm:$0xf]
        %v500 = vld [vmem:[%s400 + $0x84] sm:$0xf]
        %v501 = vld [vmem:[%s400 + $0x88] sm:$0xf]
        %v502 = vld [vmem:[%s400 + $0x8c] sm:$0xf]
        %v503 = vld [vmem:[%s400 + $0x90] sm:$0xf]
        %v504 = vld [vmem:[%s400 + $0x94] sm:$0xf]
        %v505 = vld [vmem:[%s400 + $0x98] sm:$0xf]
        %v506 = vld [vmem:[%s400 + $0x9c] sm:$0xf]
        %v507 = vld [vmem:[%s400 + $0xa0] sm:$0xf]
        %v508 = vld [vmem:[%s400 + $0xa4] sm:$0xf]
        %v509 = vld [vmem:[%s400 + $0xa8] sm:$0xf]
        %v510 = vld [vmem:[%s400 + $0xac] sm:$0xf]
        %v511 = vld [vmem:[%s400 + $0xb0] sm:$0xf]
        %v512 = vld [vmem:[%s400 + $0xb4] sm:$0xf]
        %v513 = vld [vmem:[%s400 + $0xb8] sm:$0xf]
        %v514 = vld [vmem:[%s400 + $0xbc] sm:$0xf]
        %v515 = vld [vmem:[%s400 + $0xc0] sm:$0xf]
        %v516 = vld [vmem:[%s400 + $0xc4] sm:$0xf]
        %v517 = vld [vmem:[%s400 + $0xc8] sm:$0xf]
        %v518 = vld [vmem:[%s400 + $0xcc] sm:$0xf]
        %v519 = vld [vmem:[%s400 + $0xd0] sm:$0xf]
        %v520 = vld [vmem:[%s400 + $0xd4] sm:$0xf]
        %v521 = vld [vmem:[%s400 + $0xd8] sm:$0xf]
        %v522 = vld [vmem:[%s400 + $0xdc] sm:$0xf]
        %v523 = vld [vmem:[%s400 + $0xe0] sm:$0xf]
        %v524 = vld [vmem:[%s400 + $0xe4] sm:$0xf]
        %v525 = vld [vmem:[%s400 + $0xe8] sm:$0xf]
        %v526 = vld [vmem:[%s400 + $0xec] sm:$0xf]
        %v527 = vld [vmem:[%s400 + $0xf0] sm:$0xf]
        %v528 = vld [vmem:[%s400 + $0xf4] sm:$0xf]
        %v529 = vld [vmem:[%s400 + $0xf8] sm:$0xf]
        %v530 = vld [vmem:[%s400 + $0xfc] sm:$0xf]
        %v531 = vld [vmem:[%s409] sm:$0xf]
        %v532 = vld [vmem:[%s409 + $0x4] sm:$0xf]
        %v533 = vld [vmem:[%s409 + $0x8] sm:$0xf]
        %v534 = vld [vmem:[%s409 + $0xc] sm:$0xf]
        %v535 = vld [vmem:[%s409 + $0x10] sm:$0xf]
        %v536 = vld [vmem:[%s409 + $0x14] sm:$0xf]
        %v537 = vld [vmem:[%s409 + $0x18] sm:$0xf]
        %v538 = vld [vmem:[%s409 + $0x1c] sm:$0xf]
        %v539 = vld [vmem:[%s409 + $0x20] sm:$0xf]
        %v540 = vld [vmem:[%s409 + $0x24] sm:$0xf]
        %v541 = vld [vmem:[%s409 + $0x28] sm:$0xf]
        %v542 = vld [vmem:[%s409 + $0x2c] sm:$0xf]
        %v543 = vld [vmem:[%s409 + $0x30] sm:$0xf]
        %v544 = vld [vmem:[%s409 + $0x34] sm:$0xf]
        %v545 = vld [vmem:[%s409 + $0x38] sm:$0xf]
        %v546 = vld [vmem:[%s409 + $0x3c] sm:$0xf]
        %v547 = vld [vmem:[%s409 + $0x40] sm:$0xf]
        %v548 = vld [vmem:[%s409 + $0x44] sm:$0xf]
        %v549 = vld [vmem:[%s409 + $0x48] sm:$0xf]
        %v550 = vld [vmem:[%s409 + $0x4c] sm:$0xf]
        %v551 = vld [vmem:[%s409 + $0x50] sm:$0xf]
        %v552 = vld [vmem:[%s409 + $0x54] sm:$0xf]
        %v553 = vld [vmem:[%s409 + $0x58] sm:$0xf]
        %v554 = vld [vmem:[%s409 + $0x5c] sm:$0xf]
        %v555 = vld [vmem:[%s409 + $0x60] sm:$0xf]
        %v556 = vld [vmem:[%s409 + $0x64] sm:$0xf]
        %v557 = vld [vmem:[%s409 + $0x68] sm:$0xf]
        %v558 = vld [vmem:[%s409 + $0x6c] sm:$0xf]
        %v559 = vld [vmem:[%s409 + $0x70] sm:$0xf]
        %v560 = vld [vmem:[%s409 + $0x74] sm:$0xf]
        %v561 = vld [vmem:[%s409 + $0x78] sm:$0xf]
        %v562 = vld [vmem:[%s409 + $0x7c] sm:$0xf]
        %v563 = vld [vmem:[%s409 + $0x80] sm:$0xf]
        %v564 = vld [vmem:[%s409 + $0x84] sm:$0xf]
        %v565 = vld [vmem:[%s409 + $0x88] sm:$0xf]
        %v566 = vld [vmem:[%s409 + $0x8c] sm:$0xf]
        %v567 = vld [vmem:[%s409 + $0x90] sm:$0xf]
        %v568 = vld [vmem:[%s409 + $0x94] sm:$0xf]
        %v569 = vld [vmem:[%s409 + $0x98] sm:$0xf]
        %v570 = vld [vmem:[%s409 + $0x9c] sm:$0xf]
        %v571 = vld [vmem:[%s409 + $0xa0] sm:$0xf]
        %v572 = vld [vmem:[%s409 + $0xa4] sm:$0xf]
        %v573 = vld [vmem:[%s409 + $0xa8] sm:$0xf]
        %v574 = vld [vmem:[%s409 + $0xac] sm:$0xf]
        %v575 = vld [vmem:[%s409 + $0xb0] sm:$0xf]
        %v576 = vld [vmem:[%s409 + $0xb4] sm:$0xf]
        %v577 = vld [vmem:[%s409 + $0xb8] sm:$0xf]
        %v578 = vld [vmem:[%s409 + $0xbc] sm:$0xf]
        %v579 = vld [vmem:[%s409 + $0xc0] sm:$0xf]
        %v580 = vld [vmem:[%s409 + $0xc4] sm:$0xf]
        %v581 = vld [vmem:[%s409 + $0xc8] sm:$0xf]
        %v582 = vld [vmem:[%s409 + $0xcc] sm:$0xf]
        %v583 = vld [vmem:[%s409 + $0xd0] sm:$0xf]
        %v584 = vld [vmem:[%s409 + $0xd4] sm:$0xf]
        %v585 = vld [vmem:[%s409 + $0xd8] sm:$0xf]
        %v586 = vld [vmem:[%s409 + $0xdc] sm:$0xf]
        %v587 = vld [vmem:[%s409 + $0xe0] sm:$0xf]
        %v588 = vld [vmem:[%s409 + $0xe4] sm:$0xf]
        %v589 = vld [vmem:[%s409 + $0xe8] sm:$0xf]
        %v590 = vld [vmem:[%s409 + $0xec] sm:$0xf]
        %v591 = vld [vmem:[%s409 + $0xf0] sm:$0xf]
        %v592 = vld [vmem:[%s409 + $0xf4] sm:$0xf]
        %v593 = vld [vmem:[%s409 + $0xf8] sm:$0xf]
        %v594 = vld [vmem:[%s409 + $0xfc] sm:$0xf]
        %v611 = vunpack.c.l.b16 %v467
        %v612 = vunpack.c.l.b16 %v468
        %v613 = vunpack.c.l.b16 %v469
        %v614 = vunpack.c.l.b16 %v470
        %v615 = vunpack.c.l.b16 %v471
        %v616 = vunpack.c.l.b16 %v472
        %v617 = vunpack.c.l.b16 %v473
        %v618 = vunpack.c.l.b16 %v474
        %v619 = vunpack.c.l.b16 %v475
        %v620 = vunpack.c.l.b16 %v476
        %v621 = vunpack.c.l.b16 %v477
        %v622 = vunpack.c.l.b16 %v478
        %v623 = vunpack.c.l.b16 %v479
        %v624 = vunpack.c.l.b16 %v480
        %v625 = vunpack.c.l.b16 %v481
        %v626 = vunpack.c.l.b16 %v482
        %v627 = vpack.c.b16 %v612, %v611
        %v628 = vpack.c.b16 %v614, %v613
        %v629 = vpack.c.b16 %v616, %v615
        %v630 = vpack.c.b16 %v618, %v617
        %v631 = vpack.c.b16 %v620, %v619
        %v632 = vpack.c.b16 %v622, %v621
        %v633 = vpack.c.b16 %v624, %v623
        %v634 = vpack.c.b16 %v626, %v625
        %v659 = vunpack.c.l.b16 %v531
        %v660 = vunpack.c.l.b16 %v532
        %v661 = vunpack.c.l.b16 %v533
        %v662 = vunpack.c.l.b16 %v534
        %v663 = vunpack.c.l.b16 %v535
        %v664 = vunpack.c.l.b16 %v536
        %v665 = vunpack.c.l.b16 %v537
        %v666 = vunpack.c.l.b16 %v538
        %v667 = vunpack.c.l.b16 %v539
        %v668 = vunpack.c.l.b16 %v540
        %v669 = vunpack.c.l.b16 %v541
        %v670 = vunpack.c.l.b16 %v542
        %v671 = vunpack.c.l.b16 %v543
        %v672 = vunpack.c.l.b16 %v544
        %v673 = vunpack.c.l.b16 %v545
        %v674 = vunpack.c.l.b16 %v546
        %v675 = vpack.c.b16 %v660, %v659
        %v676 = vpack.c.b16 %v662, %v661
        %v677 = vpack.c.b16 %v664, %v663
        %v678 = vpack.c.b16 %v666, %v665
        %v679 = vpack.c.b16 %v668, %v667
        %v680 = vpack.c.b16 %v670, %v669
        %v681 = vpack.c.b16 %v672, %v671
        %v682 = vpack.c.b16 %v674, %v673
        %691 = vmatprep.subr.bf16.mxu0 0
        %692 = vmatpush1.bf16.msra.mxu0 %v682
        %693 = vmatprep.subr.bf16.mxu0 0
        %694 = vmatpush1.bf16.msra.mxu0 %v681
        %695 = vmatprep.subr.bf16.mxu0 0
        %696 = vmatpush1.bf16.msra.mxu0 %v680
        %697 = vmatprep.subr.bf16.mxu0 0
        %698 = vmatpush1.bf16.msra.mxu0 %v679
        %699 = vmatprep.subr.bf16.mxu0 0
        %700 = vmatpush1.bf16.msra.mxu0 %v678
        %701 = vmatprep.subr.bf16.mxu0 0
        %702 = vmatpush1.bf16.msra.mxu0 %v677
        %703 = vmatprep.subr.bf16.mxu0 0
        %704 = vmatpush1.bf16.msra.mxu0 %v676
        %705 = vmatprep.subr.bf16.mxu0 0
        %706 = vmatpush1.bf16.msra.mxu0 %v675
        %707 = vmatprep.subr.bf16.mxu0 0
        %708 = vmatpush2.bf16.msra.mxu0 0
        %709 = vmatprep.subr.bf16.mxu0 0
        %710 = vmatpush2.bf16.msra.mxu0 0
        %711 = vmatprep.subr.bf16.mxu0 0
        %712 = vmatpush2.bf16.msra.mxu0 0
        %713 = vmatprep.subr.bf16.mxu0 0
        %714 = vmatpush2.bf16.msra.mxu0 0
        %715 = vmatprep.subr.bf16.mxu0 0
        %716 = vmatpush2.bf16.msra.mxu0 0
        %717 = vmatprep.subr.bf16.mxu0 0
        %718 = vmatpush2.bf16.msra.mxu0 0
        %719 = vmatprep.subr.bf16.mxu0 0
        %720 = vmatpush2.bf16.msra.mxu0 0
        %721 = vmatprep.subr.bf16.mxu0 0
        %722 = vmatpush2.bf16.msra.mxu0 0
        %723 = vmatprep.mubr.bf16.mxu0 0
        %724 = vmatmul.mubr.bf16.gmra.mxu0 %v627
        %v725 = vpop.f32.mrf.mxu0
        %v726 = vadd.f32 0.0, %v725
        %v727 = vpop.f32.mrf.mxu0
        %v728 = vpop.f32.mrf.mxu0
        %v729 = vadd.f32 0.0, %v728
        %v730 = vpop.f32.mrf.mxu0
        %731 = vmatprep.mubr.bf16.mxu0 0
        %732 = vmatmul.mubr.bf16.gmra.mxu0 %v628
        %v733 = vpop.f32.mrf.mxu0
        %v734 = vadd.f32 0.0, %v733
        %v735 = vpop.f32.mrf.mxu0
        %v736 = vpop.f32.mrf.mxu0
        %v737 = vadd.f32 0.0, %v736
        %v738 = vpop.f32.mrf.mxu0
        %739 = vmatprep.mubr.bf16.mxu0 0
        %740 = vmatmul.mubr.bf16.gmra.mxu0 %v629
        %v741 = vpop.f32.mrf.mxu0
        %v742 = vadd.f32 0.0, %v741
        %v743 = vpop.f32.mrf.mxu0
        %v744 = vpop.f32.mrf.mxu0
        %v745 = vadd.f32 0.0, %v744
        %v746 = vpop.f32.mrf.mxu0
        %747 = vmatprep.mubr.bf16.mxu0 0
        %748 = vmatmul.mubr.bf16.gmra.mxu0 %v630
        %v749 = vpop.f32.mrf.mxu0
        %v750 = vadd.f32 0.0, %v749
        %v751 = vpop.f32.mrf.mxu0
        %v752 = vpop.f32.mrf.mxu0
        %v753 = vadd.f32 0.0, %v752
        %v754 = vpop.f32.mrf.mxu0
        %755 = vmatprep.mubr.bf16.mxu0 0
        %756 = vmatmul.mubr.bf16.gmra.mxu0 %v631
        %v757 = vpop.f32.mrf.mxu0
        %v758 = vadd.f32 0.0, %v757
        %v759 = vpop.f32.mrf.mxu0
        %v760 = vpop.f32.mrf.mxu0
        %v761 = vadd.f32 0.0, %v760
        %v762 = vpop.f32.mrf.mxu0
        %763 = vmatprep.mubr.bf16.mxu0 0
        %764 = vmatmul.mubr.bf16.gmra.mxu0 %v632
        %v765 = vpop.f32.mrf.mxu0
        %v766 = vadd.f32 0.0, %v765
        %v767 = vpop.f32.mrf.mxu0
        %v768 = vpop.f32.mrf.mxu0
        %v769 = vadd.f32 0.0, %v768
        %v770 = vpop.f32.mrf.mxu0
        %771 = vmatprep.mubr.bf16.mxu0 0
        %772 = vmatmul.mubr.bf16.gmra.mxu0 %v633
        %v773 = vpop.f32.mrf.mxu0
        %v774 = vadd.f32 0.0, %v773
        %v775 = vpop.f32.mrf.mxu0
        %v776 = vpop.f32.mrf.mxu0
        %v777 = vadd.f32 0.0, %v776
        %v778 = vpop.f32.mrf.mxu0
        %779 = vmatprep.mubr.bf16.mxu0 0
        %780 = vmatmul.mubr.bf16.gmra.mxu0 %v634
        %v781 = vpop.f32.mrf.mxu0
        %v782 = vadd.f32 0.0, %v781
        %v783 = vpop.f32.mrf.mxu0
        %v784 = vpop.f32.mrf.mxu0
        %v785 = vadd.f32 0.0, %v784
        %v786 = vpop.f32.mrf.mxu0
        %787 = vdwg.mxu0
        %v804 = vunpack.c.l.b16 %v483
        %v805 = vunpack.c.l.b16 %v484
        %v806 = vunpack.c.l.b16 %v485
        %v807 = vunpack.c.l.b16 %v486
        %v808 = vunpack.c.l.b16 %v487
        %v809 = vunpack.c.l.b16 %v488
        %v810 = vunpack.c.l.b16 %v489
        %v811 = vunpack.c.l.b16 %v490
        %v812 = vunpack.c.l.b16 %v491
        %v813 = vunpack.c.l.b16 %v492
        %v814 = vunpack.c.l.b16 %v493
        %v815 = vunpack.c.l.b16 %v494
        %v816 = vunpack.c.l.b16 %v495
        %v817 = vunpack.c.l.b16 %v496
        %v818 = vunpack.c.l.b16 %v497
        %v819 = vunpack.c.l.b16 %v498
        %v820 = vpack.c.b16 %v805, %v804
        %v821 = vpack.c.b16 %v807, %v806
        %v822 = vpack.c.b16 %v809, %v808
        %v823 = vpack.c.b16 %v811, %v810
        %v824 = vpack.c.b16 %v813, %v812
        %v825 = vpack.c.b16 %v815, %v814
        %v826 = vpack.c.b16 %v817, %v816
        %v827 = vpack.c.b16 %v819, %v818
        %v852 = vunpack.c.l.b16 %v547
        %v853 = vunpack.c.l.b16 %v548
        %v854 = vunpack.c.l.b16 %v549
        %v855 = vunpack.c.l.b16 %v550
        %v856 = vunpack.c.l.b16 %v551
        %v857 = vunpack.c.l.b16 %v552
        %v858 = vunpack.c.l.b16 %v553
        %v859 = vunpack.c.l.b16 %v554
        %v860 = vunpack.c.l.b16 %v555
        %v861 = vunpack.c.l.b16 %v556
        %v862 = vunpack.c.l.b16 %v557
        %v863 = vunpack.c.l.b16 %v558
        %v864 = vunpack.c.l.b16 %v559
        %v865 = vunpack.c.l.b16 %v560
        %v866 = vunpack.c.l.b16 %v561
        %v867 = vunpack.c.l.b16 %v562
        %v868 = vpack.c.b16 %v853, %v852
        %v869 = vpack.c.b16 %v855, %v854
        %v870 = vpack.c.b16 %v857, %v856
        %v871 = vpack.c.b16 %v859, %v858
        %v872 = vpack.c.b16 %v861, %v860
        %v873 = vpack.c.b16 %v863, %v862
        %v874 = vpack.c.b16 %v865, %v864
        %v875 = vpack.c.b16 %v867, %v866
        %884 = vmatprep.subr.bf16.mxu0 0
        %885 = vmatpush1.bf16.msra.mxu0 %v875
        %886 = vmatprep.subr.bf16.mxu0 0
        %887 = vmatpush1.bf16.msra.mxu0 %v874
        %888 = vmatprep.subr.bf16.mxu0 0
        %889 = vmatpush1.bf16.msra.mxu0 %v873
        %890 = vmatprep.subr.bf16.mxu0 0
        %891 = vmatpush1.bf16.msra.mxu0 %v872
        %892 = vmatprep.subr.bf16.mxu0 0
        %893 = vmatpush1.bf16.msra.mxu0 %v871
        %894 = vmatprep.subr.bf16.mxu0 0
        %895 = vmatpush1.bf16.msra.mxu0 %v870
        %896 = vmatprep.subr.bf16.mxu0 0
        %897 = vmatpush1.bf16.msra.mxu0 %v869
        %898 = vmatprep.subr.bf16.mxu0 0
        %899 = vmatpush1.bf16.msra.mxu0 %v868
        %900 = vmatprep.subr.bf16.mxu0 0
        %901 = vmatpush2.bf16.msra.mxu0 0
        %902 = vmatprep.subr.bf16.mxu0 0
        %903 = vmatpush2.bf16.msra.mxu0 0
        %904 = vmatprep.subr.bf16.mxu0 0
        %905 = vmatpush2.bf16.msra.mxu0 0
        %906 = vmatprep.subr.bf16.mxu0 0
        %907 = vmatpush2.bf16.msra.mxu0 0
        %908 = vmatprep.subr.bf16.mxu0 0
        %909 = vmatpush2.bf16.msra.mxu0 0
        %910 = vmatprep.subr.bf16.mxu0 0
        %911 = vmatpush2.bf16.msra.mxu0 0
        %912 = vmatprep.subr.bf16.mxu0 0
        %913 = vmatpush2.bf16.msra.mxu0 0
        %914 = vmatprep.subr.bf16.mxu0 0
        %915 = vmatpush2.bf16.msra.mxu0 0
        %916 = vmatprep.mubr.bf16.mxu0 0
        %917 = vmatmul.mubr.bf16.gmra.mxu0 %v820
        %v918 = vpop.f32.mrf.mxu0
        %v919 = vadd.f32 0.0, %v918
        %v920 = vpop.f32.mrf.mxu0
        %v921 = vpop.f32.mrf.mxu0
        %v922 = vadd.f32 0.0, %v921
        %v923 = vpop.f32.mrf.mxu0
        %924 = vmatprep.mubr.bf16.mxu0 0
        %925 = vmatmul.mubr.bf16.gmra.mxu0 %v821
        %v926 = vpop.f32.mrf.mxu0
        %v927 = vadd.f32 0.0, %v926
        %v928 = vpop.f32.mrf.mxu0
        %v929 = vpop.f32.mrf.mxu0
        %v930 = vadd.f32 0.0, %v929
        %v931 = vpop.f32.mrf.mxu0
        %932 = vmatprep.mubr.bf16.mxu0 0
        %933 = vmatmul.mubr.bf16.gmra.mxu0 %v822
        %v934 = vpop.f32.mrf.mxu0
        %v935 = vadd.f32 0.0, %v934
        %v936 = vpop.f32.mrf.mxu0
        %v937 = vpop.f32.mrf.mxu0
        %v938 = vadd.f32 0.0, %v937
        %v939 = vpop.f32.mrf.mxu0
        %940 = vmatprep.mubr.bf16.mxu0 0
        %941 = vmatmul.mubr.bf16.gmra.mxu0 %v823
        %v942 = vpop.f32.mrf.mxu0
        %v943 = vadd.f32 0.0, %v942
        %v944 = vpop.f32.mrf.mxu0
        %v945 = vpop.f32.mrf.mxu0
        %v946 = vadd.f32 0.0, %v945
        %v947 = vpop.f32.mrf.mxu0
        %948 = vmatprep.mubr.bf16.mxu0 0
        %949 = vmatmul.mubr.bf16.gmra.mxu0 %v824
        %v950 = vpop.f32.mrf.mxu0
        %v951 = vadd.f32 0.0, %v950
        %v952 = vpop.f32.mrf.mxu0
        %v953 = vpop.f32.mrf.mxu0
        %v954 = vadd.f32 0.0, %v953
        %v955 = vpop.f32.mrf.mxu0
        %956 = vmatprep.mubr.bf16.mxu0 0
        %957 = vmatmul.mubr.bf16.gmra.mxu0 %v825
        %v958 = vpop.f32.mrf.mxu0
        %v959 = vadd.f32 0.0, %v958
        %v960 = vpop.f32.mrf.mxu0
        %v961 = vpop.f32.mrf.mxu0
        %v962 = vadd.f32 0.0, %v961
        %v963 = vpop.f32.mrf.mxu0
        %964 = vmatprep.mubr.bf16.mxu0 0
        %965 = vmatmul.mubr.bf16.gmra.mxu0 %v826
        %v966 = vpop.f32.mrf.mxu0
        %v967 = vadd.f32 0.0, %v966
        %v968 = vpop.f32.mrf.mxu0
        %v969 = vpop.f32.mrf.mxu0
        %v970 = vadd.f32 0.0, %v969
        %v971 = vpop.f32.mrf.mxu0
        %972 = vmatprep.mubr.bf16.mxu0 0
        %973 = vmatmul.mubr.bf16.gmra.mxu0 %v827
        %v974 = vpop.f32.mrf.mxu0
        %v975 = vadd.f32 0.0, %v974
        %v976 = vpop.f32.mrf.mxu0
        %v977 = vpop.f32.mrf.mxu0
        %v978 = vadd.f32 0.0, %v977
        %v979 = vpop.f32.mrf.mxu0
        %980 = vdwg.mxu0
        %v997 = vunpack.c.l.b16 %v499
        %v998 = vunpack.c.l.b16 %v500
        %v999 = vunpack.c.l.b16 %v501
        %v1000 = vunpack.c.l.b16 %v502
        %v1001 = vunpack.c.l.b16 %v503
        %v1002 = vunpack.c.l.b16 %v504
        %v1003 = vunpack.c.l.b16 %v505
        %v1004 = vunpack.c.l.b16 %v506
        %v1005 = vunpack.c.l.b16 %v507
        %v1006 = vunpack.c.l.b16 %v508
        %v1007 = vunpack.c.l.b16 %v509
        %v1008 = vunpack.c.l.b16 %v510
        %v1009 = vunpack.c.l.b16 %v511
        %v1010 = vunpack.c.l.b16 %v512
        %v1011 = vunpack.c.l.b16 %v513
        %v1012 = vunpack.c.l.b16 %v514
        %v1013 = vpack.c.b16 %v998, %v997
        %v1014 = vpack.c.b16 %v1000, %v999
        %v1015 = vpack.c.b16 %v1002, %v1001
        %v1016 = vpack.c.b16 %v1004, %v1003
        %v1017 = vpack.c.b16 %v1006, %v1005
        %v1018 = vpack.c.b16 %v1008, %v1007
        %v1019 = vpack.c.b16 %v1010, %v1009
        %v1020 = vpack.c.b16 %v1012, %v1011
        %v1045 = vunpack.c.l.b16 %v563
        %v1046 = vunpack.c.l.b16 %v564
        %v1047 = vunpack.c.l.b16 %v565
        %v1048 = vunpack.c.l.b16 %v566
        %v1049 = vunpack.c.l.b16 %v567
        %v1050 = vunpack.c.l.b16 %v568
        %v1051 = vunpack.c.l.b16 %v569
        %v1052 = vunpack.c.l.b16 %v570
        %v1053 = vunpack.c.l.b16 %v571
        %v1054 = vunpack.c.l.b16 %v572
        %v1055 = vunpack.c.l.b16 %v573
        %v1056 = vunpack.c.l.b16 %v574
        %v1057 = vunpack.c.l.b16 %v575
        %v1058 = vunpack.c.l.b16 %v576
        %v1059 = vunpack.c.l.b16 %v577
        %v1060 = vunpack.c.l.b16 %v578
        %v1061 = vpack.c.b16 %v1046, %v1045
        %v1062 = vpack.c.b16 %v1048, %v1047
        %v1063 = vpack.c.b16 %v1050, %v1049
        %v1064 = vpack.c.b16 %v1052, %v1051
        %v1065 = vpack.c.b16 %v1054, %v1053
        %v1066 = vpack.c.b16 %v1056, %v1055
        %v1067 = vpack.c.b16 %v1058, %v1057
        %v1068 = vpack.c.b16 %v1060, %v1059
        %1077 = vmatprep.subr.bf16.mxu0 0
        %1078 = vmatpush1.bf16.msra.mxu0 %v1068
        %1079 = vmatprep.subr.bf16.mxu0 0
        %1080 = vmatpush1.bf16.msra.mxu0 %v1067
        %1081 = vmatprep.subr.bf16.mxu0 0
        %1082 = vmatpush1.bf16.msra.mxu0 %v1066
        %1083 = vmatprep.subr.bf16.mxu0 0
        %1084 = vmatpush1.bf16.msra.mxu0 %v1065
        %1085 = vmatprep.subr.bf16.mxu0 0
        %1086 = vmatpush1.bf16.msra.mxu0 %v1064
        %1087 = vmatprep.subr.bf16.mxu0 0
        %1088 = vmatpush1.bf16.msra.mxu0 %v1063
        %1089 = vmatprep.subr.bf16.mxu0 0
        %1090 = vmatpush1.bf16.msra.mxu0 %v1062
        %1091 = vmatprep.subr.bf16.mxu0 0
        %1092 = vmatpush1.bf16.msra.mxu0 %v1061
        %1093 = vmatprep.subr.bf16.mxu0 0
        %1094 = vmatpush2.bf16.msra.mxu0 0
        %1095 = vmatprep.subr.bf16.mxu0 0
        %1096 = vmatpush2.bf16.msra.mxu0 0
        %1097 = vmatprep.subr.bf16.mxu0 0
        %1098 = vmatpush2.bf16.msra.mxu0 0
        %1099 = vmatprep.subr.bf16.mxu0 0
        %1100 = vmatpush2.bf16.msra.mxu0 0
        %1101 = vmatprep.subr.bf16.mxu0 0
        %1102 = vmatpush2.bf16.msra.mxu0 0
        %1103 = vmatprep.subr.bf16.mxu0 0
        %1104 = vmatpush2.bf16.msra.mxu0 0
        %1105 = vmatprep.subr.bf16.mxu0 0
        %1106 = vmatpush2.bf16.msra.mxu0 0
        %1107 = vmatprep.subr.bf16.mxu0 0
        %1108 = vmatpush2.bf16.msra.mxu0 0
        %1109 = vmatprep.mubr.bf16.mxu0 0
        %1110 = vmatmul.mubr.bf16.gmra.mxu0 %v1013
        %v1111 = vpop.f32.mrf.mxu0
        %v1112 = vadd.f32 0.0, %v1111
        %v1113 = vpop.f32.mrf.mxu0
        %v1114 = vpop.f32.mrf.mxu0
        %v1115 = vadd.f32 0.0, %v1114
        %v1116 = vpop.f32.mrf.mxu0
        %1117 = vmatprep.mubr.bf16.mxu0 0
        %1118 = vmatmul.mubr.bf16.gmra.mxu0 %v1014
        %v1119 = vpop.f32.mrf.mxu0
        %v1120 = vadd.f32 0.0, %v1119
        %v1121 = vpop.f32.mrf.mxu0
        %v1122 = vpop.f32.mrf.mxu0
        %v1123 = vadd.f32 0.0, %v1122
        %v1124 = vpop.f32.mrf.mxu0
        %1125 = vmatprep.mubr.bf16.mxu0 0
        %1126 = vmatmul.mubr.bf16.gmra.mxu0 %v1015
        %v1127 = vpop.f32.mrf.mxu0
        %v1128 = vadd.f32 0.0, %v1127
        %v1129 = vpop.f32.mrf.mxu0
        %v1130 = vpop.f32.mrf.mxu0
        %v1131 = vadd.f32 0.0, %v1130
        %v1132 = vpop.f32.mrf.mxu0
        %1133 = vmatprep.mubr.bf16.mxu0 0
        %1134 = vmatmul.mubr.bf16.gmra.mxu0 %v1016
        %v1135 = vpop.f32.mrf.mxu0
        %v1136 = vadd.f32 0.0, %v1135
        %v1137 = vpop.f32.mrf.mxu0
        %v1138 = vpop.f32.mrf.mxu0
        %v1139 = vadd.f32 0.0, %v1138
        %v1140 = vpop.f32.mrf.mxu0
        %1141 = vmatprep.mubr.bf16.mxu0 0
        %1142 = vmatmul.mubr.bf16.gmra.mxu0 %v1017
        %v1143 = vpop.f32.mrf.mxu0
        %v1144 = vadd.f32 0.0, %v1143
        %v1145 = vpop.f32.mrf.mxu0
        %v1146 = vpop.f32.mrf.mxu0
        %v1147 = vadd.f32 0.0, %v1146
        %v1148 = vpop.f32.mrf.mxu0
        %1149 = vmatprep.mubr.bf16.mxu0 0
        %1150 = vmatmul.mubr.bf16.gmra.mxu0 %v1018
        %v1151 = vpop.f32.mrf.mxu0
        %v1152 = vadd.f32 0.0, %v1151
        %v1153 = vpop.f32.mrf.mxu0
        %v1154 = vpop.f32.mrf.mxu0
        %v1155 = vadd.f32 0.0, %v1154
        %v1156 = vpop.f32.mrf.mxu0
        %1157 = vmatprep.mubr.bf16.mxu0 0
        %1158 = vmatmul.mubr.bf16.gmra.mxu0 %v1019
        %v1159 = vpop.f32.mrf.mxu0
        %v1160 = vadd.f32 0.0, %v1159
        %v1161 = vpop.f32.mrf.mxu0
        %v1162 = vpop.f32.mrf.mxu0
        %v1163 = vadd.f32 0.0, %v1162
        %v1164 = vpop.f32.mrf.mxu0
        %1165 = vmatprep.mubr.bf16.mxu0 0
        %1166 = vmatmul.mubr.bf16.gmra.mxu0 %v1020
        %v1167 = vpop.f32.mrf.mxu0
        %v1168 = vadd.f32 0.0, %v1167
        %v1169 = vpop.f32.mrf.mxu0
        %v1170 = vpop.f32.mrf.mxu0
        %v1171 = vadd.f32 0.0, %v1170
        %v1172 = vpop.f32.mrf.mxu0
        %1173 = vdwg.mxu0
        %v1190 = vunpack.c.l.b16 %v515
        %v1191 = vunpack.c.l.b16 %v516
        %v1192 = vunpack.c.l.b16 %v517
        %v1193 = vunpack.c.l.b16 %v518
        %v1194 = vunpack.c.l.b16 %v519
        %v1195 = vunpack.c.l.b16 %v520
        %v1196 = vunpack.c.l.b16 %v521
        %v1197 = vunpack.c.l.b16 %v522
        %v1198 = vunpack.c.l.b16 %v523
        %v1199 = vunpack.c.l.b16 %v524
        %v1200 = vunpack.c.l.b16 %v525
        %v1201 = vunpack.c.l.b16 %v526
        %v1202 = vunpack.c.l.b16 %v527
        %v1203 = vunpack.c.l.b16 %v528
        %v1204 = vunpack.c.l.b16 %v529
        %v1205 = vunpack.c.l.b16 %v530
        %v1206 = vpack.c.b16 %v1191, %v1190
        %v1207 = vpack.c.b16 %v1193, %v1192
        %v1208 = vpack.c.b16 %v1195, %v1194
        %v1209 = vpack.c.b16 %v1197, %v1196
        %v1210 = vpack.c.b16 %v1199, %v1198
        %v1211 = vpack.c.b16 %v1201, %v1200
        %v1212 = vpack.c.b16 %v1203, %v1202
        %v1213 = vpack.c.b16 %v1205, %v1204
        %v1238 = vunpack.c.l.b16 %v579
        %v1239 = vunpack.c.l.b16 %v580
        %v1240 = vunpack.c.l.b16 %v581
        %v1241 = vunpack.c.l.b16 %v582
        %v1242 = vunpack.c.l.b16 %v583
        %v1243 = vunpack.c.l.b16 %v584
        %v1244 = vunpack.c.l.b16 %v585
        %v1245 = vunpack.c.l.b16 %v586
        %v1246 = vunpack.c.l.b16 %v587
        %v1247 = vunpack.c.l.b16 %v588
        %v1248 = vunpack.c.l.b16 %v589
        %v1249 = vunpack.c.l.b16 %v590
        %v1250 = vunpack.c.l.b16 %v591
        %v1251 = vunpack.c.l.b16 %v592
        %v1252 = vunpack.c.l.b16 %v593
        %v1253 = vunpack.c.l.b16 %v594
        %v1254 = vpack.c.b16 %v1239, %v1238
        %v1255 = vpack.c.b16 %v1241, %v1240
        %v1256 = vpack.c.b16 %v1243, %v1242
        %v1257 = vpack.c.b16 %v1245, %v1244
        %v1258 = vpack.c.b16 %v1247, %v1246
        %v1259 = vpack.c.b16 %v1249, %v1248
        %v1260 = vpack.c.b16 %v1251, %v1250
        %v1261 = vpack.c.b16 %v1253, %v1252
        %1270 = vmatprep.subr.bf16.mxu0 0
        %1271 = vmatpush1.bf16.msra.mxu0 %v1261
        %1272 = vmatprep.subr.bf16.mxu0 0
        %1273 = vmatpush1.bf16.msra.mxu0 %v1260
        %1274 = vmatprep.subr.bf16.mxu0 0
        %1275 = vmatpush1.bf16.msra.mxu0 %v1259
        %1276 = vmatprep.subr.bf16.mxu0 0
        %1277 = vmatpush1.bf16.msra.mxu0 %v1258
        %1278 = vmatprep.subr.bf16.mxu0 0
        %1279 = vmatpush1.bf16.msra.mxu0 %v1257
        %1280 = vmatprep.subr.bf16.mxu0 0
        %1281 = vmatpush1.bf16.msra.mxu0 %v1256
        %1282 = vmatprep.subr.bf16.mxu0 0
        %1283 = vmatpush1.bf16.msra.mxu0 %v1255
        %1284 = vmatprep.subr.bf16.mxu0 0
        %1285 = vmatpush1.bf16.msra.mxu0 %v1254
        %1286 = vmatprep.subr.bf16.mxu0 0
        %1287 = vmatpush2.bf16.msra.mxu0 0
        %1288 = vmatprep.subr.bf16.mxu0 0
        %1289 = vmatpush2.bf16.msra.mxu0 0
        %1290 = vmatprep.subr.bf16.mxu0 0
        %1291 = vmatpush2.bf16.msra.mxu0 0
        %1292 = vmatprep.subr.bf16.mxu0 0
        %1293 = vmatpush2.bf16.msra.mxu0 0
        %1294 = vmatprep.subr.bf16.mxu0 0
        %1295 = vmatpush2.bf16.msra.mxu0 0
        %1296 = vmatprep.subr.bf16.mxu0 0
        %1297 = vmatpush2.bf16.msra.mxu0 0
        %1298 = vmatprep.subr.bf16.mxu0 0
        %1299 = vmatpush2.bf16.msra.mxu0 0
        %1300 = vmatprep.subr.bf16.mxu0 0
        %1301 = vmatpush2.bf16.msra.mxu0 0
        %1302 = vmatprep.mubr.bf16.mxu0 0
        %1303 = vmatmul.mubr.bf16.gmra.mxu0 %v1206
        %v1304 = vpop.f32.mrf.mxu0
        %v1305 = vadd.f32 0.0, %v1304
        %v1306 = vpop.f32.mrf.mxu0
        %v1307 = vpop.f32.mrf.mxu0
        %v1308 = vadd.f32 0.0, %v1307
        %v1309 = vpop.f32.mrf.mxu0
        %1310 = vmatprep.mubr.bf16.mxu0 0
        %1311 = vmatmul.mubr.bf16.gmra.mxu0 %v1207
        %v1312 = vpop.f32.mrf.mxu0
        %v1313 = vadd.f32 0.0, %v1312
        %v1314 = vpop.f32.mrf.mxu0
        %v1315 = vpop.f32.mrf.mxu0
        %v1316 = vadd.f32 0.0, %v1315
        %v1317 = vpop.f32.mrf.mxu0
        %1318 = vmatprep.mubr.bf16.mxu0 0
        %1319 = vmatmul.mubr.bf16.gmra.mxu0 %v1208
        %v1320 = vpop.f32.mrf.mxu0
        %v1321 = vadd.f32 0.0, %v1320
        %v1322 = vpop.f32.mrf.mxu0
        %v1323 = vpop.f32.mrf.mxu0
        %v1324 = vadd.f32 0.0, %v1323
        %v1325 = vpop.f32.mrf.mxu0
        %1326 = vmatprep.mubr.bf16.mxu0 0
        %1327 = vmatmul.mubr.bf16.gmra.mxu0 %v1209
        %v1328 = vpop.f32.mrf.mxu0
        %v1329 = vadd.f32 0.0, %v1328
        %v1330 = vpop.f32.mrf.mxu0
        %v1331 = vpop.f32.mrf.mxu0
        %v1332 = vadd.f32 0.0, %v1331
        %v1333 = vpop.f32.mrf.mxu0
        %1334 = vmatprep.mubr.bf16.mxu0 0
        %1335 = vmatmul.mubr.bf16.gmra.mxu0 %v1210
        %v1336 = vpop.f32.mrf.mxu0
        %v1337 = vadd.f32 0.0, %v1336
        %v1338 = vpop.f32.mrf.mxu0
        %v1339 = vpop.f32.mrf.mxu0
        %v1340 = vadd.f32 0.0, %v1339
        %v1341 = vpop.f32.mrf.mxu0
        %1342 = vmatprep.mubr.bf16.mxu0 0
        %1343 = vmatmul.mubr.bf16.gmra.mxu0 %v1211
        %v1344 = vpop.f32.mrf.mxu0
        %v1345 = vadd.f32 0.0, %v1344
        %v1346 = vpop.f32.mrf.mxu0
        %v1347 = vpop.f32.mrf.mxu0
        %v1348 = vadd.f32 0.0, %v1347
        %v1349 = vpop.f32.mrf.mxu0
        %1350 = vmatprep.mubr.bf16.mxu0 0
        %1351 = vmatmul.mubr.bf16.gmra.mxu0 %v1212
        %v1352 = vpop.f32.mrf.mxu0
        %v1353 = vadd.f32 0.0, %v1352
        %v1354 = vpop.f32.mrf.mxu0
        %v1355 = vpop.f32.mrf.mxu0
        %v1356 = vadd.f32 0.0, %v1355
        %v1357 = vpop.f32.mrf.mxu0
        %1358 = vmatprep.mubr.bf16.mxu0 0
        %1359 = vmatmul.mubr.bf16.gmra.mxu0 %v1213
        %v1360 = vpop.f32.mrf.mxu0
        %v1361 = vadd.f32 0.0, %v1360
        %v1362 = vpop.f32.mrf.mxu0
        %v1363 = vpop.f32.mrf.mxu0
        %v1364 = vadd.f32 0.0, %v1363
        %v1365 = vpop.f32.mrf.mxu0
        %1366 = vdwg.mxu0
        %v1367 = vpack.c.bf16 %v729, %v726
        %v1368 = vpack.c.bf16 %v737, %v734
        %v1369 = vpack.c.bf16 %v745, %v742
        %v1370 = vpack.c.bf16 %v753, %v750
        %v1371 = vpack.c.bf16 %v761, %v758
        %v1372 = vpack.c.bf16 %v769, %v766
        %v1373 = vpack.c.bf16 %v777, %v774
        %v1374 = vpack.c.bf16 %v785, %v782
        %v1375 = vpack.c.bf16 %v922, %v919
        %v1376 = vpack.c.bf16 %v930, %v927
        %v1377 = vpack.c.bf16 %v938, %v935
        %v1378 = vpack.c.bf16 %v946, %v943
        %v1379 = vpack.c.bf16 %v954, %v951
        %v1380 = vpack.c.bf16 %v962, %v959
        %v1381 = vpack.c.bf16 %v970, %v967
        %v1382 = vpack.c.bf16 %v978, %v975
        %v1383 = vpack.c.bf16 %v1115, %v1112
        %v1384 = vpack.c.bf16 %v1123, %v1120
        %v1385 = vpack.c.bf16 %v1131, %v1128
        %v1386 = vpack.c.bf16 %v1139, %v1136
        %v1387 = vpack.c.bf16 %v1147, %v1144
        %v1388 = vpack.c.bf16 %v1155, %v1152
        %v1389 = vpack.c.bf16 %v1163, %v1160
        %v1390 = vpack.c.bf16 %v1171, %v1168
        %v1391 = vpack.c.bf16 %v1308, %v1305
        %v1392 = vpack.c.bf16 %v1316, %v1313
        %v1393 = vpack.c.bf16 %v1324, %v1321
        %v1394 = vpack.c.bf16 %v1332, %v1329
        %v1395 = vpack.c.bf16 %v1340, %v1337
        %v1396 = vpack.c.bf16 %v1348, %v1345
        %v1397 = vpack.c.bf16 %v1356, %v1353
        %v1398 = vpack.c.bf16 %v1364, %v1361
        %v1399 = vld [vmem:[#allocation7] sm:$0xf]
        %v1400 = vld [vmem:[#allocation7 + $0x4] sm:$0xf]
        %v1401 = vld [vmem:[#allocation7 + $0x8] sm:$0xf]
        %v1402 = vld [vmem:[#allocation7 + $0xc] sm:$0xf]
        %v1403 = vld [vmem:[#allocation7 + $0x10] sm:$0xf]
        %v1404 = vld [vmem:[#allocation7 + $0x14] sm:$0xf]
        %v1405 = vld [vmem:[#allocation7 + $0x18] sm:$0xf]
        %v1406 = vld [vmem:[#allocation7 + $0x1c] sm:$0xf]
        %v1407 = vld [vmem:[#allocation7 + $0x20] sm:$0xf]
        %v1408 = vld [vmem:[#allocation7 + $0x24] sm:$0xf]
        %v1409 = vld [vmem:[#allocation7 + $0x28] sm:$0xf]
        %v1410 = vld [vmem:[#allocation7 + $0x2c] sm:$0xf]
        %v1411 = vld [vmem:[#allocation7 + $0x30] sm:$0xf]
        %v1412 = vld [vmem:[#allocation7 + $0x34] sm:$0xf]
        %v1413 = vld [vmem:[#allocation7 + $0x38] sm:$0xf]
        %v1414 = vld [vmem:[#allocation7 + $0x3c] sm:$0xf]
        %v1415 = vld [vmem:[%s3] sm:$0x1]
        %v1417 = vlaneseq
        %v1418 = vshrl.u32 %v1417, 7
        %v1419 = vsub.s32 0, %v1418
        %v1420 = vrot.slane %v1415, %v1419
        %v1438 = vunpack.c.l.b16 %v1399
        %v1439 = vunpack.c.l.b16 %v1400
        %v1440 = vunpack.c.l.b16 %v1401
        %v1441 = vunpack.c.l.b16 %v1402
        %v1442 = vunpack.c.l.b16 %v1403
        %v1443 = vunpack.c.l.b16 %v1404
        %v1444 = vunpack.c.l.b16 %v1405
        %v1445 = vunpack.c.l.b16 %v1406
        %v1446 = vunpack.c.l.b16 %v1407
        %v1447 = vunpack.c.l.b16 %v1408
        %v1448 = vunpack.c.l.b16 %v1409
        %v1449 = vunpack.c.l.b16 %v1410
        %v1450 = vunpack.c.l.b16 %v1411
        %v1451 = vunpack.c.l.b16 %v1412
        %v1452 = vunpack.c.l.b16 %v1413
        %v1453 = vunpack.c.l.b16 %v1414
        %v1454 = vpack.c.b16 %v1439, %v1438
        %v1455 = vpack.c.b16 %v1441, %v1440
        %v1456 = vpack.c.b16 %v1443, %v1442
        %v1457 = vpack.c.b16 %v1445, %v1444
        %v1458 = vpack.c.b16 %v1447, %v1446
        %v1459 = vpack.c.b16 %v1449, %v1448
        %v1460 = vpack.c.b16 %v1451, %v1450
        %v1461 = vpack.c.b16 %v1453, %v1452
        %1470 = vmatprep.subr.bf16.mxu0 0
        %1471 = vmatpush1.bf16.msra.mxu0 %v1461
        %1472 = vmatprep.subr.bf16.mxu0 0
        %1473 = vmatpush1.bf16.msra.mxu0 %v1460
        %1474 = vmatprep.subr.bf16.mxu0 0
        %1475 = vmatpush1.bf16.msra.mxu0 %v1459
        %1476 = vmatprep.subr.bf16.mxu0 0
        %1477 = vmatpush1.bf16.msra.mxu0 %v1458
        %1478 = vmatprep.subr.bf16.mxu0 0
        %1479 = vmatpush1.bf16.msra.mxu0 %v1457
        %1480 = vmatprep.subr.bf16.mxu0 0
        %1481 = vmatpush1.bf16.msra.mxu0 %v1456
        %1482 = vmatprep.subr.bf16.mxu0 0
        %1483 = vmatpush1.bf16.msra.mxu0 %v1455
        %1484 = vmatprep.subr.bf16.mxu0 0
        %1485 = vmatpush1.bf16.msra.mxu0 %v1454
        %1486 = vmatprep.subr.bf16.mxu0 0
        %1487 = vmatpush2.bf16.msra.mxu0 0
        %1488 = vmatprep.subr.bf16.mxu0 0
        %1489 = vmatpush2.bf16.msra.mxu0 0
        %1490 = vmatprep.subr.bf16.mxu0 0
        %1491 = vmatpush2.bf16.msra.mxu0 0
        %1492 = vmatprep.subr.bf16.mxu0 0
        %1493 = vmatpush2.bf16.msra.mxu0 0
        %1494 = vmatprep.subr.bf16.mxu0 0
        %1495 = vmatpush2.bf16.msra.mxu0 0
        %1496 = vmatprep.subr.bf16.mxu0 0
        %1497 = vmatpush2.bf16.msra.mxu0 0
        %1498 = vmatprep.subr.bf16.mxu0 0
        %1499 = vmatpush2.bf16.msra.mxu0 0
        %1500 = vmatprep.subr.bf16.mxu0 0
        %1501 = vmatpush2.bf16.msra.mxu0 0
        %1502 = vmatprep.mubr.bf16.mxu0 0
        %1503 = vmatmul.mubr.bf16.gmra.mxu0 %v1367
        %v1504 = vpop.f32.mrf.mxu0
        %v1505 = vadd.f32 %v1420, %v1504
        %v1506 = vpop.f32.mrf.mxu0
        %v1507 = vpop.f32.mrf.mxu0
        %v1508 = vadd.f32 %v1420, %v1507
        %v1509 = vpop.f32.mrf.mxu0
        %1510 = vmatprep.mubr.bf16.mxu0 0
        %1511 = vmatmul.mubr.bf16.gmra.mxu0 %v1368
        %v1512 = vpop.f32.mrf.mxu0
        %v1513 = vadd.f32 %v1420, %v1512
        %v1514 = vpop.f32.mrf.mxu0
        %v1515 = vpop.f32.mrf.mxu0
        %v1516 = vadd.f32 %v1420, %v1515
        %v1517 = vpop.f32.mrf.mxu0
        %1518 = vmatprep.mubr.bf16.mxu0 0
        %1519 = vmatmul.mubr.bf16.gmra.mxu0 %v1369
        %v1520 = vpop.f32.mrf.mxu0
        %v1521 = vadd.f32 %v1420, %v1520
        %v1522 = vpop.f32.mrf.mxu0
        %v1523 = vpop.f32.mrf.mxu0
        %v1524 = vadd.f32 %v1420, %v1523
        %v1525 = vpop.f32.mrf.mxu0
        %1526 = vmatprep.mubr.bf16.mxu0 0
        %1527 = vmatmul.mubr.bf16.gmra.mxu0 %v1370
        %v1528 = vpop.f32.mrf.mxu0
        %v1529 = vadd.f32 %v1420, %v1528
        %v1530 = vpop.f32.mrf.mxu0
        %v1531 = vpop.f32.mrf.mxu0
        %v1532 = vadd.f32 %v1420, %v1531
        %v1533 = vpop.f32.mrf.mxu0
        %1534 = vmatprep.mubr.bf16.mxu0 0
        %1535 = vmatmul.mubr.bf16.gmra.mxu0 %v1371
        %v1536 = vpop.f32.mrf.mxu0
        %v1537 = vadd.f32 %v1420, %v1536
        %v1538 = vpop.f32.mrf.mxu0
        %v1539 = vpop.f32.mrf.mxu0
        %v1540 = vadd.f32 %v1420, %v1539
        %v1541 = vpop.f32.mrf.mxu0
        %1542 = vmatprep.mubr.bf16.mxu0 0
        %1543 = vmatmul.mubr.bf16.gmra.mxu0 %v1372
        %v1544 = vpop.f32.mrf.mxu0
        %v1545 = vadd.f32 %v1420, %v1544
        %v1546 = vpop.f32.mrf.mxu0
        %v1547 = vpop.f32.mrf.mxu0
        %v1548 = vadd.f32 %v1420, %v1547
        %v1549 = vpop.f32.mrf.mxu0
        %1550 = vmatprep.mubr.bf16.mxu0 0
        %1551 = vmatmul.mubr.bf16.gmra.mxu0 %v1373
        %v1552 = vpop.f32.mrf.mxu0
        %v1553 = vadd.f32 %v1420, %v1552
        %v1554 = vpop.f32.mrf.mxu0
        %v1555 = vpop.f32.mrf.mxu0
        %v1556 = vadd.f32 %v1420, %v1555
        %v1557 = vpop.f32.mrf.mxu0
        %1558 = vmatprep.mubr.bf16.mxu0 0
        %1559 = vmatmul.mubr.bf16.gmra.mxu0 %v1374
        %v1560 = vpop.f32.mrf.mxu0
        %v1561 = vadd.f32 %v1420, %v1560
        %v1562 = vpop.f32.mrf.mxu0
        %v1563 = vpop.f32.mrf.mxu0
        %v1564 = vadd.f32 %v1420, %v1563
        %v1565 = vpop.f32.mrf.mxu0
        %1566 = vmatprep.mubr.bf16.mxu0 0
        %1567 = vmatmul.mubr.bf16.gmra.mxu0 %v1375
        %v1568 = vpop.f32.mrf.mxu0
        %v1569 = vadd.f32 %v1420, %v1568
        %v1570 = vpop.f32.mrf.mxu0
        %v1571 = vpop.f32.mrf.mxu0
        %v1572 = vadd.f32 %v1420, %v1571
        %v1573 = vpop.f32.mrf.mxu0
        %1574 = vmatprep.mubr.bf16.mxu0 0
        %1575 = vmatmul.mubr.bf16.gmra.mxu0 %v1376
        %v1576 = vpop.f32.mrf.mxu0
        %v1577 = vadd.f32 %v1420, %v1576
        %v1578 = vpop.f32.mrf.mxu0
        %v1579 = vpop.f32.mrf.mxu0
        %v1580 = vadd.f32 %v1420, %v1579
        %v1581 = vpop.f32.mrf.mxu0
        %1582 = vmatprep.mubr.bf16.mxu0 0
        %1583 = vmatmul.mubr.bf16.gmra.mxu0 %v1377
        %v1584 = vpop.f32.mrf.mxu0
        %v1585 = vadd.f32 %v1420, %v1584
        %v1586 = vpop.f32.mrf.mxu0
        %v1587 = vpop.f32.mrf.mxu0
        %v1588 = vadd.f32 %v1420, %v1587
        %v1589 = vpop.f32.mrf.mxu0
        %1590 = vmatprep.mubr.bf16.mxu0 0
        %1591 = vmatmul.mubr.bf16.gmra.mxu0 %v1378
        %v1592 = vpop.f32.mrf.mxu0
        %v1593 = vadd.f32 %v1420, %v1592
        %v1594 = vpop.f32.mrf.mxu0
        %v1595 = vpop.f32.mrf.mxu0
        %v1596 = vadd.f32 %v1420, %v1595
        %v1597 = vpop.f32.mrf.mxu0
        %1598 = vmatprep.mubr.bf16.mxu0 0
        %1599 = vmatmul.mubr.bf16.gmra.mxu0 %v1379
        %v1600 = vpop.f32.mrf.mxu0
        %v1601 = vadd.f32 %v1420, %v1600
        %v1602 = vpop.f32.mrf.mxu0
        %v1603 = vpop.f32.mrf.mxu0
        %v1604 = vadd.f32 %v1420, %v1603
        %v1605 = vpop.f32.mrf.mxu0
        %1606 = vmatprep.mubr.bf16.mxu0 0
        %1607 = vmatmul.mubr.bf16.gmra.mxu0 %v1380
        %v1608 = vpop.f32.mrf.mxu0
        %v1609 = vadd.f32 %v1420, %v1608
        %v1610 = vpop.f32.mrf.mxu0
        %v1611 = vpop.f32.mrf.mxu0
        %v1612 = vadd.f32 %v1420, %v1611
        %v1613 = vpop.f32.mrf.mxu0
        %1614 = vmatprep.mubr.bf16.mxu0 0
        %1615 = vmatmul.mubr.bf16.gmra.mxu0 %v1381
        %v1616 = vpop.f32.mrf.mxu0
        %v1617 = vadd.f32 %v1420, %v1616
        %v1618 = vpop.f32.mrf.mxu0
        %v1619 = vpop.f32.mrf.mxu0
        %v1620 = vadd.f32 %v1420, %v1619
        %v1621 = vpop.f32.mrf.mxu0
        %1622 = vmatprep.mubr.bf16.mxu0 0
        %1623 = vmatmul.mubr.bf16.gmra.mxu0 %v1382
        %v1624 = vpop.f32.mrf.mxu0
        %v1625 = vadd.f32 %v1420, %v1624
        %v1626 = vpop.f32.mrf.mxu0
        %v1627 = vpop.f32.mrf.mxu0
        %v1628 = vadd.f32 %v1420, %v1627
        %v1629 = vpop.f32.mrf.mxu0
        %1630 = vmatprep.mubr.bf16.mxu0 0
        %1631 = vmatmul.mubr.bf16.gmra.mxu0 %v1383
        %v1632 = vpop.f32.mrf.mxu0
        %v1633 = vadd.f32 %v1420, %v1632
        %v1634 = vpop.f32.mrf.mxu0
        %v1635 = vpop.f32.mrf.mxu0
        %v1636 = vadd.f32 %v1420, %v1635
        %v1637 = vpop.f32.mrf.mxu0
        %1638 = vmatprep.mubr.bf16.mxu0 0
        %1639 = vmatmul.mubr.bf16.gmra.mxu0 %v1384
        %v1640 = vpop.f32.mrf.mxu0
        %v1641 = vadd.f32 %v1420, %v1640
        %v1642 = vpop.f32.mrf.mxu0
        %v1643 = vpop.f32.mrf.mxu0
        %v1644 = vadd.f32 %v1420, %v1643
        %v1645 = vpop.f32.mrf.mxu0
        %1646 = vmatprep.mubr.bf16.mxu0 0
        %1647 = vmatmul.mubr.bf16.gmra.mxu0 %v1385
        %v1648 = vpop.f32.mrf.mxu0
        %v1649 = vadd.f32 %v1420, %v1648
        %v1650 = vpop.f32.mrf.mxu0
        %v1651 = vpop.f32.mrf.mxu0
        %v1652 = vadd.f32 %v1420, %v1651
        %v1653 = vpop.f32.mrf.mxu0
        %1654 = vmatprep.mubr.bf16.mxu0 0
        %1655 = vmatmul.mubr.bf16.gmra.mxu0 %v1386
        %v1656 = vpop.f32.mrf.mxu0
        %v1657 = vadd.f32 %v1420, %v1656
        %v1658 = vpop.f32.mrf.mxu0
        %v1659 = vpop.f32.mrf.mxu0
        %v1660 = vadd.f32 %v1420, %v1659
        %v1661 = vpop.f32.mrf.mxu0
        %1662 = vmatprep.mubr.bf16.mxu0 0
        %1663 = vmatmul.mubr.bf16.gmra.mxu0 %v1387
        %v1664 = vpop.f32.mrf.mxu0
        %v1665 = vadd.f32 %v1420, %v1664
        %v1666 = vpop.f32.mrf.mxu0
        %v1667 = vpop.f32.mrf.mxu0
        %v1668 = vadd.f32 %v1420, %v1667
        %v1669 = vpop.f32.mrf.mxu0
        %1670 = vmatprep.mubr.bf16.mxu0 0
        %1671 = vmatmul.mubr.bf16.gmra.mxu0 %v1388
        %v1672 = vpop.f32.mrf.mxu0
        %v1673 = vadd.f32 %v1420, %v1672
        %v1674 = vpop.f32.mrf.mxu0
        %v1675 = vpop.f32.mrf.mxu0
        %v1676 = vadd.f32 %v1420, %v1675
        %v1677 = vpop.f32.mrf.mxu0
        %1678 = vmatprep.mubr.bf16.mxu0 0
        %1679 = vmatmul.mubr.bf16.gmra.mxu0 %v1389
        %v1680 = vpop.f32.mrf.mxu0
        %v1681 = vadd.f32 %v1420, %v1680
        %v1682 = vpop.f32.mrf.mxu0
        %v1683 = vpop.f32.mrf.mxu0
        %v1684 = vadd.f32 %v1420, %v1683
        %v1685 = vpop.f32.mrf.mxu0
        %1686 = vmatprep.mubr.bf16.mxu0 0
        %1687 = vmatmul.mubr.bf16.gmra.mxu0 %v1390
        %v1688 = vpop.f32.mrf.mxu0
        %v1689 = vadd.f32 %v1420, %v1688
        %v1690 = vpop.f32.mrf.mxu0
        %v1691 = vpop.f32.mrf.mxu0
        %v1692 = vadd.f32 %v1420, %v1691
        %v1693 = vpop.f32.mrf.mxu0
        %1694 = vmatprep.mubr.bf16.mxu0 0
        %1695 = vmatmul.mubr.bf16.gmra.mxu0 %v1391
        %v1696 = vpop.f32.mrf.mxu0
        %v1697 = vadd.f32 %v1420, %v1696
        %v1698 = vpop.f32.mrf.mxu0
        %v1699 = vpop.f32.mrf.mxu0
        %v1700 = vadd.f32 %v1420, %v1699
        %v1701 = vpop.f32.mrf.mxu0
        %1702 = vmatprep.mubr.bf16.mxu0 0
        %1703 = vmatmul.mubr.bf16.gmra.mxu0 %v1392
        %v1704 = vpop.f32.mrf.mxu0
        %v1705 = vadd.f32 %v1420, %v1704
        %v1706 = vpop.f32.mrf.mxu0
        %v1707 = vpop.f32.mrf.mxu0
        %v1708 = vadd.f32 %v1420, %v1707
        %v1709 = vpop.f32.mrf.mxu0
        %1710 = vmatprep.mubr.bf16.mxu0 0
        %1711 = vmatmul.mubr.bf16.gmra.mxu0 %v1393
        %v1712 = vpop.f32.mrf.mxu0
        %v1713 = vadd.f32 %v1420, %v1712
        %v1714 = vpop.f32.mrf.mxu0
        %v1715 = vpop.f32.mrf.mxu0
        %v1716 = vadd.f32 %v1420, %v1715
        %v1717 = vpop.f32.mrf.mxu0
        %1718 = vmatprep.mubr.bf16.mxu0 0
        %1719 = vmatmul.mubr.bf16.gmra.mxu0 %v1394
        %v1720 = vpop.f32.mrf.mxu0
        %v1721 = vadd.f32 %v1420, %v1720
        %v1722 = vpop.f32.mrf.mxu0
        %v1723 = vpop.f32.mrf.mxu0
        %v1724 = vadd.f32 %v1420, %v1723
        %v1725 = vpop.f32.mrf.mxu0
        %1726 = vmatprep.mubr.bf16.mxu0 0
        %1727 = vmatmul.mubr.bf16.gmra.mxu0 %v1395
        %v1728 = vpop.f32.mrf.mxu0
        %v1729 = vadd.f32 %v1420, %v1728
        %v1730 = vpop.f32.mrf.mxu0
        %v1731 = vpop.f32.mrf.mxu0
        %v1732 = vadd.f32 %v1420, %v1731
        %v1733 = vpop.f32.mrf.mxu0
        %1734 = vmatprep.mubr.bf16.mxu0 0
        %1735 = vmatmul.mubr.bf16.gmra.mxu0 %v1396
        %v1736 = vpop.f32.mrf.mxu0
        %v1737 = vadd.f32 %v1420, %v1736
        %v1738 = vpop.f32.mrf.mxu0
        %v1739 = vpop.f32.mrf.mxu0
        %v1740 = vadd.f32 %v1420, %v1739
        %v1741 = vpop.f32.mrf.mxu0
        %1742 = vmatprep.mubr.bf16.mxu0 0
        %1743 = vmatmul.mubr.bf16.gmra.mxu0 %v1397
        %v1744 = vpop.f32.mrf.mxu0
        %v1745 = vadd.f32 %v1420, %v1744
        %v1746 = vpop.f32.mrf.mxu0
        %v1747 = vpop.f32.mrf.mxu0
        %v1748 = vadd.f32 %v1420, %v1747
        %v1749 = vpop.f32.mrf.mxu0
        %1750 = vmatprep.mubr.bf16.mxu0 0
        %1751 = vmatmul.mubr.bf16.gmra.mxu0 %v1398
        %v1752 = vpop.f32.mrf.mxu0
        %v1753 = vadd.f32 %v1420, %v1752
        %v1754 = vpop.f32.mrf.mxu0
        %v1755 = vpop.f32.mrf.mxu0
        %v1756 = vadd.f32 %v1420, %v1755
        %v1757 = vpop.f32.mrf.mxu0
        %1758 = vdwg.mxu0
        %v1759 = vmax.f32 %v1505, 0.0
        %v1760 = vmax.f32 %v1508, 0.0
        %v1761 = vmax.f32 %v1513, 0.0
        %v1762 = vmax.f32 %v1516, 0.0
        %v1763 = vmax.f32 %v1521, 0.0
        %v1764 = vmax.f32 %v1524, 0.0
        %v1765 = vmax.f32 %v1529, 0.0
        %v1766 = vmax.f32 %v1532, 0.0
        %v1767 = vmax.f32 %v1537, 0.0
        %v1768 = vmax.f32 %v1540, 0.0
        %v1769 = vmax.f32 %v1545, 0.0
        %v1770 = vmax.f32 %v1548, 0.0
        %v1771 = vmax.f32 %v1553, 0.0
        %v1772 = vmax.f32 %v1556, 0.0
        %v1773 = vmax.f32 %v1561, 0.0
        %v1774 = vmax.f32 %v1564, 0.0
        %v1775 = vmax.f32 %v1569, 0.0
        %v1776 = vmax.f32 %v1572, 0.0
        %v1777 = vmax.f32 %v1577, 0.0
        %v1778 = vmax.f32 %v1580, 0.0
        %v1779 = vmax.f32 %v1585, 0.0
        %v1780 = vmax.f32 %v1588, 0.0
        %v1781 = vmax.f32 %v1593, 0.0
        %v1782 = vmax.f32 %v1596, 0.0
        %v1783 = vmax.f32 %v1601, 0.0
        %v1784 = vmax.f32 %v1604, 0.0
        %v1785 = vmax.f32 %v1609, 0.0
        %v1786 = vmax.f32 %v1612, 0.0
        %v1787 = vmax.f32 %v1617, 0.0
        %v1788 = vmax.f32 %v1620, 0.0
        %v1789 = vmax.f32 %v1625, 0.0
        %v1790 = vmax.f32 %v1628, 0.0
        %v1791 = vmax.f32 %v1633, 0.0
        %v1792 = vmax.f32 %v1636, 0.0
        %v1793 = vmax.f32 %v1641, 0.0
        %v1794 = vmax.f32 %v1644, 0.0
        %v1795 = vmax.f32 %v1649, 0.0
        %v1796 = vmax.f32 %v1652, 0.0
        %v1797 = vmax.f32 %v1657, 0.0
        %v1798 = vmax.f32 %v1660, 0.0
        %v1799 = vmax.f32 %v1665, 0.0
        %v1800 = vmax.f32 %v1668, 0.0
        %v1801 = vmax.f32 %v1673, 0.0
        %v1802 = vmax.f32 %v1676, 0.0
        %v1803 = vmax.f32 %v1681, 0.0
        %v1804 = vmax.f32 %v1684, 0.0
        %v1805 = vmax.f32 %v1689, 0.0
        %v1806 = vmax.f32 %v1692, 0.0
        %v1807 = vmax.f32 %v1697, 0.0
        %v1808 = vmax.f32 %v1700, 0.0
        %v1809 = vmax.f32 %v1705, 0.0
        %v1810 = vmax.f32 %v1708, 0.0
        %v1811 = vmax.f32 %v1713, 0.0
        %v1812 = vmax.f32 %v1716, 0.0
        %v1813 = vmax.f32 %v1721, 0.0
        %v1814 = vmax.f32 %v1724, 0.0
        %v1815 = vmax.f32 %v1729, 0.0
        %v1816 = vmax.f32 %v1732, 0.0
        %v1817 = vmax.f32 %v1737, 0.0
        %v1818 = vmax.f32 %v1740, 0.0
        %v1819 = vmax.f32 %v1745, 0.0
        %v1820 = vmax.f32 %v1748, 0.0
        %v1821 = vmax.f32 %v1753, 0.0
        %v1822 = vmax.f32 %v1756, 0.0
        %v1823 = vpack.c.bf16 %v1760, %v1759
        %v1824 = vpack.c.bf16 %v1762, %v1761
        %v1825 = vpack.c.bf16 %v1764, %v1763
        %v1826 = vpack.c.bf16 %v1766, %v1765
        %v1827 = vpack.c.bf16 %v1768, %v1767
        %v1828 = vpack.c.bf16 %v1770, %v1769
        %v1829 = vpack.c.bf16 %v1772, %v1771
        %v1830 = vpack.c.bf16 %v1774, %v1773
        %v1831 = vpack.c.bf16 %v1776, %v1775
        %v1832 = vpack.c.bf16 %v1778, %v1777
        %v1833 = vpack.c.bf16 %v1780, %v1779
        %v1834 = vpack.c.bf16 %v1782, %v1781
        %v1835 = vpack.c.bf16 %v1784, %v1783
        %v1836 = vpack.c.bf16 %v1786, %v1785
        %v1837 = vpack.c.bf16 %v1788, %v1787
        %v1838 = vpack.c.bf16 %v1790, %v1789
        %v1839 = vpack.c.bf16 %v1792, %v1791
        %v1840 = vpack.c.bf16 %v1794, %v1793
        %v1841 = vpack.c.bf16 %v1796, %v1795
        %v1842 = vpack.c.bf16 %v1798, %v1797
        %v1843 = vpack.c.bf16 %v1800, %v1799
        %v1844 = vpack.c.bf16 %v1802, %v1801
        %v1845 = vpack.c.bf16 %v1804, %v1803
        %v1846 = vpack.c.bf16 %v1806, %v1805
        %v1847 = vpack.c.bf16 %v1808, %v1807
        %v1848 = vpack.c.bf16 %v1810, %v1809
        %v1849 = vpack.c.bf16 %v1812, %v1811
        %v1850 = vpack.c.bf16 %v1814, %v1813
        %v1851 = vpack.c.bf16 %v1816, %v1815
        %v1852 = vpack.c.bf16 %v1818, %v1817
        %v1853 = vpack.c.bf16 %v1820, %v1819
        %v1854 = vpack.c.bf16 %v1822, %v1821
        %1855 = vmatprep.subr.bf16.mxu0 0
        %1856 = vmatpush1.bf16.msra.mxu0 %v1830
        %1857 = vmatprep.subr.bf16.mxu0 0
        %1858 = vmatpush1.bf16.msra.mxu0 %v1829
        %1859 = vmatprep.subr.bf16.mxu0 0
        %1860 = vmatpush1.bf16.msra.mxu0 %v1828
        %1861 = vmatprep.subr.bf16.mxu0 0
        %1862 = vmatpush1.bf16.msra.mxu0 %v1827
        %1863 = vmatprep.subr.bf16.mxu0 0
        %1864 = vmatpush1.bf16.msra.mxu0 %v1826
        %1865 = vmatprep.subr.bf16.mxu0 0
        %1866 = vmatpush1.bf16.msra.mxu0 %v1825
        %1867 = vmatprep.subr.bf16.mxu0 0
        %1868 = vmatpush1.bf16.msra.mxu0 %v1824
        %1869 = vmatprep.subr.bf16.mxu0 0
        %1870 = vmatpush1.bf16.msra.mxu0 %v1823
        %1871 = vmatprep.subr.bf16.mxu0 0
        %1872 = vmatpush2.bf16.msra.mxu0 0
        %1873 = vmatprep.subr.bf16.mxu0 0
        %1874 = vmatpush2.bf16.msra.mxu0 0
        %1875 = vmatprep.subr.bf16.mxu0 0
        %1876 = vmatpush2.bf16.msra.mxu0 0
        %1877 = vmatprep.subr.bf16.mxu0 0
        %1878 = vmatpush2.bf16.msra.mxu0 0
        %1879 = vmatprep.subr.bf16.mxu0 0
        %1880 = vmatpush2.bf16.msra.mxu0 0
        %1881 = vmatprep.subr.bf16.mxu0 0
        %1882 = vmatpush2.bf16.msra.mxu0 0
        %1883 = vmatprep.subr.bf16.mxu0 0
        %1884 = vmatpush2.bf16.msra.mxu0 0
        %1885 = vmatprep.subr.bf16.mxu0 0
        %1886 = vmatpush2.bf16.msra.mxu0 0
        %1887 = vmatprep.mubr.bf16.mxu0 0
        %1888 = vmatmul.mubr.bf16.gmra.mxu0 %v627
        %v1889 = vpop.f32.mrf.mxu0
        %v1890 = vadd.f32 0.0, %v1889
        %v1891 = vpop.f32.mrf.mxu0
        %v1892 = vpop.f32.mrf.mxu0
        %v1893 = vadd.f32 0.0, %v1892
        %v1894 = vpop.f32.mrf.mxu0
        %1895 = vmatprep.mubr.bf16.mxu0 0
        %1896 = vmatmul.mubr.bf16.gmra.mxu0 %v628
        %v1897 = vpop.f32.mrf.mxu0
        %v1898 = vadd.f32 0.0, %v1897
        %v1899 = vpop.f32.mrf.mxu0
        %v1900 = vpop.f32.mrf.mxu0
        %v1901 = vadd.f32 0.0, %v1900
        %v1902 = vpop.f32.mrf.mxu0
        %1903 = vmatprep.mubr.bf16.mxu0 0
        %1904 = vmatmul.mubr.bf16.gmra.mxu0 %v629
        %v1905 = vpop.f32.mrf.mxu0
        %v1906 = vadd.f32 0.0, %v1905
        %v1907 = vpop.f32.mrf.mxu0
        %v1908 = vpop.f32.mrf.mxu0
        %v1909 = vadd.f32 0.0, %v1908
        %v1910 = vpop.f32.mrf.mxu0
        %1911 = vmatprep.mubr.bf16.mxu0 0
        %1912 = vmatmul.mubr.bf16.gmra.mxu0 %v630
        %v1913 = vpop.f32.mrf.mxu0
        %v1914 = vadd.f32 0.0, %v1913
        %v1915 = vpop.f32.mrf.mxu0
        %v1916 = vpop.f32.mrf.mxu0
        %v1917 = vadd.f32 0.0, %v1916
        %v1918 = vpop.f32.mrf.mxu0
        %1919 = vmatprep.mubr.bf16.mxu0 0
        %1920 = vmatmul.mubr.bf16.gmra.mxu0 %v631
        %v1921 = vpop.f32.mrf.mxu0
        %v1922 = vadd.f32 0.0, %v1921
        %v1923 = vpop.f32.mrf.mxu0
        %v1924 = vpop.f32.mrf.mxu0
        %v1925 = vadd.f32 0.0, %v1924
        %v1926 = vpop.f32.mrf.mxu0
        %1927 = vmatprep.mubr.bf16.mxu0 0
        %1928 = vmatmul.mubr.bf16.gmra.mxu0 %v632
        %v1929 = vpop.f32.mrf.mxu0
        %v1930 = vadd.f32 0.0, %v1929
        %v1931 = vpop.f32.mrf.mxu0
        %v1932 = vpop.f32.mrf.mxu0
        %v1933 = vadd.f32 0.0, %v1932
        %v1934 = vpop.f32.mrf.mxu0
        %1935 = vmatprep.mubr.bf16.mxu0 0
        %1936 = vmatmul.mubr.bf16.gmra.mxu0 %v633
        %v1937 = vpop.f32.mrf.mxu0
        %v1938 = vadd.f32 0.0, %v1937
        %v1939 = vpop.f32.mrf.mxu0
        %v1940 = vpop.f32.mrf.mxu0
        %v1941 = vadd.f32 0.0, %v1940
        %v1942 = vpop.f32.mrf.mxu0
        %1943 = vmatprep.mubr.bf16.mxu0 0
        %1944 = vmatmul.mubr.bf16.gmra.mxu0 %v634
        %v1945 = vpop.f32.mrf.mxu0
        %v1946 = vadd.f32 0.0, %v1945
        %v1947 = vpop.f32.mrf.mxu0
        %v1948 = vpop.f32.mrf.mxu0
        %v1949 = vadd.f32 0.0, %v1948
        %v1950 = vpop.f32.mrf.mxu0
        %1951 = vdwg.mxu0
        %1952 = vmatprep.subr.bf16.mxu0 0
        %1953 = vmatpush1.bf16.msra.mxu0 %v1838
        %1954 = vmatprep.subr.bf16.mxu0 0
        %1955 = vmatpush1.bf16.msra.mxu0 %v1837
        %1956 = vmatprep.subr.bf16.mxu0 0
        %1957 = vmatpush1.bf16.msra.mxu0 %v1836
        %1958 = vmatprep.subr.bf16.mxu0 0
        %1959 = vmatpush1.bf16.msra.mxu0 %v1835
        %1960 = vmatprep.subr.bf16.mxu0 0
        %1961 = vmatpush1.bf16.msra.mxu0 %v1834
        %1962 = vmatprep.subr.bf16.mxu0 0
        %1963 = vmatpush1.bf16.msra.mxu0 %v1833
        %1964 = vmatprep.subr.bf16.mxu0 0
        %1965 = vmatpush1.bf16.msra.mxu0 %v1832
        %1966 = vmatprep.subr.bf16.mxu0 0
        %1967 = vmatpush1.bf16.msra.mxu0 %v1831
        %1968 = vmatprep.subr.bf16.mxu0 0
        %1969 = vmatpush2.bf16.msra.mxu0 0
        %1970 = vmatprep.subr.bf16.mxu0 0
        %1971 = vmatpush2.bf16.msra.mxu0 0
        %1972 = vmatprep.subr.bf16.mxu0 0
        %1973 = vmatpush2.bf16.msra.mxu0 0
        %1974 = vmatprep.subr.bf16.mxu0 0
        %1975 = vmatpush2.bf16.msra.mxu0 0
        %1976 = vmatprep.subr.bf16.mxu0 0
        %1977 = vmatpush2.bf16.msra.mxu0 0
        %1978 = vmatprep.subr.bf16.mxu0 0
        %1979 = vmatpush2.bf16.msra.mxu0 0
        %1980 = vmatprep.subr.bf16.mxu0 0
        %1981 = vmatpush2.bf16.msra.mxu0 0
        %1982 = vmatprep.subr.bf16.mxu0 0
        %1983 = vmatpush2.bf16.msra.mxu0 0
        %1984 = vmatprep.mubr.bf16.mxu0 0
        %1985 = vmatmul.mubr.bf16.gmra.mxu0 %v820
        %v1986 = vpop.f32.mrf.mxu0
        %v1987 = vadd.f32 0.0, %v1986
        %v1988 = vpop.f32.mrf.mxu0
        %v1989 = vpop.f32.mrf.mxu0
        %v1990 = vadd.f32 0.0, %v1989
        %v1991 = vpop.f32.mrf.mxu0
        %1992 = vmatprep.mubr.bf16.mxu0 0
        %1993 = vmatmul.mubr.bf16.gmra.mxu0 %v821
        %v1994 = vpop.f32.mrf.mxu0
        %v1995 = vadd.f32 0.0, %v1994
        %v1996 = vpop.f32.mrf.mxu0
        %v1997 = vpop.f32.mrf.mxu0
        %v1998 = vadd.f32 0.0, %v1997
        %v1999 = vpop.f32.mrf.mxu0
        %2000 = vmatprep.mubr.bf16.mxu0 0
        %2001 = vmatmul.mubr.bf16.gmra.mxu0 %v822
        %v2002 = vpop.f32.mrf.mxu0
        %v2003 = vadd.f32 0.0, %v2002
        %v2004 = vpop.f32.mrf.mxu0
        %v2005 = vpop.f32.mrf.mxu0
        %v2006 = vadd.f32 0.0, %v2005
        %v2007 = vpop.f32.mrf.mxu0
        %2008 = vmatprep.mubr.bf16.mxu0 0
        %2009 = vmatmul.mubr.bf16.gmra.mxu0 %v823
        %v2010 = vpop.f32.mrf.mxu0
        %v2011 = vadd.f32 0.0, %v2010
        %v2012 = vpop.f32.mrf.mxu0
        %v2013 = vpop.f32.mrf.mxu0
        %v2014 = vadd.f32 0.0, %v2013
        %v2015 = vpop.f32.mrf.mxu0
        %2016 = vmatprep.mubr.bf16.mxu0 0
        %2017 = vmatmul.mubr.bf16.gmra.mxu0 %v824
        %v2018 = vpop.f32.mrf.mxu0
        %v2019 = vadd.f32 0.0, %v2018
        %v2020 = vpop.f32.mrf.mxu0
        %v2021 = vpop.f32.mrf.mxu0
        %v2022 = vadd.f32 0.0, %v2021
        %v2023 = vpop.f32.mrf.mxu0
        %2024 = vmatprep.mubr.bf16.mxu0 0
        %2025 = vmatmul.mubr.bf16.gmra.mxu0 %v825
        %v2026 = vpop.f32.mrf.mxu0
        %v2027 = vadd.f32 0.0, %v2026
        %v2028 = vpop.f32.mrf.mxu0
        %v2029 = vpop.f32.mrf.mxu0
        %v2030 = vadd.f32 0.0, %v2029
        %v2031 = vpop.f32.mrf.mxu0
        %2032 = vmatprep.mubr.bf16.mxu0 0
        %2033 = vmatmul.mubr.bf16.gmra.mxu0 %v826
        %v2034 = vpop.f32.mrf.mxu0
        %v2035 = vadd.f32 0.0, %v2034
        %v2036 = vpop.f32.mrf.mxu0
        %v2037 = vpop.f32.mrf.mxu0
        %v2038 = vadd.f32 0.0, %v2037
        %v2039 = vpop.f32.mrf.mxu0
        %2040 = vmatprep.mubr.bf16.mxu0 0
        %2041 = vmatmul.mubr.bf16.gmra.mxu0 %v827
        %v2042 = vpop.f32.mrf.mxu0
        %v2043 = vadd.f32 0.0, %v2042
        %v2044 = vpop.f32.mrf.mxu0
        %v2045 = vpop.f32.mrf.mxu0
        %v2046 = vadd.f32 0.0, %v2045
        %v2047 = vpop.f32.mrf.mxu0
        %2048 = vdwg.mxu0
        %2049 = vmatprep.subr.bf16.mxu0 0
        %2050 = vmatpush1.bf16.msra.mxu0 %v1846
        %2051 = vmatprep.subr.bf16.mxu0 0
        %2052 = vmatpush1.bf16.msra.mxu0 %v1845
        %2053 = vmatprep.subr.bf16.mxu0 0
        %2054 = vmatpush1.bf16.msra.mxu0 %v1844
        %2055 = vmatprep.subr.bf16.mxu0 0
        %2056 = vmatpush1.bf16.msra.mxu0 %v1843
        %2057 = vmatprep.subr.bf16.mxu0 0
        %2058 = vmatpush1.bf16.msra.mxu0 %v1842
        %2059 = vmatprep.subr.bf16.mxu0 0
        %2060 = vmatpush1.bf16.msra.mxu0 %v1841
        %2061 = vmatprep.subr.bf16.mxu0 0
        %2062 = vmatpush1.bf16.msra.mxu0 %v1840
        %2063 = vmatprep.subr.bf16.mxu0 0
        %2064 = vmatpush1.bf16.msra.mxu0 %v1839
        %2065 = vmatprep.subr.bf16.mxu0 0
        %2066 = vmatpush2.bf16.msra.mxu0 0
        %2067 = vmatprep.subr.bf16.mxu0 0
        %2068 = vmatpush2.bf16.msra.mxu0 0
        %2069 = vmatprep.subr.bf16.mxu0 0
        %2070 = vmatpush2.bf16.msra.mxu0 0
        %2071 = vmatprep.subr.bf16.mxu0 0
        %2072 = vmatpush2.bf16.msra.mxu0 0
        %2073 = vmatprep.subr.bf16.mxu0 0
        %2074 = vmatpush2.bf16.msra.mxu0 0
        %2075 = vmatprep.subr.bf16.mxu0 0
        %2076 = vmatpush2.bf16.msra.mxu0 0
        %2077 = vmatprep.subr.bf16.mxu0 0
        %2078 = vmatpush2.bf16.msra.mxu0 0
        %2079 = vmatprep.subr.bf16.mxu0 0
        %2080 = vmatpush2.bf16.msra.mxu0 0
        %2081 = vmatprep.mubr.bf16.mxu0 0
        %2082 = vmatmul.mubr.bf16.gmra.mxu0 %v1013
        %v2083 = vpop.f32.mrf.mxu0
        %v2084 = vadd.f32 0.0, %v2083
        %v2085 = vpop.f32.mrf.mxu0
        %v2086 = vpop.f32.mrf.mxu0
        %v2087 = vadd.f32 0.0, %v2086
        %v2088 = vpop.f32.mrf.mxu0
        %2089 = vmatprep.mubr.bf16.mxu0 0
        %2090 = vmatmul.mubr.bf16.gmra.mxu0 %v1014
        %v2091 = vpop.f32.mrf.mxu0
        %v2092 = vadd.f32 0.0, %v2091
        %v2093 = vpop.f32.mrf.mxu0
        %v2094 = vpop.f32.mrf.mxu0
        %v2095 = vadd.f32 0.0, %v2094
        %v2096 = vpop.f32.mrf.mxu0
        %2097 = vmatprep.mubr.bf16.mxu0 0
        %2098 = vmatmul.mubr.bf16.gmra.mxu0 %v1015
        %v2099 = vpop.f32.mrf.mxu0
        %v2100 = vadd.f32 0.0, %v2099
        %v2101 = vpop.f32.mrf.mxu0
        %v2102 = vpop.f32.mrf.mxu0
        %v2103 = vadd.f32 0.0, %v2102
        %v2104 = vpop.f32.mrf.mxu0
        %2105 = vmatprep.mubr.bf16.mxu0 0
        %2106 = vmatmul.mubr.bf16.gmra.mxu0 %v1016
        %v2107 = vpop.f32.mrf.mxu0
        %v2108 = vadd.f32 0.0, %v2107
        %v2109 = vpop.f32.mrf.mxu0
        %v2110 = vpop.f32.mrf.mxu0
        %v2111 = vadd.f32 0.0, %v2110
        %v2112 = vpop.f32.mrf.mxu0
        %2113 = vmatprep.mubr.bf16.mxu0 0
        %2114 = vmatmul.mubr.bf16.gmra.mxu0 %v1017
        %v2115 = vpop.f32.mrf.mxu0
        %v2116 = vadd.f32 0.0, %v2115
        %v2117 = vpop.f32.mrf.mxu0
        %v2118 = vpop.f32.mrf.mxu0
        %v2119 = vadd.f32 0.0, %v2118
        %v2120 = vpop.f32.mrf.mxu0
        %2121 = vmatprep.mubr.bf16.mxu0 0
        %2122 = vmatmul.mubr.bf16.gmra.mxu0 %v1018
        %v2123 = vpop.f32.mrf.mxu0
        %v2124 = vadd.f32 0.0, %v2123
        %v2125 = vpop.f32.mrf.mxu0
        %v2126 = vpop.f32.mrf.mxu0
        %v2127 = vadd.f32 0.0, %v2126
        %v2128 = vpop.f32.mrf.mxu0
        %2129 = vmatprep.mubr.bf16.mxu0 0
        %2130 = vmatmul.mubr.bf16.gmra.mxu0 %v1019
        %v2131 = vpop.f32.mrf.mxu0
        %v2132 = vadd.f32 0.0, %v2131
        %v2133 = vpop.f32.mrf.mxu0
        %v2134 = vpop.f32.mrf.mxu0
        %v2135 = vadd.f32 0.0, %v2134
        %v2136 = vpop.f32.mrf.mxu0
        %2137 = vmatprep.mubr.bf16.mxu0 0
        %2138 = vmatmul.mubr.bf16.gmra.mxu0 %v1020
        %v2139 = vpop.f32.mrf.mxu0
        %v2140 = vadd.f32 0.0, %v2139
        %v2141 = vpop.f32.mrf.mxu0
        %v2142 = vpop.f32.mrf.mxu0
        %v2143 = vadd.f32 0.0, %v2142
        %v2144 = vpop.f32.mrf.mxu0
        %2145 = vdwg.mxu0
        %2146 = vmatprep.subr.bf16.mxu0 0
        %2147 = vmatpush1.bf16.msra.mxu0 %v1854
        %2148 = vmatprep.subr.bf16.mxu0 0
        %2149 = vmatpush1.bf16.msra.mxu0 %v1853
        %2150 = vmatprep.subr.bf16.mxu0 0
        %2151 = vmatpush1.bf16.msra.mxu0 %v1852
        %2152 = vmatprep.subr.bf16.mxu0 0
        %2153 = vmatpush1.bf16.msra.mxu0 %v1851
        %2154 = vmatprep.subr.bf16.mxu0 0
        %2155 = vmatpush1.bf16.msra.mxu0 %v1850
        %2156 = vmatprep.subr.bf16.mxu0 0
        %2157 = vmatpush1.bf16.msra.mxu0 %v1849
        %2158 = vmatprep.subr.bf16.mxu0 0
        %2159 = vmatpush1.bf16.msra.mxu0 %v1848
        %2160 = vmatprep.subr.bf16.mxu0 0
        %2161 = vmatpush1.bf16.msra.mxu0 %v1847
        %2162 = vmatprep.subr.bf16.mxu0 0
        %2163 = vmatpush2.bf16.msra.mxu0 0
        %2164 = vmatprep.subr.bf16.mxu0 0
        %2165 = vmatpush2.bf16.msra.mxu0 0
        %2166 = vmatprep.subr.bf16.mxu0 0
        %2167 = vmatpush2.bf16.msra.mxu0 0
        %2168 = vmatprep.subr.bf16.mxu0 0
        %2169 = vmatpush2.bf16.msra.mxu0 0
        %2170 = vmatprep.subr.bf16.mxu0 0
        %2171 = vmatpush2.bf16.msra.mxu0 0
        %2172 = vmatprep.subr.bf16.mxu0 0
        %2173 = vmatpush2.bf16.msra.mxu0 0
        %2174 = vmatprep.subr.bf16.mxu0 0
        %2175 = vmatpush2.bf16.msra.mxu0 0
        %2176 = vmatprep.subr.bf16.mxu0 0
        %2177 = vmatpush2.bf16.msra.mxu0 0
        %2178 = vmatprep.mubr.bf16.mxu0 0
        %2179 = vmatmul.mubr.bf16.gmra.mxu0 %v1206
        %v2180 = vpop.f32.mrf.mxu0
        %v2181 = vadd.f32 0.0, %v2180
        %v2182 = vpop.f32.mrf.mxu0
        %v2183 = vpop.f32.mrf.mxu0
        %v2184 = vadd.f32 0.0, %v2183
        %v2185 = vpop.f32.mrf.mxu0
        %2186 = vmatprep.mubr.bf16.mxu0 0
        %2187 = vmatmul.mubr.bf16.gmra.mxu0 %v1207
        %v2188 = vpop.f32.mrf.mxu0
        %v2189 = vadd.f32 0.0, %v2188
        %v2190 = vpop.f32.mrf.mxu0
        %v2191 = vpop.f32.mrf.mxu0
        %v2192 = vadd.f32 0.0, %v2191
        %v2193 = vpop.f32.mrf.mxu0
        %2194 = vmatprep.mubr.bf16.mxu0 0
        %2195 = vmatmul.mubr.bf16.gmra.mxu0 %v1208
        %v2196 = vpop.f32.mrf.mxu0
        %v2197 = vadd.f32 0.0, %v2196
        %v2198 = vpop.f32.mrf.mxu0
        %v2199 = vpop.f32.mrf.mxu0
        %v2200 = vadd.f32 0.0, %v2199
        %v2201 = vpop.f32.mrf.mxu0
        %2202 = vmatprep.mubr.bf16.mxu0 0
        %2203 = vmatmul.mubr.bf16.gmra.mxu0 %v1209
        %v2204 = vpop.f32.mrf.mxu0
        %v2205 = vadd.f32 0.0, %v2204
        %v2206 = vpop.f32.mrf.mxu0
        %v2207 = vpop.f32.mrf.mxu0
        %v2208 = vadd.f32 0.0, %v2207
        %v2209 = vpop.f32.mrf.mxu0
        %2210 = vmatprep.mubr.bf16.mxu0 0
        %2211 = vmatmul.mubr.bf16.gmra.mxu0 %v1210
        %v2212 = vpop.f32.mrf.mxu0
        %v2213 = vadd.f32 0.0, %v2212
        %v2214 = vpop.f32.mrf.mxu0
        %v2215 = vpop.f32.mrf.mxu0
        %v2216 = vadd.f32 0.0, %v2215
        %v2217 = vpop.f32.mrf.mxu0
        %2218 = vmatprep.mubr.bf16.mxu0 0
        %2219 = vmatmul.mubr.bf16.gmra.mxu0 %v1211
        %v2220 = vpop.f32.mrf.mxu0
        %v2221 = vadd.f32 0.0, %v2220
        %v2222 = vpop.f32.mrf.mxu0
        %v2223 = vpop.f32.mrf.mxu0
        %v2224 = vadd.f32 0.0, %v2223
        %v2225 = vpop.f32.mrf.mxu0
        %2226 = vmatprep.mubr.bf16.mxu0 0
        %2227 = vmatmul.mubr.bf16.gmra.mxu0 %v1212
        %v2228 = vpop.f32.mrf.mxu0
        %v2229 = vadd.f32 0.0, %v2228
        %v2230 = vpop.f32.mrf.mxu0
        %v2231 = vpop.f32.mrf.mxu0
        %v2232 = vadd.f32 0.0, %v2231
        %v2233 = vpop.f32.mrf.mxu0
        %2234 = vmatprep.mubr.bf16.mxu0 0
        %2235 = vmatmul.mubr.bf16.gmra.mxu0 %v1213
        %v2236 = vpop.f32.mrf.mxu0
        %v2237 = vadd.f32 0.0, %v2236
        %v2238 = vpop.f32.mrf.mxu0
        %v2239 = vpop.f32.mrf.mxu0
        %v2240 = vadd.f32 0.0, %v2239
        %v2241 = vpop.f32.mrf.mxu0
        %2242 = vdwg.mxu0
        %v2243 = vpack.c.bf16 %v1893, %v1890
        %v2244 = vpack.c.bf16 %v1901, %v1898
        %v2245 = vpack.c.bf16 %v1909, %v1906
        %v2246 = vpack.c.bf16 %v1917, %v1914
        %v2247 = vpack.c.bf16 %v1925, %v1922
        %v2248 = vpack.c.bf16 %v1933, %v1930
        %v2249 = vpack.c.bf16 %v1941, %v1938
        %v2250 = vpack.c.bf16 %v1949, %v1946
        %v2251 = vpack.c.bf16 %v1990, %v1987
        %v2252 = vpack.c.bf16 %v1998, %v1995
        %v2253 = vpack.c.bf16 %v2006, %v2003
        %v2254 = vpack.c.bf16 %v2014, %v2011
        %v2255 = vpack.c.bf16 %v2022, %v2019
        %v2256 = vpack.c.bf16 %v2030, %v2027
        %v2257 = vpack.c.bf16 %v2038, %v2035
        %v2258 = vpack.c.bf16 %v2046, %v2043
        %v2259 = vpack.c.bf16 %v2087, %v2084
        %v2260 = vpack.c.bf16 %v2095, %v2092
        %v2261 = vpack.c.bf16 %v2103, %v2100
        %v2262 = vpack.c.bf16 %v2111, %v2108
        %v2263 = vpack.c.bf16 %v2119, %v2116
        %v2264 = vpack.c.bf16 %v2127, %v2124
        %v2265 = vpack.c.bf16 %v2135, %v2132
        %v2266 = vpack.c.bf16 %v2143, %v2140
        %v2267 = vpack.c.bf16 %v2184, %v2181
        %v2268 = vpack.c.bf16 %v2192, %v2189
        %v2269 = vpack.c.bf16 %v2200, %v2197
        %v2270 = vpack.c.bf16 %v2208, %v2205
        %v2271 = vpack.c.bf16 %v2216, %v2213
        %v2272 = vpack.c.bf16 %v2224, %v2221
        %v2273 = vpack.c.bf16 %v2232, %v2229
        %v2274 = vpack.c.bf16 %v2240, %v2237
        %v2275 = vld [vmem:[#allocation8] sm:$0xf]
        %v2276 = vld [vmem:[#allocation8 + $0x4] sm:$0xf]
        %v2277 = vld [vmem:[#allocation8 + $0x8] sm:$0xf]
        %v2278 = vld [vmem:[#allocation8 + $0xc] sm:$0xf]
        %v2279 = vld [vmem:[#allocation8 + $0x10] sm:$0xf]
        %v2280 = vld [vmem:[#allocation8 + $0x14] sm:$0xf]
        %v2281 = vld [vmem:[#allocation8 + $0x18] sm:$0xf]
        %v2282 = vld [vmem:[#allocation8 + $0x1c] sm:$0xf]
        %v2283 = vld [vmem:[#allocation8 + $0x20] sm:$0xf]
        %v2284 = vld [vmem:[#allocation8 + $0x24] sm:$0xf]
        %v2285 = vld [vmem:[#allocation8 + $0x28] sm:$0xf]
        %v2286 = vld [vmem:[#allocation8 + $0x2c] sm:$0xf]
        %v2287 = vld [vmem:[#allocation8 + $0x30] sm:$0xf]
        %v2288 = vld [vmem:[#allocation8 + $0x34] sm:$0xf]
        %v2289 = vld [vmem:[#allocation8 + $0x38] sm:$0xf]
        %v2290 = vld [vmem:[#allocation8 + $0x3c] sm:$0xf]
        %v2291 = vld [vmem:[%s5] sm:$0x1]
        %v2293 = vlaneseq
        %v2294 = vshrl.u32 %v2293, 7
        %v2295 = vsub.s32 0, %v2294
        %v2296 = vrot.slane %v2291, %v2295
        %v2314 = vunpack.c.l.b16 %v2275
        %v2315 = vunpack.c.l.b16 %v2276
        %v2316 = vunpack.c.l.b16 %v2277
        %v2317 = vunpack.c.l.b16 %v2278
        %v2318 = vunpack.c.l.b16 %v2279
        %v2319 = vunpack.c.l.b16 %v2280
        %v2320 = vunpack.c.l.b16 %v2281
        %v2321 = vunpack.c.l.b16 %v2282
        %v2322 = vunpack.c.l.b16 %v2283
        %v2323 = vunpack.c.l.b16 %v2284
        %v2324 = vunpack.c.l.b16 %v2285
        %v2325 = vunpack.c.l.b16 %v2286
        %v2326 = vunpack.c.l.b16 %v2287
        %v2327 = vunpack.c.l.b16 %v2288
        %v2328 = vunpack.c.l.b16 %v2289
        %v2329 = vunpack.c.l.b16 %v2290
        %v2330 = vpack.c.b16 %v2315, %v2314
        %v2331 = vpack.c.b16 %v2317, %v2316
        %v2332 = vpack.c.b16 %v2319, %v2318
        %v2333 = vpack.c.b16 %v2321, %v2320
        %v2334 = vpack.c.b16 %v2323, %v2322
        %v2335 = vpack.c.b16 %v2325, %v2324
        %v2336 = vpack.c.b16 %v2327, %v2326
        %v2337 = vpack.c.b16 %v2329, %v2328
        %2346 = vmatprep.subr.bf16.mxu0 0
        %2347 = vmatpush1.bf16.msra.mxu0 %v2337
        %2348 = vmatprep.subr.bf16.mxu0 0
        %2349 = vmatpush1.bf16.msra.mxu0 %v2336
        %2350 = vmatprep.subr.bf16.mxu0 0
        %2351 = vmatpush1.bf16.msra.mxu0 %v2335
        %2352 = vmatprep.subr.bf16.mxu0 0
        %2353 = vmatpush1.bf16.msra.mxu0 %v2334
        %2354 = vmatprep.subr.bf16.mxu0 0
        %2355 = vmatpush1.bf16.msra.mxu0 %v2333
        %2356 = vmatprep.subr.bf16.mxu0 0
        %2357 = vmatpush1.bf16.msra.mxu0 %v2332
        %2358 = vmatprep.subr.bf16.mxu0 0
        %2359 = vmatpush1.bf16.msra.mxu0 %v2331
        %2360 = vmatprep.subr.bf16.mxu0 0
        %2361 = vmatpush1.bf16.msra.mxu0 %v2330
        %2362 = vmatprep.subr.bf16.mxu0 0
        %2363 = vmatpush2.bf16.msra.mxu0 0
        %2364 = vmatprep.subr.bf16.mxu0 0
        %2365 = vmatpush2.bf16.msra.mxu0 0
        %2366 = vmatprep.subr.bf16.mxu0 0
        %2367 = vmatpush2.bf16.msra.mxu0 0
        %2368 = vmatprep.subr.bf16.mxu0 0
        %2369 = vmatpush2.bf16.msra.mxu0 0
        %2370 = vmatprep.subr.bf16.mxu0 0
        %2371 = vmatpush2.bf16.msra.mxu0 0
        %2372 = vmatprep.subr.bf16.mxu0 0
        %2373 = vmatpush2.bf16.msra.mxu0 0
        %2374 = vmatprep.subr.bf16.mxu0 0
        %2375 = vmatpush2.bf16.msra.mxu0 0
        %2376 = vmatprep.subr.bf16.mxu0 0
        %2377 = vmatpush2.bf16.msra.mxu0 0
        %2378 = vmatprep.mubr.bf16.mxu0 0
        %2379 = vmatmul.mubr.bf16.gmra.mxu0 %v2243
        %v2380 = vpop.f32.mrf.mxu0
        %v2381 = vadd.f32 %v2296, %v2380
        %v2382 = vpop.f32.mrf.mxu0
        %v2383 = vpop.f32.mrf.mxu0
        %v2384 = vadd.f32 %v2296, %v2383
        %v2385 = vpop.f32.mrf.mxu0
        %2386 = vmatprep.mubr.bf16.mxu0 0
        %2387 = vmatmul.mubr.bf16.gmra.mxu0 %v2244
        %v2388 = vpop.f32.mrf.mxu0
        %v2389 = vadd.f32 %v2296, %v2388
        %v2390 = vpop.f32.mrf.mxu0
        %v2391 = vpop.f32.mrf.mxu0
        %v2392 = vadd.f32 %v2296, %v2391
        %v2393 = vpop.f32.mrf.mxu0
        %2394 = vmatprep.mubr.bf16.mxu0 0
        %2395 = vmatmul.mubr.bf16.gmra.mxu0 %v2245
        %v2396 = vpop.f32.mrf.mxu0
        %v2397 = vadd.f32 %v2296, %v2396
        %v2398 = vpop.f32.mrf.mxu0
        %v2399 = vpop.f32.mrf.mxu0
        %v2400 = vadd.f32 %v2296, %v2399
        %v2401 = vpop.f32.mrf.mxu0
        %2402 = vmatprep.mubr.bf16.mxu0 0
        %2403 = vmatmul.mubr.bf16.gmra.mxu0 %v2246
        %v2404 = vpop.f32.mrf.mxu0
        %v2405 = vadd.f32 %v2296, %v2404
        %v2406 = vpop.f32.mrf.mxu0
        %v2407 = vpop.f32.mrf.mxu0
        %v2408 = vadd.f32 %v2296, %v2407
        %v2409 = vpop.f32.mrf.mxu0
        %2410 = vmatprep.mubr.bf16.mxu0 0
        %2411 = vmatmul.mubr.bf16.gmra.mxu0 %v2247
        %v2412 = vpop.f32.mrf.mxu0
        %v2413 = vadd.f32 %v2296, %v2412
        %v2414 = vpop.f32.mrf.mxu0
        %v2415 = vpop.f32.mrf.mxu0
        %v2416 = vadd.f32 %v2296, %v2415
        %v2417 = vpop.f32.mrf.mxu0
        %2418 = vmatprep.mubr.bf16.mxu0 0
        %2419 = vmatmul.mubr.bf16.gmra.mxu0 %v2248
        %v2420 = vpop.f32.mrf.mxu0
        %v2421 = vadd.f32 %v2296, %v2420
        %v2422 = vpop.f32.mrf.mxu0
        %v2423 = vpop.f32.mrf.mxu0
        %v2424 = vadd.f32 %v2296, %v2423
        %v2425 = vpop.f32.mrf.mxu0
        %2426 = vmatprep.mubr.bf16.mxu0 0
        %2427 = vmatmul.mubr.bf16.gmra.mxu0 %v2249
        %v2428 = vpop.f32.mrf.mxu0
        %v2429 = vadd.f32 %v2296, %v2428
        %v2430 = vpop.f32.mrf.mxu0
        %v2431 = vpop.f32.mrf.mxu0
        %v2432 = vadd.f32 %v2296, %v2431
        %v2433 = vpop.f32.mrf.mxu0
        %2434 = vmatprep.mubr.bf16.mxu0 0
        %2435 = vmatmul.mubr.bf16.gmra.mxu0 %v2250
        %v2436 = vpop.f32.mrf.mxu0
        %v2437 = vadd.f32 %v2296, %v2436
        %v2438 = vpop.f32.mrf.mxu0
        %v2439 = vpop.f32.mrf.mxu0
        %v2440 = vadd.f32 %v2296, %v2439
        %v2441 = vpop.f32.mrf.mxu0
        %2442 = vmatprep.mubr.bf16.mxu0 0
        %2443 = vmatmul.mubr.bf16.gmra.mxu0 %v2251
        %v2444 = vpop.f32.mrf.mxu0
        %v2445 = vadd.f32 %v2296, %v2444
        %v2446 = vpop.f32.mrf.mxu0
        %v2447 = vpop.f32.mrf.mxu0
        %v2448 = vadd.f32 %v2296, %v2447
        %v2449 = vpop.f32.mrf.mxu0
        %2450 = vmatprep.mubr.bf16.mxu0 0
        %2451 = vmatmul.mubr.bf16.gmra.mxu0 %v2252
        %v2452 = vpop.f32.mrf.mxu0
        %v2453 = vadd.f32 %v2296, %v2452
        %v2454 = vpop.f32.mrf.mxu0
        %v2455 = vpop.f32.mrf.mxu0
        %v2456 = vadd.f32 %v2296, %v2455
        %v2457 = vpop.f32.mrf.mxu0
        %2458 = vmatprep.mubr.bf16.mxu0 0
        %2459 = vmatmul.mubr.bf16.gmra.mxu0 %v2253
        %v2460 = vpop.f32.mrf.mxu0
        %v2461 = vadd.f32 %v2296, %v2460
        %v2462 = vpop.f32.mrf.mxu0
        %v2463 = vpop.f32.mrf.mxu0
        %v2464 = vadd.f32 %v2296, %v2463
        %v2465 = vpop.f32.mrf.mxu0
        %2466 = vmatprep.mubr.bf16.mxu0 0
        %2467 = vmatmul.mubr.bf16.gmra.mxu0 %v2254
        %v2468 = vpop.f32.mrf.mxu0
        %v2469 = vadd.f32 %v2296, %v2468
        %v2470 = vpop.f32.mrf.mxu0
        %v2471 = vpop.f32.mrf.mxu0
        %v2472 = vadd.f32 %v2296, %v2471
        %v2473 = vpop.f32.mrf.mxu0
        %2474 = vmatprep.mubr.bf16.mxu0 0
        %2475 = vmatmul.mubr.bf16.gmra.mxu0 %v2255
        %v2476 = vpop.f32.mrf.mxu0
        %v2477 = vadd.f32 %v2296, %v2476
        %v2478 = vpop.f32.mrf.mxu0
        %v2479 = vpop.f32.mrf.mxu0
        %v2480 = vadd.f32 %v2296, %v2479
        %v2481 = vpop.f32.mrf.mxu0
        %2482 = vmatprep.mubr.bf16.mxu0 0
        %2483 = vmatmul.mubr.bf16.gmra.mxu0 %v2256
        %v2484 = vpop.f32.mrf.mxu0
        %v2485 = vadd.f32 %v2296, %v2484
        %v2486 = vpop.f32.mrf.mxu0
        %v2487 = vpop.f32.mrf.mxu0
        %v2488 = vadd.f32 %v2296, %v2487
        %v2489 = vpop.f32.mrf.mxu0
        %2490 = vmatprep.mubr.bf16.mxu0 0
        %2491 = vmatmul.mubr.bf16.gmra.mxu0 %v2257
        %v2492 = vpop.f32.mrf.mxu0
        %v2493 = vadd.f32 %v2296, %v2492
        %v2494 = vpop.f32.mrf.mxu0
        %v2495 = vpop.f32.mrf.mxu0
        %v2496 = vadd.f32 %v2296, %v2495
        %v2497 = vpop.f32.mrf.mxu0
        %2498 = vmatprep.mubr.bf16.mxu0 0
        %2499 = vmatmul.mubr.bf16.gmra.mxu0 %v2258
        %v2500 = vpop.f32.mrf.mxu0
        %v2501 = vadd.f32 %v2296, %v2500
        %v2502 = vpop.f32.mrf.mxu0
        %v2503 = vpop.f32.mrf.mxu0
        %v2504 = vadd.f32 %v2296, %v2503
        %v2505 = vpop.f32.mrf.mxu0
        %2506 = vmatprep.mubr.bf16.mxu0 0
        %2507 = vmatmul.mubr.bf16.gmra.mxu0 %v2259
        %v2508 = vpop.f32.mrf.mxu0
        %v2509 = vadd.f32 %v2296, %v2508
        %v2510 = vpop.f32.mrf.mxu0
        %v2511 = vpop.f32.mrf.mxu0
        %v2512 = vadd.f32 %v2296, %v2511
        %v2513 = vpop.f32.mrf.mxu0
        %2514 = vmatprep.mubr.bf16.mxu0 0
        %2515 = vmatmul.mubr.bf16.gmra.mxu0 %v2260
        %v2516 = vpop.f32.mrf.mxu0
        %v2517 = vadd.f32 %v2296, %v2516
        %v2518 = vpop.f32.mrf.mxu0
        %v2519 = vpop.f32.mrf.mxu0
        %v2520 = vadd.f32 %v2296, %v2519
        %v2521 = vpop.f32.mrf.mxu0
        %2522 = vmatprep.mubr.bf16.mxu0 0
        %2523 = vmatmul.mubr.bf16.gmra.mxu0 %v2261
        %v2524 = vpop.f32.mrf.mxu0
        %v2525 = vadd.f32 %v2296, %v2524
        %v2526 = vpop.f32.mrf.mxu0
        %v2527 = vpop.f32.mrf.mxu0
        %v2528 = vadd.f32 %v2296, %v2527
        %v2529 = vpop.f32.mrf.mxu0
        %2530 = vmatprep.mubr.bf16.mxu0 0
        %2531 = vmatmul.mubr.bf16.gmra.mxu0 %v2262
        %v2532 = vpop.f32.mrf.mxu0
        %v2533 = vadd.f32 %v2296, %v2532
        %v2534 = vpop.f32.mrf.mxu0
        %v2535 = vpop.f32.mrf.mxu0
        %v2536 = vadd.f32 %v2296, %v2535
        %v2537 = vpop.f32.mrf.mxu0
        %2538 = vmatprep.mubr.bf16.mxu0 0
        %2539 = vmatmul.mubr.bf16.gmra.mxu0 %v2263
        %v2540 = vpop.f32.mrf.mxu0
        %v2541 = vadd.f32 %v2296, %v2540
        %v2542 = vpop.f32.mrf.mxu0
        %v2543 = vpop.f32.mrf.mxu0
        %v2544 = vadd.f32 %v2296, %v2543
        %v2545 = vpop.f32.mrf.mxu0
        %2546 = vmatprep.mubr.bf16.mxu0 0
        %2547 = vmatmul.mubr.bf16.gmra.mxu0 %v2264
        %v2548 = vpop.f32.mrf.mxu0
        %v2549 = vadd.f32 %v2296, %v2548
        %v2550 = vpop.f32.mrf.mxu0
        %v2551 = vpop.f32.mrf.mxu0
        %v2552 = vadd.f32 %v2296, %v2551
        %v2553 = vpop.f32.mrf.mxu0
        %2554 = vmatprep.mubr.bf16.mxu0 0
        %2555 = vmatmul.mubr.bf16.gmra.mxu0 %v2265
        %v2556 = vpop.f32.mrf.mxu0
        %v2557 = vadd.f32 %v2296, %v2556
        %v2558 = vpop.f32.mrf.mxu0
        %v2559 = vpop.f32.mrf.mxu0
        %v2560 = vadd.f32 %v2296, %v2559
        %v2561 = vpop.f32.mrf.mxu0
        %2562 = vmatprep.mubr.bf16.mxu0 0
        %2563 = vmatmul.mubr.bf16.gmra.mxu0 %v2266
        %v2564 = vpop.f32.mrf.mxu0
        %v2565 = vadd.f32 %v2296, %v2564
        %v2566 = vpop.f32.mrf.mxu0
        %v2567 = vpop.f32.mrf.mxu0
        %v2568 = vadd.f32 %v2296, %v2567
        %v2569 = vpop.f32.mrf.mxu0
        %2570 = vmatprep.mubr.bf16.mxu0 0
        %2571 = vmatmul.mubr.bf16.gmra.mxu0 %v2267
        %v2572 = vpop.f32.mrf.mxu0
        %v2573 = vadd.f32 %v2296, %v2572
        %v2574 = vpop.f32.mrf.mxu0
        %v2575 = vpop.f32.mrf.mxu0
        %v2576 = vadd.f32 %v2296, %v2575
        %v2577 = vpop.f32.mrf.mxu0
        %2578 = vmatprep.mubr.bf16.mxu0 0
        %2579 = vmatmul.mubr.bf16.gmra.mxu0 %v2268
        %v2580 = vpop.f32.mrf.mxu0
        %v2581 = vadd.f32 %v2296, %v2580
        %v2582 = vpop.f32.mrf.mxu0
        %v2583 = vpop.f32.mrf.mxu0
        %v2584 = vadd.f32 %v2296, %v2583
        %v2585 = vpop.f32.mrf.mxu0
        %2586 = vmatprep.mubr.bf16.mxu0 0
        %2587 = vmatmul.mubr.bf16.gmra.mxu0 %v2269
        %v2588 = vpop.f32.mrf.mxu0
        %v2589 = vadd.f32 %v2296, %v2588
        %v2590 = vpop.f32.mrf.mxu0
        %v2591 = vpop.f32.mrf.mxu0
        %v2592 = vadd.f32 %v2296, %v2591
        %v2593 = vpop.f32.mrf.mxu0
        %2594 = vmatprep.mubr.bf16.mxu0 0
        %2595 = vmatmul.mubr.bf16.gmra.mxu0 %v2270
        %v2596 = vpop.f32.mrf.mxu0
        %v2597 = vadd.f32 %v2296, %v2596
        %v2598 = vpop.f32.mrf.mxu0
        %v2599 = vpop.f32.mrf.mxu0
        %v2600 = vadd.f32 %v2296, %v2599
        %v2601 = vpop.f32.mrf.mxu0
        %2602 = vmatprep.mubr.bf16.mxu0 0
        %2603 = vmatmul.mubr.bf16.gmra.mxu0 %v2271
        %v2604 = vpop.f32.mrf.mxu0
        %v2605 = vadd.f32 %v2296, %v2604
        %v2606 = vpop.f32.mrf.mxu0
        %v2607 = vpop.f32.mrf.mxu0
        %v2608 = vadd.f32 %v2296, %v2607
        %v2609 = vpop.f32.mrf.mxu0
        %2610 = vmatprep.mubr.bf16.mxu0 0
        %2611 = vmatmul.mubr.bf16.gmra.mxu0 %v2272
        %v2612 = vpop.f32.mrf.mxu0
        %v2613 = vadd.f32 %v2296, %v2612
        %v2614 = vpop.f32.mrf.mxu0
        %v2615 = vpop.f32.mrf.mxu0
        %v2616 = vadd.f32 %v2296, %v2615
        %v2617 = vpop.f32.mrf.mxu0
        %2618 = vmatprep.mubr.bf16.mxu0 0
        %2619 = vmatmul.mubr.bf16.gmra.mxu0 %v2273
        %v2620 = vpop.f32.mrf.mxu0
        %v2621 = vadd.f32 %v2296, %v2620
        %v2622 = vpop.f32.mrf.mxu0
        %v2623 = vpop.f32.mrf.mxu0
        %v2624 = vadd.f32 %v2296, %v2623
        %v2625 = vpop.f32.mrf.mxu0
        %2626 = vmatprep.mubr.bf16.mxu0 0
        %2627 = vmatmul.mubr.bf16.gmra.mxu0 %v2274
        %v2628 = vpop.f32.mrf.mxu0
        %v2629 = vadd.f32 %v2296, %v2628
        %v2630 = vpop.f32.mrf.mxu0
        %v2631 = vpop.f32.mrf.mxu0
        %v2632 = vadd.f32 %v2296, %v2631
        %v2633 = vpop.f32.mrf.mxu0
        %2634 = vdwg.mxu0
        %v2635 = vmax.f32 %v2381, 0.0
        %v2636 = vmax.f32 %v2384, 0.0
        %v2637 = vmax.f32 %v2389, 0.0
        %v2638 = vmax.f32 %v2392, 0.0
        %v2639 = vmax.f32 %v2397, 0.0
        %v2640 = vmax.f32 %v2400, 0.0
        %v2641 = vmax.f32 %v2405, 0.0
        %v2642 = vmax.f32 %v2408, 0.0
        %v2643 = vmax.f32 %v2413, 0.0
        %v2644 = vmax.f32 %v2416, 0.0
        %v2645 = vmax.f32 %v2421, 0.0
        %v2646 = vmax.f32 %v2424, 0.0
        %v2647 = vmax.f32 %v2429, 0.0
        %v2648 = vmax.f32 %v2432, 0.0
        %v2649 = vmax.f32 %v2437, 0.0
        %v2650 = vmax.f32 %v2440, 0.0
        %v2651 = vmax.f32 %v2445, 0.0
        %v2652 = vmax.f32 %v2448, 0.0
        %v2653 = vmax.f32 %v2453, 0.0
        %v2654 = vmax.f32 %v2456, 0.0
        %v2655 = vmax.f32 %v2461, 0.0
        %v2656 = vmax.f32 %v2464, 0.0
        %v2657 = vmax.f32 %v2469, 0.0
        %v2658 = vmax.f32 %v2472, 0.0
        %v2659 = vmax.f32 %v2477, 0.0
        %v2660 = vmax.f32 %v2480, 0.0
        %v2661 = vmax.f32 %v2485, 0.0
        %v2662 = vmax.f32 %v2488, 0.0
        %v2663 = vmax.f32 %v2493, 0.0
        %v2664 = vmax.f32 %v2496, 0.0
        %v2665 = vmax.f32 %v2501, 0.0
        %v2666 = vmax.f32 %v2504, 0.0
        %v2667 = vmax.f32 %v2509, 0.0
        %v2668 = vmax.f32 %v2512, 0.0
        %v2669 = vmax.f32 %v2517, 0.0
        %v2670 = vmax.f32 %v2520, 0.0
        %v2671 = vmax.f32 %v2525, 0.0
        %v2672 = vmax.f32 %v2528, 0.0
        %v2673 = vmax.f32 %v2533, 0.0
        %v2674 = vmax.f32 %v2536, 0.0
        %v2675 = vmax.f32 %v2541, 0.0
        %v2676 = vmax.f32 %v2544, 0.0
        %v2677 = vmax.f32 %v2549, 0.0
        %v2678 = vmax.f32 %v2552, 0.0
        %v2679 = vmax.f32 %v2557, 0.0
        %v2680 = vmax.f32 %v2560, 0.0
        %v2681 = vmax.f32 %v2565, 0.0
        %v2682 = vmax.f32 %v2568, 0.0
        %v2683 = vmax.f32 %v2573, 0.0
        %v2684 = vmax.f32 %v2576, 0.0
        %v2685 = vmax.f32 %v2581, 0.0
        %v2686 = vmax.f32 %v2584, 0.0
        %v2687 = vmax.f32 %v2589, 0.0
        %v2688 = vmax.f32 %v2592, 0.0
        %v2689 = vmax.f32 %v2597, 0.0
        %v2690 = vmax.f32 %v2600, 0.0
        %v2691 = vmax.f32 %v2605, 0.0
        %v2692 = vmax.f32 %v2608, 0.0
        %v2693 = vmax.f32 %v2613, 0.0
        %v2694 = vmax.f32 %v2616, 0.0
        %v2695 = vmax.f32 %v2621, 0.0
        %v2696 = vmax.f32 %v2624, 0.0
        %v2697 = vmax.f32 %v2629, 0.0
        %v2698 = vmax.f32 %v2632, 0.0
        %v2699 = vpack.c.bf16 %v2636, %v2635
        %v2700 = vpack.c.bf16 %v2638, %v2637
        %v2701 = vpack.c.bf16 %v2640, %v2639
        %v2702 = vpack.c.bf16 %v2642, %v2641
        %v2703 = vpack.c.bf16 %v2644, %v2643
        %v2704 = vpack.c.bf16 %v2646, %v2645
        %v2705 = vpack.c.bf16 %v2648, %v2647
        %v2706 = vpack.c.bf16 %v2650, %v2649
        %v2707 = vpack.c.bf16 %v2652, %v2651
        %v2708 = vpack.c.bf16 %v2654, %v2653
        %v2709 = vpack.c.bf16 %v2656, %v2655
        %v2710 = vpack.c.bf16 %v2658, %v2657
        %v2711 = vpack.c.bf16 %v2660, %v2659
        %v2712 = vpack.c.bf16 %v2662, %v2661
        %v2713 = vpack.c.bf16 %v2664, %v2663
        %v2714 = vpack.c.bf16 %v2666, %v2665
        %v2715 = vpack.c.bf16 %v2668, %v2667
        %v2716 = vpack.c.bf16 %v2670, %v2669
        %v2717 = vpack.c.bf16 %v2672, %v2671
        %v2718 = vpack.c.bf16 %v2674, %v2673
        %v2719 = vpack.c.bf16 %v2676, %v2675
        %v2720 = vpack.c.bf16 %v2678, %v2677
        %v2721 = vpack.c.bf16 %v2680, %v2679
        %v2722 = vpack.c.bf16 %v2682, %v2681
        %v2723 = vpack.c.bf16 %v2684, %v2683
        %v2724 = vpack.c.bf16 %v2686, %v2685
        %v2725 = vpack.c.bf16 %v2688, %v2687
        %v2726 = vpack.c.bf16 %v2690, %v2689
        %v2727 = vpack.c.bf16 %v2692, %v2691
        %v2728 = vpack.c.bf16 %v2694, %v2693
        %v2729 = vpack.c.bf16 %v2696, %v2695
        %v2730 = vpack.c.bf16 %v2698, %v2697
        %2731 = vmatprep.subr.bf16.mxu0 0
        %2732 = vmatpush1.bf16.msra.mxu0 %v2706
        %2733 = vmatprep.subr.bf16.mxu0 0
        %2734 = vmatpush1.bf16.msra.mxu0 %v2705
        %2735 = vmatprep.subr.bf16.mxu0 0
        %2736 = vmatpush1.bf16.msra.mxu0 %v2704
        %2737 = vmatprep.subr.bf16.mxu0 0
        %2738 = vmatpush1.bf16.msra.mxu0 %v2703
        %2739 = vmatprep.subr.bf16.mxu0 0
        %2740 = vmatpush1.bf16.msra.mxu0 %v2702
        %2741 = vmatprep.subr.bf16.mxu0 0
        %2742 = vmatpush1.bf16.msra.mxu0 %v2701
        %2743 = vmatprep.subr.bf16.mxu0 0
        %2744 = vmatpush1.bf16.msra.mxu0 %v2700
        %2745 = vmatprep.subr.bf16.mxu0 0
        %2746 = vmatpush1.bf16.msra.mxu0 %v2699
        %2747 = vmatprep.subr.bf16.mxu0 0
        %2748 = vmatpush2.bf16.msra.mxu0 0
        %2749 = vmatprep.subr.bf16.mxu0 0
        %2750 = vmatpush2.bf16.msra.mxu0 0
        %2751 = vmatprep.subr.bf16.mxu0 0
        %2752 = vmatpush2.bf16.msra.mxu0 0
        %2753 = vmatprep.subr.bf16.mxu0 0
        %2754 = vmatpush2.bf16.msra.mxu0 0
        %2755 = vmatprep.subr.bf16.mxu0 0
        %2756 = vmatpush2.bf16.msra.mxu0 0
        %2757 = vmatprep.subr.bf16.mxu0 0
        %2758 = vmatpush2.bf16.msra.mxu0 0
        %2759 = vmatprep.subr.bf16.mxu0 0
        %2760 = vmatpush2.bf16.msra.mxu0 0
        %2761 = vmatprep.subr.bf16.mxu0 0
        %2762 = vmatpush2.bf16.msra.mxu0 0
        %2763 = vmatprep.mubr.bf16.mxu0 0
        %2764 = vmatmul.mubr.bf16.gmra.mxu0 %v627
        %v2765 = vpop.f32.mrf.mxu0
        %v2766 = vadd.f32 0.0, %v2765
        %v2767 = vpop.f32.mrf.mxu0
        %v2768 = vpop.f32.mrf.mxu0
        %v2769 = vadd.f32 0.0, %v2768
        %v2770 = vpop.f32.mrf.mxu0
        %2771 = vmatprep.mubr.bf16.mxu0 0
        %2772 = vmatmul.mubr.bf16.gmra.mxu0 %v628
        %v2773 = vpop.f32.mrf.mxu0
        %v2774 = vadd.f32 0.0, %v2773
        %v2775 = vpop.f32.mrf.mxu0
        %v2776 = vpop.f32.mrf.mxu0
        %v2777 = vadd.f32 0.0, %v2776
        %v2778 = vpop.f32.mrf.mxu0
        %2779 = vmatprep.mubr.bf16.mxu0 0
        %2780 = vmatmul.mubr.bf16.gmra.mxu0 %v629
        %v2781 = vpop.f32.mrf.mxu0
        %v2782 = vadd.f32 0.0, %v2781
        %v2783 = vpop.f32.mrf.mxu0
        %v2784 = vpop.f32.mrf.mxu0
        %v2785 = vadd.f32 0.0, %v2784
        %v2786 = vpop.f32.mrf.mxu0
        %2787 = vmatprep.mubr.bf16.mxu0 0
        %2788 = vmatmul.mubr.bf16.gmra.mxu0 %v630
        %v2789 = vpop.f32.mrf.mxu0
        %v2790 = vadd.f32 0.0, %v2789
        %v2791 = vpop.f32.mrf.mxu0
        %v2792 = vpop.f32.mrf.mxu0
        %v2793 = vadd.f32 0.0, %v2792
        %v2794 = vpop.f32.mrf.mxu0
        %2795 = vmatprep.mubr.bf16.mxu0 0
        %2796 = vmatmul.mubr.bf16.gmra.mxu0 %v631
        %v2797 = vpop.f32.mrf.mxu0
        %v2798 = vadd.f32 0.0, %v2797
        %v2799 = vpop.f32.mrf.mxu0
        %v2800 = vpop.f32.mrf.mxu0
        %v2801 = vadd.f32 0.0, %v2800
        %v2802 = vpop.f32.mrf.mxu0
        %2803 = vmatprep.mubr.bf16.mxu0 0
        %2804 = vmatmul.mubr.bf16.gmra.mxu0 %v632
        %v2805 = vpop.f32.mrf.mxu0
        %v2806 = vadd.f32 0.0, %v2805
        %v2807 = vpop.f32.mrf.mxu0
        %v2808 = vpop.f32.mrf.mxu0
        %v2809 = vadd.f32 0.0, %v2808
        %v2810 = vpop.f32.mrf.mxu0
        %2811 = vmatprep.mubr.bf16.mxu0 0
        %2812 = vmatmul.mubr.bf16.gmra.mxu0 %v633
        %v2813 = vpop.f32.mrf.mxu0
        %v2814 = vadd.f32 0.0, %v2813
        %v2815 = vpop.f32.mrf.mxu0
        %v2816 = vpop.f32.mrf.mxu0
        %v2817 = vadd.f32 0.0, %v2816
        %v2818 = vpop.f32.mrf.mxu0
        %2819 = vmatprep.mubr.bf16.mxu0 0
        %2820 = vmatmul.mubr.bf16.gmra.mxu0 %v634
        %v2821 = vpop.f32.mrf.mxu0
        %v2822 = vadd.f32 0.0, %v2821
        %v2823 = vpop.f32.mrf.mxu0
        %v2824 = vpop.f32.mrf.mxu0
        %v2825 = vadd.f32 0.0, %v2824
        %v2826 = vpop.f32.mrf.mxu0
        %2827 = vdwg.mxu0
        %2828 = vmatprep.subr.bf16.mxu0 0
        %2829 = vmatpush1.bf16.msra.mxu0 %v2714
        %2830 = vmatprep.subr.bf16.mxu0 0
        %2831 = vmatpush1.bf16.msra.mxu0 %v2713
        %2832 = vmatprep.subr.bf16.mxu0 0
        %2833 = vmatpush1.bf16.msra.mxu0 %v2712
        %2834 = vmatprep.subr.bf16.mxu0 0
        %2835 = vmatpush1.bf16.msra.mxu0 %v2711
        %2836 = vmatprep.subr.bf16.mxu0 0
        %2837 = vmatpush1.bf16.msra.mxu0 %v2710
        %2838 = vmatprep.subr.bf16.mxu0 0
        %2839 = vmatpush1.bf16.msra.mxu0 %v2709
        %2840 = vmatprep.subr.bf16.mxu0 0
        %2841 = vmatpush1.bf16.msra.mxu0 %v2708
        %2842 = vmatprep.subr.bf16.mxu0 0
        %2843 = vmatpush1.bf16.msra.mxu0 %v2707
        %2844 = vmatprep.subr.bf16.mxu0 0
        %2845 = vmatpush2.bf16.msra.mxu0 0
        %2846 = vmatprep.subr.bf16.mxu0 0
        %2847 = vmatpush2.bf16.msra.mxu0 0
        %2848 = vmatprep.subr.bf16.mxu0 0
        %2849 = vmatpush2.bf16.msra.mxu0 0
        %2850 = vmatprep.subr.bf16.mxu0 0
        %2851 = vmatpush2.bf16.msra.mxu0 0
        %2852 = vmatprep.subr.bf16.mxu0 0
        %2853 = vmatpush2.bf16.msra.mxu0 0
        %2854 = vmatprep.subr.bf16.mxu0 0
        %2855 = vmatpush2.bf16.msra.mxu0 0
        %2856 = vmatprep.subr.bf16.mxu0 0
        %2857 = vmatpush2.bf16.msra.mxu0 0
        %2858 = vmatprep.subr.bf16.mxu0 0
        %2859 = vmatpush2.bf16.msra.mxu0 0
        %2860 = vmatprep.mubr.bf16.mxu0 0
        %2861 = vmatmul.mubr.bf16.gmra.mxu0 %v820
        %v2862 = vpop.f32.mrf.mxu0
        %v2863 = vadd.f32 0.0, %v2862
        %v2864 = vpop.f32.mrf.mxu0
        %v2865 = vpop.f32.mrf.mxu0
        %v2866 = vadd.f32 0.0, %v2865
        %v2867 = vpop.f32.mrf.mxu0
        %2868 = vmatprep.mubr.bf16.mxu0 0
        %2869 = vmatmul.mubr.bf16.gmra.mxu0 %v821
        %v2870 = vpop.f32.mrf.mxu0
        %v2871 = vadd.f32 0.0, %v2870
        %v2872 = vpop.f32.mrf.mxu0
        %v2873 = vpop.f32.mrf.mxu0
        %v2874 = vadd.f32 0.0, %v2873
        %v2875 = vpop.f32.mrf.mxu0
        %2876 = vmatprep.mubr.bf16.mxu0 0
        %2877 = vmatmul.mubr.bf16.gmra.mxu0 %v822
        %v2878 = vpop.f32.mrf.mxu0
        %v2879 = vadd.f32 0.0, %v2878
        %v2880 = vpop.f32.mrf.mxu0
        %v2881 = vpop.f32.mrf.mxu0
        %v2882 = vadd.f32 0.0, %v2881
        %v2883 = vpop.f32.mrf.mxu0
        %2884 = vmatprep.mubr.bf16.mxu0 0
        %2885 = vmatmul.mubr.bf16.gmra.mxu0 %v823
        %v2886 = vpop.f32.mrf.mxu0
        %v2887 = vadd.f32 0.0, %v2886
        %v2888 = vpop.f32.mrf.mxu0
        %v2889 = vpop.f32.mrf.mxu0
        %v2890 = vadd.f32 0.0, %v2889
        %v2891 = vpop.f32.mrf.mxu0
        %2892 = vmatprep.mubr.bf16.mxu0 0
        %2893 = vmatmul.mubr.bf16.gmra.mxu0 %v824
        %v2894 = vpop.f32.mrf.mxu0
        %v2895 = vadd.f32 0.0, %v2894
        %v2896 = vpop.f32.mrf.mxu0
        %v2897 = vpop.f32.mrf.mxu0
        %v2898 = vadd.f32 0.0, %v2897
        %v2899 = vpop.f32.mrf.mxu0
        %2900 = vmatprep.mubr.bf16.mxu0 0
        %2901 = vmatmul.mubr.bf16.gmra.mxu0 %v825
        %v2902 = vpop.f32.mrf.mxu0
        %v2903 = vadd.f32 0.0, %v2902
        %v2904 = vpop.f32.mrf.mxu0
        %v2905 = vpop.f32.mrf.mxu0
        %v2906 = vadd.f32 0.0, %v2905
        %v2907 = vpop.f32.mrf.mxu0
        %2908 = vmatprep.mubr.bf16.mxu0 0
        %2909 = vmatmul.mubr.bf16.gmra.mxu0 %v826
        %v2910 = vpop.f32.mrf.mxu0
        %v2911 = vadd.f32 0.0, %v2910
        %v2912 = vpop.f32.mrf.mxu0
        %v2913 = vpop.f32.mrf.mxu0
        %v2914 = vadd.f32 0.0, %v2913
        %v2915 = vpop.f32.mrf.mxu0
        %2916 = vmatprep.mubr.bf16.mxu0 0
        %2917 = vmatmul.mubr.bf16.gmra.mxu0 %v827
        %v2918 = vpop.f32.mrf.mxu0
        %v2919 = vadd.f32 0.0, %v2918
        %v2920 = vpop.f32.mrf.mxu0
        %v2921 = vpop.f32.mrf.mxu0
        %v2922 = vadd.f32 0.0, %v2921
        %v2923 = vpop.f32.mrf.mxu0
        %2924 = vdwg.mxu0
        %2925 = vmatprep.subr.bf16.mxu0 0
        %2926 = vmatpush1.bf16.msra.mxu0 %v2722
        %2927 = vmatprep.subr.bf16.mxu0 0
        %2928 = vmatpush1.bf16.msra.mxu0 %v2721
        %2929 = vmatprep.subr.bf16.mxu0 0
        %2930 = vmatpush1.bf16.msra.mxu0 %v2720
        %2931 = vmatprep.subr.bf16.mxu0 0
        %2932 = vmatpush1.bf16.msra.mxu0 %v2719
        %2933 = vmatprep.subr.bf16.mxu0 0
        %2934 = vmatpush1.bf16.msra.mxu0 %v2718
        %2935 = vmatprep.subr.bf16.mxu0 0
        %2936 = vmatpush1.bf16.msra.mxu0 %v2717
        %2937 = vmatprep.subr.bf16.mxu0 0
        %2938 = vmatpush1.bf16.msra.mxu0 %v2716
        %2939 = vmatprep.subr.bf16.mxu0 0
        %2940 = vmatpush1.bf16.msra.mxu0 %v2715
        %2941 = vmatprep.subr.bf16.mxu0 0
        %2942 = vmatpush2.bf16.msra.mxu0 0
        %2943 = vmatprep.subr.bf16.mxu0 0
        %2944 = vmatpush2.bf16.msra.mxu0 0
        %2945 = vmatprep.subr.bf16.mxu0 0
        %2946 = vmatpush2.bf16.msra.mxu0 0
        %2947 = vmatprep.subr.bf16.mxu0 0
        %2948 = vmatpush2.bf16.msra.mxu0 0
        %2949 = vmatprep.subr.bf16.mxu0 0
        %2950 = vmatpush2.bf16.msra.mxu0 0
        %2951 = vmatprep.subr.bf16.mxu0 0
        %2952 = vmatpush2.bf16.msra.mxu0 0
        %2953 = vmatprep.subr.bf16.mxu0 0
        %2954 = vmatpush2.bf16.msra.mxu0 0
        %2955 = vmatprep.subr.bf16.mxu0 0
        %2956 = vmatpush2.bf16.msra.mxu0 0
        %2957 = vmatprep.mubr.bf16.mxu0 0
        %2958 = vmatmul.mubr.bf16.gmra.mxu0 %v1013
        %v2959 = vpop.f32.mrf.mxu0
        %v2960 = vadd.f32 0.0, %v2959
        %v2961 = vpop.f32.mrf.mxu0
        %v2962 = vpop.f32.mrf.mxu0
        %v2963 = vadd.f32 0.0, %v2962
        %v2964 = vpop.f32.mrf.mxu0
        %2965 = vmatprep.mubr.bf16.mxu0 0
        %2966 = vmatmul.mubr.bf16.gmra.mxu0 %v1014
        %v2967 = vpop.f32.mrf.mxu0
        %v2968 = vadd.f32 0.0, %v2967
        %v2969 = vpop.f32.mrf.mxu0
        %v2970 = vpop.f32.mrf.mxu0
        %v2971 = vadd.f32 0.0, %v2970
        %v2972 = vpop.f32.mrf.mxu0
        %2973 = vmatprep.mubr.bf16.mxu0 0
        %2974 = vmatmul.mubr.bf16.gmra.mxu0 %v1015
        %v2975 = vpop.f32.mrf.mxu0
        %v2976 = vadd.f32 0.0, %v2975
        %v2977 = vpop.f32.mrf.mxu0
        %v2978 = vpop.f32.mrf.mxu0
        %v2979 = vadd.f32 0.0, %v2978
        %v2980 = vpop.f32.mrf.mxu0
        %2981 = vmatprep.mubr.bf16.mxu0 0
        %2982 = vmatmul.mubr.bf16.gmra.mxu0 %v1016
        %v2983 = vpop.f32.mrf.mxu0
        %v2984 = vadd.f32 0.0, %v2983
        %v2985 = vpop.f32.mrf.mxu0
        %v2986 = vpop.f32.mrf.mxu0
        %v2987 = vadd.f32 0.0, %v2986
        %v2988 = vpop.f32.mrf.mxu0
        %2989 = vmatprep.mubr.bf16.mxu0 0
        %2990 = vmatmul.mubr.bf16.gmra.mxu0 %v1017
        %v2991 = vpop.f32.mrf.mxu0
        %v2992 = vadd.f32 0.0, %v2991
        %v2993 = vpop.f32.mrf.mxu0
        %v2994 = vpop.f32.mrf.mxu0
        %v2995 = vadd.f32 0.0, %v2994
        %v2996 = vpop.f32.mrf.mxu0
        %2997 = vmatprep.mubr.bf16.mxu0 0
        %2998 = vmatmul.mubr.bf16.gmra.mxu0 %v1018
        %v2999 = vpop.f32.mrf.mxu0
        %v3000 = vadd.f32 0.0, %v2999
        %v3001 = vpop.f32.mrf.mxu0
        %v3002 = vpop.f32.mrf.mxu0
        %v3003 = vadd.f32 0.0, %v3002
        %v3004 = vpop.f32.mrf.mxu0
        %3005 = vmatprep.mubr.bf16.mxu0 0
        %3006 = vmatmul.mubr.bf16.gmra.mxu0 %v1019
        %v3007 = vpop.f32.mrf.mxu0
        %v3008 = vadd.f32 0.0, %v3007
        %v3009 = vpop.f32.mrf.mxu0
        %v3010 = vpop.f32.mrf.mxu0
        %v3011 = vadd.f32 0.0, %v3010
        %v3012 = vpop.f32.mrf.mxu0
        %3013 = vmatprep.mubr.bf16.mxu0 0
        %3014 = vmatmul.mubr.bf16.gmra.mxu0 %v1020
        %v3015 = vpop.f32.mrf.mxu0
        %v3016 = vadd.f32 0.0, %v3015
        %v3017 = vpop.f32.mrf.mxu0
        %v3018 = vpop.f32.mrf.mxu0
        %v3019 = vadd.f32 0.0, %v3018
        %v3020 = vpop.f32.mrf.mxu0
        %3021 = vdwg.mxu0
        %3022 = vmatprep.subr.bf16.mxu0 0
        %3023 = vmatpush1.bf16.msra.mxu0 %v2730
        %3024 = vmatprep.subr.bf16.mxu0 0
        %3025 = vmatpush1.bf16.msra.mxu0 %v2729
        %3026 = vmatprep.subr.bf16.mxu0 0
        %3027 = vmatpush1.bf16.msra.mxu0 %v2728
        %3028 = vmatprep.subr.bf16.mxu0 0
        %3029 = vmatpush1.bf16.msra.mxu0 %v2727
        %3030 = vmatprep.subr.bf16.mxu0 0
        %3031 = vmatpush1.bf16.msra.mxu0 %v2726
        %3032 = vmatprep.subr.bf16.mxu0 0
        %3033 = vmatpush1.bf16.msra.mxu0 %v2725
        %3034 = vmatprep.subr.bf16.mxu0 0
        %3035 = vmatpush1.bf16.msra.mxu0 %v2724
        %3036 = vmatprep.subr.bf16.mxu0 0
        %3037 = vmatpush1.bf16.msra.mxu0 %v2723
        %3038 = vmatprep.subr.bf16.mxu0 0
        %3039 = vmatpush2.bf16.msra.mxu0 0
        %3040 = vmatprep.subr.bf16.mxu0 0
        %3041 = vmatpush2.bf16.msra.mxu0 0
        %3042 = vmatprep.subr.bf16.mxu0 0
        %3043 = vmatpush2.bf16.msra.mxu0 0
        %3044 = vmatprep.subr.bf16.mxu0 0
        %3045 = vmatpush2.bf16.msra.mxu0 0
        %3046 = vmatprep.subr.bf16.mxu0 0
        %3047 = vmatpush2.bf16.msra.mxu0 0
        %3048 = vmatprep.subr.bf16.mxu0 0
        %3049 = vmatpush2.bf16.msra.mxu0 0
        %3050 = vmatprep.subr.bf16.mxu0 0
        %3051 = vmatpush2.bf16.msra.mxu0 0
        %3052 = vmatprep.subr.bf16.mxu0 0
        %3053 = vmatpush2.bf16.msra.mxu0 0
        %3054 = vmatprep.mubr.bf16.mxu0 0
        %3055 = vmatmul.mubr.bf16.gmra.mxu0 %v1206
        %v3056 = vpop.f32.mrf.mxu0
        %v3057 = vadd.f32 0.0, %v3056
        %v3058 = vpop.f32.mrf.mxu0
        %v3059 = vpop.f32.mrf.mxu0
        %v3060 = vadd.f32 0.0, %v3059
        %v3061 = vpop.f32.mrf.mxu0
        %3062 = vmatprep.mubr.bf16.mxu0 0
        %3063 = vmatmul.mubr.bf16.gmra.mxu0 %v1207
        %v3064 = vpop.f32.mrf.mxu0
        %v3065 = vadd.f32 0.0, %v3064
        %v3066 = vpop.f32.mrf.mxu0
        %v3067 = vpop.f32.mrf.mxu0
        %v3068 = vadd.f32 0.0, %v3067
        %v3069 = vpop.f32.mrf.mxu0
        %3070 = vmatprep.mubr.bf16.mxu0 0
        %3071 = vmatmul.mubr.bf16.gmra.mxu0 %v1208
        %v3072 = vpop.f32.mrf.mxu0
        %v3073 = vadd.f32 0.0, %v3072
        %v3074 = vpop.f32.mrf.mxu0
        %v3075 = vpop.f32.mrf.mxu0
        %v3076 = vadd.f32 0.0, %v3075
        %v3077 = vpop.f32.mrf.mxu0
        %3078 = vmatprep.mubr.bf16.mxu0 0
        %3079 = vmatmul.mubr.bf16.gmra.mxu0 %v1209
        %v3080 = vpop.f32.mrf.mxu0
        %v3081 = vadd.f32 0.0, %v3080
        %v3082 = vpop.f32.mrf.mxu0
        %v3083 = vpop.f32.mrf.mxu0
        %v3084 = vadd.f32 0.0, %v3083
        %v3085 = vpop.f32.mrf.mxu0
        %3086 = vmatprep.mubr.bf16.mxu0 0
        %3087 = vmatmul.mubr.bf16.gmra.mxu0 %v1210
        %v3088 = vpop.f32.mrf.mxu0
        %v3089 = vadd.f32 0.0, %v3088
        %v3090 = vpop.f32.mrf.mxu0
        %v3091 = vpop.f32.mrf.mxu0
        %v3092 = vadd.f32 0.0, %v3091
        %v3093 = vpop.f32.mrf.mxu0
        %3094 = vmatprep.mubr.bf16.mxu0 0
        %3095 = vmatmul.mubr.bf16.gmra.mxu0 %v1211
        %v3096 = vpop.f32.mrf.mxu0
        %v3097 = vadd.f32 0.0, %v3096
        %v3098 = vpop.f32.mrf.mxu0
        %v3099 = vpop.f32.mrf.mxu0
        %v3100 = vadd.f32 0.0, %v3099
        %v3101 = vpop.f32.mrf.mxu0
        %3102 = vmatprep.mubr.bf16.mxu0 0
        %3103 = vmatmul.mubr.bf16.gmra.mxu0 %v1212
        %v3104 = vpop.f32.mrf.mxu0
        %v3105 = vadd.f32 0.0, %v3104
        %v3106 = vpop.f32.mrf.mxu0
        %v3107 = vpop.f32.mrf.mxu0
        %v3108 = vadd.f32 0.0, %v3107
        %v3109 = vpop.f32.mrf.mxu0
        %3110 = vmatprep.mubr.bf16.mxu0 0
        %3111 = vmatmul.mubr.bf16.gmra.mxu0 %v1213
        %v3112 = vpop.f32.mrf.mxu0
        %v3113 = vadd.f32 0.0, %v3112
        %v3114 = vpop.f32.mrf.mxu0
        %v3115 = vpop.f32.mrf.mxu0
        %v3116 = vadd.f32 0.0, %v3115
        %v3117 = vpop.f32.mrf.mxu0
        %3118 = vdwg.mxu0
        %v3119 = vpack.c.bf16 %v2769, %v2766
        %v3120 = vpack.c.bf16 %v2777, %v2774
        %v3121 = vpack.c.bf16 %v2785, %v2782
        %v3122 = vpack.c.bf16 %v2793, %v2790
        %v3123 = vpack.c.bf16 %v2801, %v2798
        %v3124 = vpack.c.bf16 %v2809, %v2806
        %v3125 = vpack.c.bf16 %v2817, %v2814
        %v3126 = vpack.c.bf16 %v2825, %v2822
        %v3127 = vpack.c.bf16 %v2866, %v2863
        %v3128 = vpack.c.bf16 %v2874, %v2871
        %v3129 = vpack.c.bf16 %v2882, %v2879
        %v3130 = vpack.c.bf16 %v2890, %v2887
        %v3131 = vpack.c.bf16 %v2898, %v2895
        %v3132 = vpack.c.bf16 %v2906, %v2903
        %v3133 = vpack.c.bf16 %v2914, %v2911
        %v3134 = vpack.c.bf16 %v2922, %v2919
        %v3135 = vpack.c.bf16 %v2963, %v2960
        %v3136 = vpack.c.bf16 %v2971, %v2968
        %v3137 = vpack.c.bf16 %v2979, %v2976
        %v3138 = vpack.c.bf16 %v2987, %v2984
        %v3139 = vpack.c.bf16 %v2995, %v2992
        %v3140 = vpack.c.bf16 %v3003, %v3000
        %v3141 = vpack.c.bf16 %v3011, %v3008
        %v3142 = vpack.c.bf16 %v3019, %v3016
        %v3143 = vpack.c.bf16 %v3060, %v3057
        %v3144 = vpack.c.bf16 %v3068, %v3065
        %v3145 = vpack.c.bf16 %v3076, %v3073
        %v3146 = vpack.c.bf16 %v3084, %v3081
        %v3147 = vpack.c.bf16 %v3092, %v3089
        %v3148 = vpack.c.bf16 %v3100, %v3097
        %v3149 = vpack.c.bf16 %v3108, %v3105
        %v3150 = vpack.c.bf16 %v3116, %v3113
        %v3151 = vld [vmem:[#allocation10] sm:$0xf]
        %v3152 = vld [vmem:[#allocation10 + $0x4] sm:$0xf]
        %v3153 = vld [vmem:[#allocation10 + $0x8] sm:$0xf]
        %v3154 = vld [vmem:[#allocation10 + $0xc] sm:$0xf]
        %v3155 = vld [vmem:[#allocation10 + $0x10] sm:$0xf]
        %v3156 = vld [vmem:[#allocation10 + $0x14] sm:$0xf]
        %v3157 = vld [vmem:[#allocation10 + $0x18] sm:$0xf]
        %v3158 = vld [vmem:[#allocation10 + $0x1c] sm:$0xf]
        %v3159 = vld [vmem:[#allocation10 + $0x20] sm:$0xf]
        %v3160 = vld [vmem:[#allocation10 + $0x24] sm:$0xf]
        %v3161 = vld [vmem:[#allocation10 + $0x28] sm:$0xf]
        %v3162 = vld [vmem:[#allocation10 + $0x2c] sm:$0xf]
        %v3163 = vld [vmem:[#allocation10 + $0x30] sm:$0xf]
        %v3164 = vld [vmem:[#allocation10 + $0x34] sm:$0xf]
        %v3165 = vld [vmem:[#allocation10 + $0x38] sm:$0xf]
        %v3166 = vld [vmem:[#allocation10 + $0x3c] sm:$0xf]
        %v3167 = vld [vmem:[%s7] sm:$0x1]
        %v3169 = vlaneseq
        %v3170 = vshrl.u32 %v3169, 7
        %v3171 = vsub.s32 0, %v3170
        %v3172 = vrot.slane %v3167, %v3171
        %v3190 = vunpack.c.l.b16 %v3151
        %v3191 = vunpack.c.l.b16 %v3152
        %v3192 = vunpack.c.l.b16 %v3153
        %v3193 = vunpack.c.l.b16 %v3154
        %v3194 = vunpack.c.l.b16 %v3155
        %v3195 = vunpack.c.l.b16 %v3156
        %v3196 = vunpack.c.l.b16 %v3157
        %v3197 = vunpack.c.l.b16 %v3158
        %v3198 = vunpack.c.l.b16 %v3159
        %v3199 = vunpack.c.l.b16 %v3160
        %v3200 = vunpack.c.l.b16 %v3161
        %v3201 = vunpack.c.l.b16 %v3162
        %v3202 = vunpack.c.l.b16 %v3163
        %v3203 = vunpack.c.l.b16 %v3164
        %v3204 = vunpack.c.l.b16 %v3165
        %v3205 = vunpack.c.l.b16 %v3166
        %v3206 = vpack.c.b16 %v3191, %v3190
        %v3207 = vpack.c.b16 %v3193, %v3192
        %v3208 = vpack.c.b16 %v3195, %v3194
        %v3209 = vpack.c.b16 %v3197, %v3196
        %v3210 = vpack.c.b16 %v3199, %v3198
        %v3211 = vpack.c.b16 %v3201, %v3200
        %v3212 = vpack.c.b16 %v3203, %v3202
        %v3213 = vpack.c.b16 %v3205, %v3204
        %3222 = vmatprep.subr.bf16.mxu0 0
        %3223 = vmatpush1.bf16.msra.mxu0 %v3213
        %3224 = vmatprep.subr.bf16.mxu0 0
        %3225 = vmatpush1.bf16.msra.mxu0 %v3212
        %3226 = vmatprep.subr.bf16.mxu0 0
        %3227 = vmatpush1.bf16.msra.mxu0 %v3211
        %3228 = vmatprep.subr.bf16.mxu0 0
        %3229 = vmatpush1.bf16.msra.mxu0 %v3210
        %3230 = vmatprep.subr.bf16.mxu0 0
        %3231 = vmatpush1.bf16.msra.mxu0 %v3209
        %3232 = vmatprep.subr.bf16.mxu0 0
        %3233 = vmatpush1.bf16.msra.mxu0 %v3208
        %3234 = vmatprep.subr.bf16.mxu0 0
        %3235 = vmatpush1.bf16.msra.mxu0 %v3207
        %3236 = vmatprep.subr.bf16.mxu0 0
        %3237 = vmatpush1.bf16.msra.mxu0 %v3206
        %3238 = vmatprep.subr.bf16.mxu0 0
        %3239 = vmatpush2.bf16.msra.mxu0 0
        %3240 = vmatprep.subr.bf16.mxu0 0
        %3241 = vmatpush2.bf16.msra.mxu0 0
        %3242 = vmatprep.subr.bf16.mxu0 0
        %3243 = vmatpush2.bf16.msra.mxu0 0
        %3244 = vmatprep.subr.bf16.mxu0 0
        %3245 = vmatpush2.bf16.msra.mxu0 0
        %3246 = vmatprep.subr.bf16.mxu0 0
        %3247 = vmatpush2.bf16.msra.mxu0 0
        %3248 = vmatprep.subr.bf16.mxu0 0
        %3249 = vmatpush2.bf16.msra.mxu0 0
        %3250 = vmatprep.subr.bf16.mxu0 0
        %3251 = vmatpush2.bf16.msra.mxu0 0
        %3252 = vmatprep.subr.bf16.mxu0 0
        %3253 = vmatpush2.bf16.msra.mxu0 0
        %3254 = vmatprep.mubr.bf16.mxu0 0
        %3255 = vmatmul.mubr.bf16.gmra.mxu0 %v3119
        %v3256 = vpop.f32.mrf.mxu0
        %v3257 = vadd.f32 %v3172, %v3256
        %v3258 = vpop.f32.mrf.mxu0
        %v3259 = vpop.f32.mrf.mxu0
        %v3260 = vadd.f32 %v3172, %v3259
        %v3261 = vpop.f32.mrf.mxu0
        %3262 = vmatprep.mubr.bf16.mxu0 0
        %3263 = vmatmul.mubr.bf16.gmra.mxu0 %v3120
        %v3264 = vpop.f32.mrf.mxu0
        %v3265 = vadd.f32 %v3172, %v3264
        %v3266 = vpop.f32.mrf.mxu0
        %v3267 = vpop.f32.mrf.mxu0
        %v3268 = vadd.f32 %v3172, %v3267
        %v3269 = vpop.f32.mrf.mxu0
        %3270 = vmatprep.mubr.bf16.mxu0 0
        %3271 = vmatmul.mubr.bf16.gmra.mxu0 %v3121
        %v3272 = vpop.f32.mrf.mxu0
        %v3273 = vadd.f32 %v3172, %v3272
        %v3274 = vpop.f32.mrf.mxu0
        %v3275 = vpop.f32.mrf.mxu0
        %v3276 = vadd.f32 %v3172, %v3275
        %v3277 = vpop.f32.mrf.mxu0
        %3278 = vmatprep.mubr.bf16.mxu0 0
        %3279 = vmatmul.mubr.bf16.gmra.mxu0 %v3122
        %v3280 = vpop.f32.mrf.mxu0
        %v3281 = vadd.f32 %v3172, %v3280
        %v3282 = vpop.f32.mrf.mxu0
        %v3283 = vpop.f32.mrf.mxu0
        %v3284 = vadd.f32 %v3172, %v3283
        %v3285 = vpop.f32.mrf.mxu0
        %3286 = vmatprep.mubr.bf16.mxu0 0
        %3287 = vmatmul.mubr.bf16.gmra.mxu0 %v3123
        %v3288 = vpop.f32.mrf.mxu0
        %v3289 = vadd.f32 %v3172, %v3288
        %v3290 = vpop.f32.mrf.mxu0
        %v3291 = vpop.f32.mrf.mxu0
        %v3292 = vadd.f32 %v3172, %v3291
        %v3293 = vpop.f32.mrf.mxu0
        %3294 = vmatprep.mubr.bf16.mxu0 0
        %3295 = vmatmul.mubr.bf16.gmra.mxu0 %v3124
        %v3296 = vpop.f32.mrf.mxu0
        %v3297 = vadd.f32 %v3172, %v3296
        %v3298 = vpop.f32.mrf.mxu0
        %v3299 = vpop.f32.mrf.mxu0
        %v3300 = vadd.f32 %v3172, %v3299
        %v3301 = vpop.f32.mrf.mxu0
        %3302 = vmatprep.mubr.bf16.mxu0 0
        %3303 = vmatmul.mubr.bf16.gmra.mxu0 %v3125
        %v3304 = vpop.f32.mrf.mxu0
        %v3305 = vadd.f32 %v3172, %v3304
        %v3306 = vpop.f32.mrf.mxu0
        %v3307 = vpop.f32.mrf.mxu0
        %v3308 = vadd.f32 %v3172, %v3307
        %v3309 = vpop.f32.mrf.mxu0
        %3310 = vmatprep.mubr.bf16.mxu0 0
        %3311 = vmatmul.mubr.bf16.gmra.mxu0 %v3126
        %v3312 = vpop.f32.mrf.mxu0
        %v3313 = vadd.f32 %v3172, %v3312
        %v3314 = vpop.f32.mrf.mxu0
        %v3315 = vpop.f32.mrf.mxu0
        %v3316 = vadd.f32 %v3172, %v3315
        %v3317 = vpop.f32.mrf.mxu0
        %3318 = vmatprep.mubr.bf16.mxu0 0
        %3319 = vmatmul.mubr.bf16.gmra.mxu0 %v3127
        %v3320 = vpop.f32.mrf.mxu0
        %v3321 = vadd.f32 %v3172, %v3320
        %v3322 = vpop.f32.mrf.mxu0
        %v3323 = vpop.f32.mrf.mxu0
        %v3324 = vadd.f32 %v3172, %v3323
        %v3325 = vpop.f32.mrf.mxu0
        %3326 = vmatprep.mubr.bf16.mxu0 0
        %3327 = vmatmul.mubr.bf16.gmra.mxu0 %v3128
        %v3328 = vpop.f32.mrf.mxu0
        %v3329 = vadd.f32 %v3172, %v3328
        %v3330 = vpop.f32.mrf.mxu0
        %v3331 = vpop.f32.mrf.mxu0
        %v3332 = vadd.f32 %v3172, %v3331
        %v3333 = vpop.f32.mrf.mxu0
        %3334 = vmatprep.mubr.bf16.mxu0 0
        %3335 = vmatmul.mubr.bf16.gmra.mxu0 %v3129
        %v3336 = vpop.f32.mrf.mxu0
        %v3337 = vadd.f32 %v3172, %v3336
        %v3338 = vpop.f32.mrf.mxu0
        %v3339 = vpop.f32.mrf.mxu0
        %v3340 = vadd.f32 %v3172, %v3339
        %v3341 = vpop.f32.mrf.mxu0
        %3342 = vmatprep.mubr.bf16.mxu0 0
        %3343 = vmatmul.mubr.bf16.gmra.mxu0 %v3130
        %v3344 = vpop.f32.mrf.mxu0
        %v3345 = vadd.f32 %v3172, %v3344
        %v3346 = vpop.f32.mrf.mxu0
        %v3347 = vpop.f32.mrf.mxu0
        %v3348 = vadd.f32 %v3172, %v3347
        %v3349 = vpop.f32.mrf.mxu0
        %3350 = vmatprep.mubr.bf16.mxu0 0
        %3351 = vmatmul.mubr.bf16.gmra.mxu0 %v3131
        %v3352 = vpop.f32.mrf.mxu0
        %v3353 = vadd.f32 %v3172, %v3352
        %v3354 = vpop.f32.mrf.mxu0
        %v3355 = vpop.f32.mrf.mxu0
        %v3356 = vadd.f32 %v3172, %v3355
        %v3357 = vpop.f32.mrf.mxu0
        %3358 = vmatprep.mubr.bf16.mxu0 0
        %3359 = vmatmul.mubr.bf16.gmra.mxu0 %v3132
        %v3360 = vpop.f32.mrf.mxu0
        %v3361 = vadd.f32 %v3172, %v3360
        %v3362 = vpop.f32.mrf.mxu0
        %v3363 = vpop.f32.mrf.mxu0
        %v3364 = vadd.f32 %v3172, %v3363
        %v3365 = vpop.f32.mrf.mxu0
        %3366 = vmatprep.mubr.bf16.mxu0 0
        %3367 = vmatmul.mubr.bf16.gmra.mxu0 %v3133
        %v3368 = vpop.f32.mrf.mxu0
        %v3369 = vadd.f32 %v3172, %v3368
        %v3370 = vpop.f32.mrf.mxu0
        %v3371 = vpop.f32.mrf.mxu0
        %v3372 = vadd.f32 %v3172, %v3371
        %v3373 = vpop.f32.mrf.mxu0
        %3374 = vmatprep.mubr.bf16.mxu0 0
        %3375 = vmatmul.mubr.bf16.gmra.mxu0 %v3134
        %v3376 = vpop.f32.mrf.mxu0
        %v3377 = vadd.f32 %v3172, %v3376
        %v3378 = vpop.f32.mrf.mxu0
        %v3379 = vpop.f32.mrf.mxu0
        %v3380 = vadd.f32 %v3172, %v3379
        %v3381 = vpop.f32.mrf.mxu0
        %3382 = vmatprep.mubr.bf16.mxu0 0
        %3383 = vmatmul.mubr.bf16.gmra.mxu0 %v3135
        %v3384 = vpop.f32.mrf.mxu0
        %v3385 = vadd.f32 %v3172, %v3384
        %v3386 = vpop.f32.mrf.mxu0
        %v3387 = vpop.f32.mrf.mxu0
        %v3388 = vadd.f32 %v3172, %v3387
        %v3389 = vpop.f32.mrf.mxu0
        %3390 = vmatprep.mubr.bf16.mxu0 0
        %3391 = vmatmul.mubr.bf16.gmra.mxu0 %v3136
        %v3392 = vpop.f32.mrf.mxu0
        %v3393 = vadd.f32 %v3172, %v3392
        %v3394 = vpop.f32.mrf.mxu0
        %v3395 = vpop.f32.mrf.mxu0
        %v3396 = vadd.f32 %v3172, %v3395
        %v3397 = vpop.f32.mrf.mxu0
        %3398 = vmatprep.mubr.bf16.mxu0 0
        %3399 = vmatmul.mubr.bf16.gmra.mxu0 %v3137
        %v3400 = vpop.f32.mrf.mxu0
        %v3401 = vadd.f32 %v3172, %v3400
        %v3402 = vpop.f32.mrf.mxu0
        %v3403 = vpop.f32.mrf.mxu0
        %v3404 = vadd.f32 %v3172, %v3403
        %v3405 = vpop.f32.mrf.mxu0
        %3406 = vmatprep.mubr.bf16.mxu0 0
        %3407 = vmatmul.mubr.bf16.gmra.mxu0 %v3138
        %v3408 = vpop.f32.mrf.mxu0
        %v3409 = vadd.f32 %v3172, %v3408
        %v3410 = vpop.f32.mrf.mxu0
        %v3411 = vpop.f32.mrf.mxu0
        %v3412 = vadd.f32 %v3172, %v3411
        %v3413 = vpop.f32.mrf.mxu0
        %3414 = vmatprep.mubr.bf16.mxu0 0
        %3415 = vmatmul.mubr.bf16.gmra.mxu0 %v3139
        %v3416 = vpop.f32.mrf.mxu0
        %v3417 = vadd.f32 %v3172, %v3416
        %v3418 = vpop.f32.mrf.mxu0
        %v3419 = vpop.f32.mrf.mxu0
        %v3420 = vadd.f32 %v3172, %v3419
        %v3421 = vpop.f32.mrf.mxu0
        %3422 = vmatprep.mubr.bf16.mxu0 0
        %3423 = vmatmul.mubr.bf16.gmra.mxu0 %v3140
        %v3424 = vpop.f32.mrf.mxu0
        %v3425 = vadd.f32 %v3172, %v3424
        %v3426 = vpop.f32.mrf.mxu0
        %v3427 = vpop.f32.mrf.mxu0
        %v3428 = vadd.f32 %v3172, %v3427
        %v3429 = vpop.f32.mrf.mxu0
        %3430 = vmatprep.mubr.bf16.mxu0 0
        %3431 = vmatmul.mubr.bf16.gmra.mxu0 %v3141
        %v3432 = vpop.f32.mrf.mxu0
        %v3433 = vadd.f32 %v3172, %v3432
        %v3434 = vpop.f32.mrf.mxu0
        %v3435 = vpop.f32.mrf.mxu0
        %v3436 = vadd.f32 %v3172, %v3435
        %v3437 = vpop.f32.mrf.mxu0
        %3438 = vmatprep.mubr.bf16.mxu0 0
        %3439 = vmatmul.mubr.bf16.gmra.mxu0 %v3142
        %v3440 = vpop.f32.mrf.mxu0
        %v3441 = vadd.f32 %v3172, %v3440
        %v3442 = vpop.f32.mrf.mxu0
        %v3443 = vpop.f32.mrf.mxu0
        %v3444 = vadd.f32 %v3172, %v3443
        %v3445 = vpop.f32.mrf.mxu0
        %3446 = vmatprep.mubr.bf16.mxu0 0
        %3447 = vmatmul.mubr.bf16.gmra.mxu0 %v3143
        %v3448 = vpop.f32.mrf.mxu0
        %v3449 = vadd.f32 %v3172, %v3448
        %v3450 = vpop.f32.mrf.mxu0
        %v3451 = vpop.f32.mrf.mxu0
        %v3452 = vadd.f32 %v3172, %v3451
        %v3453 = vpop.f32.mrf.mxu0
        %3454 = vmatprep.mubr.bf16.mxu0 0
        %3455 = vmatmul.mubr.bf16.gmra.mxu0 %v3144
        %v3456 = vpop.f32.mrf.mxu0
        %v3457 = vadd.f32 %v3172, %v3456
        %v3458 = vpop.f32.mrf.mxu0
        %v3459 = vpop.f32.mrf.mxu0
        %v3460 = vadd.f32 %v3172, %v3459
        %v3461 = vpop.f32.mrf.mxu0
        %3462 = vmatprep.mubr.bf16.mxu0 0
        %3463 = vmatmul.mubr.bf16.gmra.mxu0 %v3145
        %v3464 = vpop.f32.mrf.mxu0
        %v3465 = vadd.f32 %v3172, %v3464
        %v3466 = vpop.f32.mrf.mxu0
        %v3467 = vpop.f32.mrf.mxu0
        %v3468 = vadd.f32 %v3172, %v3467
        %v3469 = vpop.f32.mrf.mxu0
        %3470 = vmatprep.mubr.bf16.mxu0 0
        %3471 = vmatmul.mubr.bf16.gmra.mxu0 %v3146
        %v3472 = vpop.f32.mrf.mxu0
        %v3473 = vadd.f32 %v3172, %v3472
        %v3474 = vpop.f32.mrf.mxu0
        %v3475 = vpop.f32.mrf.mxu0
        %v3476 = vadd.f32 %v3172, %v3475
        %v3477 = vpop.f32.mrf.mxu0
        %3478 = vmatprep.mubr.bf16.mxu0 0
        %3479 = vmatmul.mubr.bf16.gmra.mxu0 %v3147
        %v3480 = vpop.f32.mrf.mxu0
        %v3481 = vadd.f32 %v3172, %v3480
        %v3482 = vpop.f32.mrf.mxu0
        %v3483 = vpop.f32.mrf.mxu0
        %v3484 = vadd.f32 %v3172, %v3483
        %v3485 = vpop.f32.mrf.mxu0
        %3486 = vmatprep.mubr.bf16.mxu0 0
        %3487 = vmatmul.mubr.bf16.gmra.mxu0 %v3148
        %v3488 = vpop.f32.mrf.mxu0
        %v3489 = vadd.f32 %v3172, %v3488
        %v3490 = vpop.f32.mrf.mxu0
        %v3491 = vpop.f32.mrf.mxu0
        %v3492 = vadd.f32 %v3172, %v3491
        %v3493 = vpop.f32.mrf.mxu0
        %3494 = vmatprep.mubr.bf16.mxu0 0
        %3495 = vmatmul.mubr.bf16.gmra.mxu0 %v3149
        %v3496 = vpop.f32.mrf.mxu0
        %v3497 = vadd.f32 %v3172, %v3496
        %v3498 = vpop.f32.mrf.mxu0
        %v3499 = vpop.f32.mrf.mxu0
        %v3500 = vadd.f32 %v3172, %v3499
        %v3501 = vpop.f32.mrf.mxu0
        %3502 = vmatprep.mubr.bf16.mxu0 0
        %3503 = vmatmul.mubr.bf16.gmra.mxu0 %v3150
        %v3504 = vpop.f32.mrf.mxu0
        %v3505 = vadd.f32 %v3172, %v3504
        %v3506 = vpop.f32.mrf.mxu0
        %v3507 = vpop.f32.mrf.mxu0
        %v3508 = vadd.f32 %v3172, %v3507
        %v3509 = vpop.f32.mrf.mxu0
        %3510 = vdwg.mxu0
        %v3511 = vmax.f32 %v3257, 0.0
        %v3512 = vmax.f32 %v3260, 0.0
        %v3513 = vmax.f32 %v3265, 0.0
        %v3514 = vmax.f32 %v3268, 0.0
        %v3515 = vmax.f32 %v3273, 0.0
        %v3516 = vmax.f32 %v3276, 0.0
        %v3517 = vmax.f32 %v3281, 0.0
        %v3518 = vmax.f32 %v3284, 0.0
        %v3519 = vmax.f32 %v3289, 0.0
        %v3520 = vmax.f32 %v3292, 0.0
        %v3521 = vmax.f32 %v3297, 0.0
        %v3522 = vmax.f32 %v3300, 0.0
        %v3523 = vmax.f32 %v3305, 0.0
        %v3524 = vmax.f32 %v3308, 0.0
        %v3525 = vmax.f32 %v3313, 0.0
        %v3526 = vmax.f32 %v3316, 0.0
        %v3527 = vmax.f32 %v3321, 0.0
        %v3528 = vmax.f32 %v3324, 0.0
        %v3529 = vmax.f32 %v3329, 0.0
        %v3530 = vmax.f32 %v3332, 0.0
        %v3531 = vmax.f32 %v3337, 0.0
        %v3532 = vmax.f32 %v3340, 0.0
        %v3533 = vmax.f32 %v3345, 0.0
        %v3534 = vmax.f32 %v3348, 0.0
        %v3535 = vmax.f32 %v3353, 0.0
        %v3536 = vmax.f32 %v3356, 0.0
        %v3537 = vmax.f32 %v3361, 0.0
        %v3538 = vmax.f32 %v3364, 0.0
        %v3539 = vmax.f32 %v3369, 0.0
        %v3540 = vmax.f32 %v3372, 0.0
        %v3541 = vmax.f32 %v3377, 0.0
        %v3542 = vmax.f32 %v3380, 0.0
        %v3543 = vmax.f32 %v3385, 0.0
        %v3544 = vmax.f32 %v3388, 0.0
        %v3545 = vmax.f32 %v3393, 0.0
        %v3546 = vmax.f32 %v3396, 0.0
        %v3547 = vmax.f32 %v3401, 0.0
        %v3548 = vmax.f32 %v3404, 0.0
        %v3549 = vmax.f32 %v3409, 0.0
        %v3550 = vmax.f32 %v3412, 0.0
        %v3551 = vmax.f32 %v3417, 0.0
        %v3552 = vmax.f32 %v3420, 0.0
        %v3553 = vmax.f32 %v3425, 0.0
        %v3554 = vmax.f32 %v3428, 0.0
        %v3555 = vmax.f32 %v3433, 0.0
        %v3556 = vmax.f32 %v3436, 0.0
        %v3557 = vmax.f32 %v3441, 0.0
        %v3558 = vmax.f32 %v3444, 0.0
        %v3559 = vmax.f32 %v3449, 0.0
        %v3560 = vmax.f32 %v3452, 0.0
        %v3561 = vmax.f32 %v3457, 0.0
        %v3562 = vmax.f32 %v3460, 0.0
        %v3563 = vmax.f32 %v3465, 0.0
        %v3564 = vmax.f32 %v3468, 0.0
        %v3565 = vmax.f32 %v3473, 0.0
        %v3566 = vmax.f32 %v3476, 0.0
        %v3567 = vmax.f32 %v3481, 0.0
        %v3568 = vmax.f32 %v3484, 0.0
        %v3569 = vmax.f32 %v3489, 0.0
        %v3570 = vmax.f32 %v3492, 0.0
        %v3571 = vmax.f32 %v3497, 0.0
        %v3572 = vmax.f32 %v3500, 0.0
        %v3573 = vmax.f32 %v3505, 0.0
        %v3574 = vmax.f32 %v3508, 0.0
        %v3575 = vpack.c.bf16 %v3512, %v3511
        %v3576 = vpack.c.bf16 %v3514, %v3513
        %v3577 = vpack.c.bf16 %v3516, %v3515
        %v3578 = vpack.c.bf16 %v3518, %v3517
        %v3579 = vpack.c.bf16 %v3520, %v3519
        %v3580 = vpack.c.bf16 %v3522, %v3521
        %v3581 = vpack.c.bf16 %v3524, %v3523
        %v3582 = vpack.c.bf16 %v3526, %v3525
        %v3583 = vpack.c.bf16 %v3528, %v3527
        %v3584 = vpack.c.bf16 %v3530, %v3529
        %v3585 = vpack.c.bf16 %v3532, %v3531
        %v3586 = vpack.c.bf16 %v3534, %v3533
        %v3587 = vpack.c.bf16 %v3536, %v3535
        %v3588 = vpack.c.bf16 %v3538, %v3537
        %v3589 = vpack.c.bf16 %v3540, %v3539
        %v3590 = vpack.c.bf16 %v3542, %v3541
        %v3591 = vpack.c.bf16 %v3544, %v3543
        %v3592 = vpack.c.bf16 %v3546, %v3545
        %v3593 = vpack.c.bf16 %v3548, %v3547
        %v3594 = vpack.c.bf16 %v3550, %v3549
        %v3595 = vpack.c.bf16 %v3552, %v3551
        %v3596 = vpack.c.bf16 %v3554, %v3553
        %v3597 = vpack.c.bf16 %v3556, %v3555
        %v3598 = vpack.c.bf16 %v3558, %v3557
        %v3599 = vpack.c.bf16 %v3560, %v3559
        %v3600 = vpack.c.bf16 %v3562, %v3561
        %v3601 = vpack.c.bf16 %v3564, %v3563
        %v3602 = vpack.c.bf16 %v3566, %v3565
        %v3603 = vpack.c.bf16 %v3568, %v3567
        %v3604 = vpack.c.bf16 %v3570, %v3569
        %v3605 = vpack.c.bf16 %v3572, %v3571
        %v3606 = vpack.c.bf16 %v3574, %v3573
        %v3607 = vld [vmem:[%s8] sm:$0xf]
        %v3608 = vld [vmem:[%s9] sm:$0xff]
        %3610 = vset.pattern.permute.xlu0 0
        %3611 = vperm.xlu0 %3610, %v3608
        %v3612 = vpop.permute.xlu0 %3611
        %3614 = vmatprep.subr.bf16.mxu0 0
        %3615 = vmatpush1.bf16.xpose.msra.mxu0 %v3582
        %3616 = vmatprep.subr.bf16.mxu0 0
        %3617 = vmatpush1.bf16.xpose.msra.mxu0 %v3581
        %3618 = vmatprep.subr.bf16.mxu0 0
        %3619 = vmatpush1.bf16.xpose.msra.mxu0 %v3580
        %3620 = vmatprep.subr.bf16.mxu0 0
        %3621 = vmatpush1.bf16.xpose.msra.mxu0 %v3579
        %3622 = vmatprep.subr.bf16.mxu0 0
        %3623 = vmatpush1.bf16.xpose.msra.mxu0 %v3578
        %3624 = vmatprep.subr.bf16.mxu0 0
        %3625 = vmatpush1.bf16.xpose.msra.mxu0 %v3577
        %3626 = vmatprep.subr.bf16.mxu0 0
        %3627 = vmatpush1.bf16.xpose.msra.mxu0 %v3576
        %3628 = vmatprep.subr.bf16.mxu0 0
        %3629 = vmatpush1.bf16.xpose.msra.mxu0 %v3575
        %3630 = vmatprep.subr.bf16.mxu0 0
        %3631 = vmatpush2.bf16.xpose.msra.mxu0 0
        %3632 = vmatprep.subr.bf16.mxu0 0
        %3633 = vmatpush2.bf16.xpose.msra.mxu0 0
        %3634 = vmatprep.subr.bf16.mxu0 0
        %3635 = vmatpush2.bf16.xpose.msra.mxu0 0
        %3636 = vmatprep.subr.bf16.mxu0 0
        %3637 = vmatpush2.bf16.xpose.msra.mxu0 0
        %3638 = vmatprep.subr.bf16.mxu0 0
        %3639 = vmatpush2.bf16.xpose.msra.mxu0 0
        %3640 = vmatprep.subr.bf16.mxu0 0
        %3641 = vmatpush2.bf16.xpose.msra.mxu0 0
        %3642 = vmatprep.subr.bf16.mxu0 0
        %3643 = vmatpush2.bf16.xpose.msra.mxu0 0
        %3644 = vmatprep.subr.bf16.mxu0 0
        %3645 = vmatpush2.bf16.xpose.msra.mxu0 0
        %3646 = vmatprep.mubr.bf16.mxu0 0
        %3647 = vmatmul.mubr.bf16.gmra.mxu0 %v3607
        %v3648 = vpop.f32.mrf.mxu0
        %v3649 = vadd.f32 %v3612, %v3648
        %v3650 = vpop.f32.mrf.mxu0
        %v3651 = vpop.f32.mrf.mxu0
        %v3652 = vpop.f32.mrf.mxu0
        %3653 = vdwg.mxu0
        %3654 = vst [vmem:[%s462] sm:$0xff] %v3649
        %v3655 = vld [vmem:[%s8] sm:$0xf]
        %v3656 = vld [vmem:[%s9] sm:$0xff]
        %3658 = vset.pattern.permute.xlu0 0
        %3659 = vperm.xlu0 %3658, %v3656
        %v3660 = vpop.permute.xlu0 %3659
        %3662 = vmatprep.subr.bf16.mxu0 0
        %3663 = vmatpush1.bf16.xpose.msra.mxu0 %v3590
        %3664 = vmatprep.subr.bf16.mxu0 0
        %3665 = vmatpush1.bf16.xpose.msra.mxu0 %v3589
        %3666 = vmatprep.subr.bf16.mxu0 0
        %3667 = vmatpush1.bf16.xpose.msra.mxu0 %v3588
        %3668 = vmatprep.subr.bf16.mxu0 0
        %3669 = vmatpush1.bf16.xpose.msra.mxu0 %v3587
        %3670 = vmatprep.subr.bf16.mxu0 0
        %3671 = vmatpush1.bf16.xpose.msra.mxu0 %v3586
        %3672 = vmatprep.subr.bf16.mxu0 0
        %3673 = vmatpush1.bf16.xpose.msra.mxu0 %v3585
        %3674 = vmatprep.subr.bf16.mxu0 0
        %3675 = vmatpush1.bf16.xpose.msra.mxu0 %v3584
        %3676 = vmatprep.subr.bf16.mxu0 0
        %3677 = vmatpush1.bf16.xpose.msra.mxu0 %v3583
        %3678 = vmatprep.subr.bf16.mxu0 0
        %3679 = vmatpush2.bf16.xpose.msra.mxu0 0
        %3680 = vmatprep.subr.bf16.mxu0 0
        %3681 = vmatpush2.bf16.xpose.msra.mxu0 0
        %3682 = vmatprep.subr.bf16.mxu0 0
        %3683 = vmatpush2.bf16.xpose.msra.mxu0 0
        %3684 = vmatprep.subr.bf16.mxu0 0
        %3685 = vmatpush2.bf16.xpose.msra.mxu0 0
        %3686 = vmatprep.subr.bf16.mxu0 0
        %3687 = vmatpush2.bf16.xpose.msra.mxu0 0
        %3688 = vmatprep.subr.bf16.mxu0 0
        %3689 = vmatpush2.bf16.xpose.msra.mxu0 0
        %3690 = vmatprep.subr.bf16.mxu0 0
        %3691 = vmatpush2.bf16.xpose.msra.mxu0 0
        %3692 = vmatprep.subr.bf16.mxu0 0
        %3693 = vmatpush2.bf16.xpose.msra.mxu0 0
        %3694 = vmatprep.mubr.bf16.mxu0 0
        %3695 = vmatmul.mubr.bf16.gmra.mxu0 %v3655
        %v3696 = vpop.f32.mrf.mxu0
        %v3697 = vadd.f32 %v3660, %v3696
        %v3698 = vpop.f32.mrf.mxu0
        %v3699 = vpop.f32.mrf.mxu0
        %v3700 = vpop.f32.mrf.mxu0
        %3701 = vdwg.mxu0
        %s3702 = scalar_lea.vmem %s462, 8 [#allocation11]
        %3703 = vst [vmem:[%s3702] sm:$0xff] %v3697
        %v3704 = vld [vmem:[%s8] sm:$0xf]
        %v3705 = vld [vmem:[%s9] sm:$0xff]
        %3707 = vset.pattern.permute.xlu0 0
        %3708 = vperm.xlu0 %3707, %v3705
        %v3709 = vpop.permute.xlu0 %3708
        %3711 = vmatprep.subr.bf16.mxu0 0
        %3712 = vmatpush1.bf16.xpose.msra.mxu0 %v3598
        %3713 = vmatprep.subr.bf16.mxu0 0
        %3714 = vmatpush1.bf16.xpose.msra.mxu0 %v3597
        %3715 = vmatprep.subr.bf16.mxu0 0
        %3716 = vmatpush1.bf16.xpose.msra.mxu0 %v3596
        %3717 = vmatprep.subr.bf16.mxu0 0
        %3718 = vmatpush1.bf16.xpose.msra.mxu0 %v3595
        %3719 = vmatprep.subr.bf16.mxu0 0
        %3720 = vmatpush1.bf16.xpose.msra.mxu0 %v3594
        %3721 = vmatprep.subr.bf16.mxu0 0
        %3722 = vmatpush1.bf16.xpose.msra.mxu0 %v3593
        %3723 = vmatprep.subr.bf16.mxu0 0
        %3724 = vmatpush1.bf16.xpose.msra.mxu0 %v3592
        %3725 = vmatprep.subr.bf16.mxu0 0
        %3726 = vmatpush1.bf16.xpose.msra.mxu0 %v3591
        %3727 = vmatprep.subr.bf16.mxu0 0
        %3728 = vmatpush2.bf16.xpose.msra.mxu0 0
        %3729 = vmatprep.subr.bf16.mxu0 0
        %3730 = vmatpush2.bf16.xpose.msra.mxu0 0
        %3731 = vmatprep.subr.bf16.mxu0 0
        %3732 = vmatpush2.bf16.xpose.msra.mxu0 0
        %3733 = vmatprep.subr.bf16.mxu0 0
        %3734 = vmatpush2.bf16.xpose.msra.mxu0 0
        %3735 = vmatprep.subr.bf16.mxu0 0
        %3736 = vmatpush2.bf16.xpose.msra.mxu0 0
        %3737 = vmatprep.subr.bf16.mxu0 0
        %3738 = vmatpush2.bf16.xpose.msra.mxu0 0
        %3739 = vmatprep.subr.bf16.mxu0 0
        %3740 = vmatpush2.bf16.xpose.msra.mxu0 0
        %3741 = vmatprep.subr.bf16.mxu0 0
        %3742 = vmatpush2.bf16.xpose.msra.mxu0 0
        %3743 = vmatprep.mubr.bf16.mxu0 0
        %3744 = vmatmul.mubr.bf16.gmra.mxu0 %v3704
        %v3745 = vpop.f32.mrf.mxu0
        %v3746 = vadd.f32 %v3709, %v3745
        %v3747 = vpop.f32.mrf.mxu0
        %v3748 = vpop.f32.mrf.mxu0
        %v3749 = vpop.f32.mrf.mxu0
        %3750 = vdwg.mxu0
        %s3751 = scalar_lea.vmem %s462, 16 [#allocation11]
        %3752 = vst [vmem:[%s3751] sm:$0xff] %v3746
        %v3753 = vld [vmem:[%s8] sm:$0xf]
        %v3754 = vld [vmem:[%s9] sm:$0xff]
        %3756 = vset.pattern.permute.xlu0 0
        %3757 = vperm.xlu0 %3756, %v3754
        %v3758 = vpop.permute.xlu0 %3757
        %3760 = vmatprep.subr.bf16.mxu0 0
        %3761 = vmatpush1.bf16.xpose.msra.mxu0 %v3606
        %3762 = vmatprep.subr.bf16.mxu0 0
        %3763 = vmatpush1.bf16.xpose.msra.mxu0 %v3605
        %3764 = vmatprep.subr.bf16.mxu0 0
        %3765 = vmatpush1.bf16.xpose.msra.mxu0 %v3604
        %3766 = vmatprep.subr.bf16.mxu0 0
        %3767 = vmatpush1.bf16.xpose.msra.mxu0 %v3603
        %3768 = vmatprep.subr.bf16.mxu0 0
        %3769 = vmatpush1.bf16.xpose.msra.mxu0 %v3602
        %3770 = vmatprep.subr.bf16.mxu0 0
        %3771 = vmatpush1.bf16.xpose.msra.mxu0 %v3601
        %3772 = vmatprep.subr.bf16.mxu0 0
        %3773 = vmatpush1.bf16.xpose.msra.mxu0 %v3600
        %3774 = vmatprep.subr.bf16.mxu0 0
        %3775 = vmatpush1.bf16.xpose.msra.mxu0 %v3599
        %3776 = vmatprep.subr.bf16.mxu0 0
        %3777 = vmatpush2.bf16.xpose.msra.mxu0 0
        %3778 = vmatprep.subr.bf16.mxu0 0
        %3779 = vmatpush2.bf16.xpose.msra.mxu0 0
        %3780 = vmatprep.subr.bf16.mxu0 0
        %3781 = vmatpush2.bf16.xpose.msra.mxu0 0
        %3782 = vmatprep.subr.bf16.mxu0 0
        %3783 = vmatpush2.bf16.xpose.msra.mxu0 0
        %3784 = vmatprep.subr.bf16.mxu0 0
        %3785 = vmatpush2.bf16.xpose.msra.mxu0 0
        %3786 = vmatprep.subr.bf16.mxu0 0
        %3787 = vmatpush2.bf16.xpose.msra.mxu0 0
        %3788 = vmatprep.subr.bf16.mxu0 0
        %3789 = vmatpush2.bf16.xpose.msra.mxu0 0
        %3790 = vmatprep.subr.bf16.mxu0 0
        %3791 = vmatpush2.bf16.xpose.msra.mxu0 0
        %3792 = vmatprep.mubr.bf16.mxu0 0
        %3793 = vmatmul.mubr.bf16.gmra.mxu0 %v3753
        %v3794 = vpop.f32.mrf.mxu0
        %v3795 = vadd.f32 %v3758, %v3794
        %v3796 = vpop.f32.mrf.mxu0
        %v3797 = vpop.f32.mrf.mxu0
        %v3798 = vpop.f32.mrf.mxu0
        %3799 = vdwg.mxu0
        %s3800 = scalar_lea.vmem %s462, 24 [#allocation11]
        %3801 = vst [vmem:[%s3800] sm:$0xff] %v3795
        %s3802 = sand.u32 %s259, 1
        %s3803 = scalar_lea.sflag [#allocation4], %s3802
        %s3804 = sand.u32 %s259, 1
        %s3805 = smul.addr %s3804, 32
        %s3806 = scalar_lea.vmem [#allocation11], %s3805
        // Predicated region
        $region81: #{tpu_custom_call.1} parent=59 // pred_check
          %p3807 = pneg %p269
        $region82: #{tpu_custom_call.1} parent=59 // pred_check_branch
          %3809 = sbr.rel (%p3807) target = $region84
        $region83: #{tpu_custom_call.1} parent=59 // pred_region
          %s3810 = smul.u32 4, %s31
          %s3812 = ssub.s32 512, 512
          %3813 = vsyncadd %s3803, %s3812
          %s3814 = smul.addr %s3810, 128
          %s3815 = scalar_lea.hbm %s10, %s3814
          %s3816 = sshll.u32 %s3806, 4
          %s3817 = int_to_ptr.vmem [resolvable:$true] %s3816
          %3822 = dma.vmem_to_hbm [thread:$0]  %s3817, 512, %s3815, %s3803, 128, 128, 8
        $region84: #{tpu_custom_call.1} parent=59 // pred_fallthru
          _
      $region60: #{tpu_custom_call.1} parent=5 // pred_fallthru
        _
      %p3823 = scmp.le.s32.totalorder 2, %s26
      // Predicated region
      $region85: #{tpu_custom_call.1} parent=5 // pred_check
        %p3824 = pneg %p3823
      $region86: #{tpu_custom_call.1} parent=5 // pred_check_branch
        %3826 = sbr.rel (%p3824) target = $region88
      $region87: #{tpu_custom_call.1} parent=5 // pred_region
        %s3827 = ssub.s32 %s26, 2
        // Predicated region
        $region89: #{tpu_custom_call.1} parent=87 // pred_check
          %p3828 = pneg %p275
        $region90: #{tpu_custom_call.1} parent=87 // pred_check_branch
          %3830 = sbr.rel (%p3828) target = $region92
        $region91: #{tpu_custom_call.1} parent=87 // pred_region
          %s3831 = sand.u32 %s260, 1
          %s3832 = scalar_lea.sflag [#allocation4], %s3831
          %s3833 = sand.u32 %s260, 1
          %s3834 = smul.addr %s3833, 32
          %s3835 = scalar_lea.vmem [#allocation11], %s3834
          %3836 = dma.done %s3832, 512
        $region92: #{tpu_custom_call.1} parent=87 // pred_fallthru
          _
      $region88: #{tpu_custom_call.1} parent=5 // pred_fallthru
        _
    $region6: #{tpu_custom_call.1} parent=1 // loop_footer
      %s30 = sadd.s32 1, %s26
    $region7: #{tpu_custom_call.1} parent=1 // loop_footer_branch
      %25 = sbr.rel target = $region3
    $region8: #{tpu_custom_call.1} parent=1 // loop_exit
      _
    %3837 = vsyncpa [#allocation3], 1
    %s3838 = scalar_lea.sflag [#allocation3], 1
    %3839 = vsyncpa %s3838, 1
    %3840 = vsyncpa [#allocation6], 1
    %s3841 = scalar_lea.sflag [#allocation6], 1
    %3842 = vsyncpa %s3841, 1
    %3843 = vsyncpa [#allocation9], 1
    %3844 = vsyncpa [#allocation4], 1
    %s3845 = scalar_lea.sflag [#allocation4], 1
    %3846 = vsyncpa %s3845, 1

</llo_original>
